<compile_context>
chip_gen: v5e
topology: v5e:2x2
jax: 0.10.0
libtpu: 0.0.40
codegen_flags: <defaults>
</compile_context>

<pallas_src>
import math

import jax
import jax.numpy as jnp
from jax.experimental import pallas as pl
from jax.experimental.pallas import tpu as pltpu

_VMEM_LIMIT = 48 * 1024 * 1024     # > v5e/v6e default scoped limit, < v7x 64 MiB physical
_NEG_INF = -1e9


def _largest_tile(n, cap):
    """Largest multiple-of-8 divisor of n that is <= cap (fallback: n)."""
    best = None
    for t in range(8, min(n, cap) + 1, 8):
        if n % t == 0:
            best = t
    return best if best is not None else n


# ----------------------------------------------------------------------------
# Fused attention sub-layer kernel:  out = LN(x_q + MHA(x_q, x_kv))
# Grid: (batch, q-row tiles); x_kv / weights are full-resident per step.
# ----------------------------------------------------------------------------
def _make_attn_kernel(num_heads, head_dim, scale, causal, tq):
    def kernel(xq_ref, xkv_ref, kbias_ref, wq_ref, bq_ref, wkv_ref, bkv_ref,
               wo_ref, bo_ref, g_ref, b_ref, o_ref):
        xq_raw = xq_ref[...]                               # (tq, D) bf16 or f32
        xq = xq_raw.astype(jnp.float32)
        d_model = xq.shape[-1]
        sk = xkv_ref.shape[0]

        # Q and fused K/V projections: bf16 MXU inputs, f32 accumulation.
        q = jnp.dot(xq_raw.astype(jnp.bfloat16), wq_ref[...],
                    preferred_element_type=jnp.float32) + bq_ref[...]        # (tq, D)
        q = q * scale                                      # fold 1/sqrt(Dh) once into q
        kv = jnp.dot(xkv_ref[...].astype(jnp.bfloat16), wkv_ref[...],
                     preferred_element_type=jnp.float32) + bkv_ref[...]      # (Sk, 2D)
        k = kv[:, :d_model]
        v = kv[:, d_model:]

        # Additive bias built in-kernel: per-batch key-padding row (+ causal via iota).
        bias = jnp.broadcast_to(kbias_ref[...].astype(jnp.float32), (tq, sk))
        if causal:
            q_off = pl.program_id(1) * tq
            row = jax.lax.broadcasted_iota(jnp.int32, (tq, sk), 0) + q_off
            col = jax.lax.broadcasted_iota(jnp.int32, (tq, sk), 1)
            bias = bias + jnp.where(row >= col, 0.0, _NEG_INF)

        # Per-head softmax(QK^T)V; heads are concatenated so the output projection is a
        # single full-D contraction on the MXU (no per-head Dh-contraction matmuls).
        # TODO(synk): for long key lengths convert to a flash-style online softmax with
        #             Sk tiling and a head-leading (H, S, Dh) relayout instead of
        #             per-head lane slices.
        heads = []
        for h in range(num_heads):
            sl = slice(h * head_dim, (h + 1) * head_dim)
            qh = q[:, sl].astype(jnp.bfloat16)             # (tq, Dh)
            kh = k[:, sl].astype(jnp.bfloat16)             # (Sk, Dh)
            vh = v[:, sl].astype(jnp.bfloat16)             # (Sk, Dh)

            s = jax.lax.dot_general(qh, kh, (((1,), (1,)), ((), ())),
                                    preferred_element_type=jnp.float32)      # (tq, Sk)
            s = s + bias
            s = s - jnp.max(s, axis=-1, keepdims=True)
            p = jnp.exp(s)
            p = p * pl.reciprocal(jnp.sum(p, axis=-1, keepdims=True), approx=True)
            heads.append(jnp.dot(p.astype(jnp.bfloat16), vh,
                                 preferred_element_type=jnp.float32))        # (tq, Dh)
        o = jnp.concatenate(heads, axis=-1)                                  # (tq, D)

        attn = jnp.dot(o.astype(jnp.bfloat16), wo_ref[...],
                       preferred_element_type=jnp.float32) + bo_ref[...]

        # Residual + LayerNorm (f32 statistics).
        r = xq + attn
        mu = jnp.mean(r, axis=-1, keepdims=True)
        var = jnp.mean((r - mu) ** 2, axis=-1, keepdims=True)
        xn = (r - mu) * jax.lax.rsqrt(var + 1e-5)
        o_ref[...] = (xn * g_ref[...] + b_ref[...]).astype(o_ref.dtype)

    return kernel


def _attn_sublayer(x_q, x_kv, key_bias, p, num_heads, causal, out_dtype):
    B, Sq, D = x_q.shape
    Sk = x_kv.shape[1]
    Dh = D // num_heads
    scale = 1.0 / math.sqrt(Dh)
    tq = _largest_tile(Sq, 256)
    # TODO(synk): pad Sq when it has no multiple-of-8 divisor <= 256 (tq falls back to Sq).
    kernel = _make_attn_kernel(num_heads, Dh, scale, causal, tq)
    full2 = lambda b, qi: (0, 0)

    flops = 2 * B * (2 * Sq * D * D + 2 * Sk * D * D + 2 * Sq * Sk * D)
    transcendentals = B * num_heads * Sq * Sk
    bytes_accessed = ((2 * B * Sq * D + B * Sk * D) * x_q.dtype.itemsize
                      + 8 * D * D + B * Sk * 4)

    return pl.pallas_call(
        kernel,
        out_shape=jax.ShapeDtypeStruct((B, Sq, D), out_dtype),
        grid=(B, Sq // tq),
        in_specs=[
            pl.BlockSpec((None, tq, D), lambda b, qi: (b, qi, 0)),   # x_q (row tile)
            pl.BlockSpec((None, Sk, D), lambda b, qi: (b, 0, 0)),    # x_kv (full keys)
            pl.BlockSpec((None, 1, Sk), lambda b, qi: (b, 0, 0)),    # key-padding bias row
            pl.BlockSpec((D, D), full2),                             # wq (bf16)
            pl.BlockSpec((1, D), full2),                             # bq
            pl.BlockSpec((D, 2 * D), full2),                         # wkv (bf16)
            pl.BlockSpec((1, 2 * D), full2),                         # bkv
            pl.BlockSpec((D, D), full2),                             # wo (bf16)
            pl.BlockSpec((1, D), full2),                             # bo
            pl.BlockSpec((1, D), full2),                             # ln gamma
            pl.BlockSpec((1, D), full2),                             # ln beta
        ],
        out_specs=pl.BlockSpec((None, tq, D), lambda b, qi: (b, qi, 0)),
        compiler_params=pltpu.CompilerParams(
            dimension_semantics=("parallel", "parallel"),
            vmem_limit_bytes=_VMEM_LIMIT),
        cost_estimate=pl.CostEstimate(
            flops=flops, transcendentals=transcendentals,
            bytes_accessed=bytes_accessed),
    )(x_q, x_kv, key_bias, p["wq"], p["bq"], p["wkv"], p["bkv"],
      p["wo"], p["bo"], p["ln_g"], p["ln_b"])


# ----------------------------------------------------------------------------
# Fused FFN sub-layer kernel:  out = LN(x + relu(x@W1+b1)@W2 + b2)
# ----------------------------------------------------------------------------
def _ffn_kernel(x_ref, w1_ref, b1_ref, w2_ref, b2_ref, g_ref, b_ref, o_ref):
    x = x_ref[...].astype(jnp.float32)                                        # (tm, D)
    h = jnp.dot(x_ref[...].astype(jnp.bfloat16), w1_ref[...],
                preferred_element_type=jnp.float32) + b1_ref[...]             # (tm, Dff)
    h = jnp.maximum(h, 0.0)
    y = jnp.dot(h.astype(jnp.bfloat16), w2_ref[...],
                preferred_element_type=jnp.float32) + b2_ref[...]             # (tm, D)
    r = x + y
    mu = jnp.mean(r, axis=-1, keepdims=True)
    var = jnp.mean((r - mu) ** 2, axis=-1, keepdims=True)
    o_ref[...] = ((r - mu) * jax.lax.rsqrt(var + 1e-5) * g_ref[...]
                  + b_ref[...]).astype(o_ref.dtype)


def _ffn_sublayer(x, p, out_dtype):
    B, S, D = x.shape
    Dff = p["w1"].shape[1]
    M = B * S
    # 512-row tiles (~85% of HBM roofline on v6e); ragged tails are zero-padded.
    tm = min(512, -(-M // 8) * 8)
    Mp = -(-M // tm) * tm
    x2 = x.reshape(M, D)
    if Mp != M:
        x2 = jnp.pad(x2, ((0, Mp - M), (0, 0)))
    full1 = lambda i: (0, 0)
    # TODO(synk): for large d_model/d_ff, K/N-tile w1/w2 with an f32 VMEM accumulator
    #             instead of keeping the full weights resident per grid step.
    flops = 4 * Mp * D * Dff
    bytes_accessed = 2 * Mp * D * x.dtype.itemsize + 4 * D * Dff

    out = pl.pallas_call(
        _ffn_kernel,
        out_shape=jax.ShapeDtypeStruct((Mp, D), out_dtype),
        grid=(Mp // tm,),
        in_specs=[
            pl.BlockSpec((tm, D), lambda i: (i, 0)),
            pl.BlockSpec((D, Dff), full1),
            pl.BlockSpec((1, Dff), full1),
            pl.BlockSpec((Dff, D), full1),
            pl.BlockSpec((1, D), full1),
            pl.BlockSpec((1, D), full1),
            pl.BlockSpec((1, D), full1),
        ],
        out_specs=pl.BlockSpec((tm, D), lambda i: (i, 0)),
        compiler_params=pltpu.CompilerParams(
            dimension_semantics=("parallel",),
            vmem_limit_bytes=_VMEM_LIMIT),
        cost_estimate=pl.CostEstimate(flops=flops, transcendentals=0,
                                      bytes_accessed=bytes_accessed),
    )(x2, p["w1"], p["b1"], p["w2"], p["b2"], p["ln_g"], p["ln_b"])
    return out[:M].reshape(B, S, D)


# ----------------------------------------------------------------------------
# Transformer forward
# ----------------------------------------------------------------------------
def transformer_forward(params, src, src_mask, tgt, tgt_mask, num_heads):
    B, Ss, D = src.shape
    St = tgt.shape[1]

    # src padding is a key-only mask: keep just a (B,1,Ss) additive row, the (Sq,Sk)
    # bias is rebuilt inside the kernel (no per-step HBM DMA of a full bias block).
    src_kbias = ((1.0 - src_mask.reshape(B, Ss).astype(jnp.float32))
                 * _NEG_INF).reshape(B, 1, Ss)
    # tgt_mask's causal part is built in-kernel via iota; any key padding it carries is
    # recovered from its last query row (exact for causal ∧ key-padding style masks).
    tgt_kbias = ((1.0 - tgt_mask[:, 0, St - 1, :].astype(jnp.float32))
                 * _NEG_INF).reshape(B, 1, St)

    act = jnp.bfloat16   # inter-sublayer activations in bf16 (halves HBM traffic)

    # Encoder
    x = src
    for lp in params["encoder"]:
        x = _attn_sublayer(x, x, src_kbias, lp["attn"], num_heads,
                           causal=False, out_dtype=act)
        x = _ffn_sublayer(x, lp["ffn"], out_dtype=act)
    enc_out = x

    # Decoder
    y = tgt
    n_dec = len(params["decoder"])
    for li, lp in enumerate(params["decoder"]):
        last = li == n_dec - 1
        y = _attn_sublayer(y, y, tgt_kbias, lp["self_attn"], num_heads,
                           causal=True, out_dtype=act)
        y = _attn_sublayer(y, enc_out, src_kbias, lp["cross_attn"], num_heads,
                           causal=False, out_dtype=act)
        y = _ffn_sublayer(y, lp["ffn"],
                          out_dtype=jnp.float32 if last else act)
    return y
    # TODO(synk): dropout(p=0.0) is a no-op and is intentionally omitted.


# ----------------------------------------------------------------------------
# Deterministic parameter init (weights stored bf16 for MXU / DMA efficiency)
# ----------------------------------------------------------------------------
def init_params(key, d_model, n_enc, n_dec, d_ff):
    keys = iter(jax.random.split(key, 4096))

    def dense(din, dout):
        w = (jax.random.normal(next(keys), (din, dout), jnp.float32)
             * (din ** -0.5)).astype(jnp.bfloat16)
        b = jnp.zeros((1, dout), jnp.float32)
        return w, b

    def ln():
        return (jnp.ones((1, d_model), jnp.float32),
                jnp.zeros((1, d_model), jnp.float32))

    def attn_block():
        wq, bq = dense(d_model, d_model)
        wkv, bkv = dense(d_model, 2 * d_model)   # fused K/V projection
        wo, bo = dense(d_model, d_model)
        g, b = ln()
        return {"wq": wq, "bq": bq, "wkv": wkv, "bkv": bkv,
                "wo": wo, "bo": bo, "ln_g": g, "ln_b": b}

    def ffn_block():
        w1, b1 = dense(d_model, d_ff)
        w2, b2 = dense(d_ff, d_model)
        g, b = ln()
        return {"w1": w1, "b1": b1, "w2": w2, "b2": b2, "ln_g": g, "ln_b": b}

    enc = [{"attn": attn_block(), "ffn": ffn_block()} for _ in range(n_enc)]
    dec = [{"self_attn": attn_block(), "cross_attn": attn_block(),
            "ffn": ffn_block()} for _ in range(n_dec)]
    return {"encoder": enc, "decoder": dec}


# ----------------------------------------------------------------------------
# Main
# ----------------------------------------------------------------------------
if __name__ == "__main__":
    B = 2
    S_SRC = 8
    S_TGT = 8
    D_MODEL = 32
    NUM_HEADS = 4
    NUM_ENC = 2
    NUM_DEC = 2
    D_FF = 4 * D_MODEL

    root = jax.random.PRNGKey(0)
    k_params, k_src, k_tgt = jax.random.split(root, 3)

    params = init_params(k_params, D_MODEL, NUM_ENC, NUM_DEC, D_FF)

    src = jax.random.normal(k_src, (B, S_SRC, D_MODEL), jnp.float32)
    tgt = jax.random.normal(k_tgt, (B, S_TGT, D_MODEL), jnp.float32)

    # src padding mask: batch 0 full length, batch 1 last 2 positions padded
    src_lens = jnp.array([S_SRC, S_SRC - 2])
    src_mask = (jnp.arange(S_SRC)[None, :] < src_lens[:, None]).astype(jnp.float32)
    src_mask = src_mask.reshape(B, 1, 1, S_SRC)

    # tgt causal mask
    causal = jnp.tril(jnp.ones((S_TGT, S_TGT), jnp.float32))
    tgt_mask = jnp.broadcast_to(causal, (B, 1, S_TGT, S_TGT))

    fwd = jax.jit(
        lambda p, s, sm, t, tmask: transformer_forward(p, s, sm, t, tmask, NUM_HEADS)
    )
    out = fwd(params, src, src_mask, tgt, tgt_mask)
    out = jax.block_until_ready(out)

    assert out.shape == (B, S_TGT, D_MODEL)
    assert out.dtype == jnp.float32
    assert bool(jnp.all(jnp.isfinite(out)))
    print("KERNEL_OK")
</pallas_src>

<mosaic_0001>
module attributes {stable_mosaic.version = 11 : i64} {
  func.func @kernel(%arg0: i32, %arg1: i32, %arg2: memref<1x8x32xf32, #tpu.memory_space<vmem>>, %arg3: memref<1x8x32xf32, #tpu.memory_space<vmem>>, %arg4: memref<1x1x8xf32, #tpu.memory_space<vmem>>, %arg5: memref<32x32xbf16, #tpu.memory_space<vmem>>, %arg6: memref<1x32xf32, #tpu.memory_space<vmem>>, %arg7: memref<32x64xbf16, #tpu.memory_space<vmem>>, %arg8: memref<1x64xf32, #tpu.memory_space<vmem>>, %arg9: memref<32x32xbf16, #tpu.memory_space<vmem>>, %arg10: memref<1x32xf32, #tpu.memory_space<vmem>>, %arg11: memref<1x32xf32, #tpu.memory_space<vmem>>, %arg12: memref<1x32xf32, #tpu.memory_space<vmem>>, %arg13: memref<1x8x32xbf16, #tpu.memory_space<vmem>>) attributes {dimension_semantics = [#tpu.dimension_semantics<parallel>, #tpu.dimension_semantics<parallel>], iteration_bounds = array<i64: 2, 1>, scalar_prefetch = 0 : i64, scratch_operands = 0 : i64, tpu.core_type = #tpu.core_type<tc>, window_params = [{transform_indices = @transform_0, window_bounds = array<i64: 1, 8, 32>}, {transform_indices = @transform_1, window_bounds = array<i64: 1, 8, 32>}, {transform_indices = @transform_2, window_bounds = array<i64: 1, 1, 8>}, {pipeline_mode = #tpu.pipeline_mode<synchronous>, transform_indices = @transform_3, window_bounds = array<i64: 32, 32>}, {pipeline_mode = #tpu.pipeline_mode<synchronous>, transform_indices = @transform_4, window_bounds = array<i64: 1, 32>}, {pipeline_mode = #tpu.pipeline_mode<synchronous>, transform_indices = @transform_5, window_bounds = array<i64: 32, 64>}, {pipeline_mode = #tpu.pipeline_mode<synchronous>, transform_indices = @transform_6, window_bounds = array<i64: 1, 64>}, {pipeline_mode = #tpu.pipeline_mode<synchronous>, transform_indices = @transform_7, window_bounds = array<i64: 32, 32>}, {pipeline_mode = #tpu.pipeline_mode<synchronous>, transform_indices = @transform_8, window_bounds = array<i64: 1, 32>}, {pipeline_mode = #tpu.pipeline_mode<synchronous>, transform_indices = @transform_9, window_bounds = array<i64: 1, 32>}, {pipeline_mode = #tpu.pipeline_mode<synchronous>, transform_indices = @transform_10, window_bounds = array<i64: 1, 32>}, {transform_indices = @transform_11, window_bounds = array<i64: 1, 8, 32>}]} {
    %c0 = arith.constant 0 : index
    %c0_0 = arith.constant 0 : index
    %c0_1 = arith.constant 0 : index
    %0 = vector.load %arg2[%c0, %c0_0, %c0_1] : memref<1x8x32xf32, #tpu.memory_space<vmem>>, vector<1x8x32xf32>
    %1 = vector.shape_cast %0 : vector<1x8x32xf32> to vector<8x32xf32>
    %2 = arith.truncf %1 : vector<8x32xf32> to vector<8x32xbf16>
    %c0_2 = arith.constant 0 : index
    %c0_3 = arith.constant 0 : index
    %3 = vector.load %arg5[%c0_2, %c0_3] : memref<32x32xbf16, #tpu.memory_space<vmem>>, vector<32x32xbf16>
    %cst = arith.constant dense<0.000000e+00> : vector<8x32xf32>
    %4 = tpu.matmul %2, %3, %cst {dimension_numbers = #tpu.dot_dimension_numbers<[1], [0], [0], [1], [0, 0, 1, 1], [], []>} : vector<8x32xbf16>, vector<32x32xbf16>, vector<8x32xf32> -> vector<8x32xf32>
    %c0_4 = arith.constant 0 : index
    %c0_5 = arith.constant 0 : index
    %5 = vector.load %arg6[%c0_4, %c0_5] : memref<1x32xf32, #tpu.memory_space<vmem>>, vector<1x32xf32>
    %6 = vector.broadcast %5 : vector<1x32xf32> to vector<8x32xf32>
    %7 = arith.addf %4, %6 : vector<8x32xf32>
    %cst_6 = arith.constant 0.353553385 : f32
    %8 = vector.broadcast %cst_6 : f32 to vector<8x32xf32>
    %9 = arith.mulf %7, %8 : vector<8x32xf32>
    %c0_7 = arith.constant 0 : index
    %c0_8 = arith.constant 0 : index
    %c0_9 = arith.constant 0 : index
    %10 = vector.load %arg3[%c0_7, %c0_8, %c0_9] : memref<1x8x32xf32, #tpu.memory_space<vmem>>, vector<1x8x32xf32>
    %11 = vector.shape_cast %10 : vector<1x8x32xf32> to vector<8x32xf32>
    %12 = arith.truncf %11 : vector<8x32xf32> to vector<8x32xbf16>
    %c0_10 = arith.constant 0 : index
    %c0_11 = arith.constant 0 : index
    %13 = vector.load %arg7[%c0_10, %c0_11] : memref<32x64xbf16, #tpu.memory_space<vmem>>, vector<32x64xbf16>
    %cst_12 = arith.constant dense<0.000000e+00> : vector<8x64xf32>
    %14 = tpu.matmul %12, %13, %cst_12 {dimension_numbers = #tpu.dot_dimension_numbers<[1], [0], [0], [1], [0, 0, 1, 1], [], []>} : vector<8x32xbf16>, vector<32x64xbf16>, vector<8x64xf32> -> vector<8x64xf32>
    %c0_13 = arith.constant 0 : index
    %c0_14 = arith.constant 0 : index
    %15 = vector.load %arg8[%c0_13, %c0_14] : memref<1x64xf32, #tpu.memory_space<vmem>>, vector<1x64xf32>
    %16 = vector.broadcast %15 : vector<1x64xf32> to vector<8x64xf32>
    %17 = arith.addf %14, %16 : vector<8x64xf32>
    %18 = vector.extract_strided_slice %17 {offsets = [0, 0], sizes = [8, 32], strides = [1, 1]} : vector<8x64xf32> to vector<8x32xf32>
    %19 = vector.extract_strided_slice %17 {offsets = [0, 32], sizes = [8, 32], strides = [1, 1]} : vector<8x64xf32> to vector<8x32xf32>
    %c0_15 = arith.constant 0 : index
    %c0_16 = arith.constant 0 : index
    %c0_17 = arith.constant 0 : index
    %20 = vector.load %arg4[%c0_15, %c0_16, %c0_17] : memref<1x1x8xf32, #tpu.memory_space<vmem>>, vector<1x1x8xf32>
    %21 = vector.shape_cast %20 : vector<1x1x8xf32> to vector<1x8xf32>
    %22 = vector.shape_cast %21 : vector<1x8xf32> to vector<1x8xf32>
    %23 = vector.broadcast %22 : vector<1x8xf32> to vector<8x8xf32>
    %24 = vector.extract_strided_slice %9 {offsets = [0, 0], sizes = [8, 8], strides = [1, 1]} : vector<8x32xf32> to vector<8x8xf32>
    %25 = arith.truncf %24 : vector<8x8xf32> to vector<8x8xbf16>
    %26 = vector.extract_strided_slice %18 {offsets = [0, 0], sizes = [8, 8], strides = [1, 1]} : vector<8x32xf32> to vector<8x8xf32>
    %27 = arith.truncf %26 : vector<8x8xf32> to vector<8x8xbf16>
    %28 = vector.extract_strided_slice %19 {offsets = [0, 0], sizes = [8, 8], strides = [1, 1]} : vector<8x32xf32> to vector<8x8xf32>
    %29 = arith.truncf %28 : vector<8x8xf32> to vector<8x8xbf16>
    %cst_18 = arith.constant dense<0.000000e+00> : vector<8x8xf32>
    %30 = tpu.matmul %25, %27, %cst_18 {dimension_numbers = #tpu.dot_dimension_numbers<[1], [1], [0], [0], [0, 0, 1, 0], [], []>} : vector<8x8xbf16>, vector<8x8xbf16>, vector<8x8xf32> -> vector<8x8xf32>
    %31 = arith.addf %30, %23 : vector<8x8xf32>
    %cst_19 = arith.constant dense<0xFF800000> : vector<8xf32>
    %32 = vector.multi_reduction <maximumf>, %31, %cst_19 [1] : vector<8x8xf32> to vector<8xf32>
    %33 = vector.shape_cast %32 : vector<8xf32> to vector<8x1xf32>
    %34 = vector.broadcast %33 : vector<8x1xf32> to vector<8x8xf32>
    %35 = arith.subf %31, %34 : vector<8x8xf32>
    %36 = math.exp %35 : vector<8x8xf32>
    %cst_20 = arith.constant dense<0.000000e+00> : vector<8xf32>
    %37 = vector.multi_reduction <add>, %36, %cst_20 [1] : vector<8x8xf32> to vector<8xf32>
    %38 = vector.shape_cast %37 : vector<8xf32> to vector<8x1xf32>
    %39 = tpu.reciprocal %38 {approx = true} : vector<8x1xf32> -> vector<8x1xf32>
    %40 = vector.broadcast %39 : vector<8x1xf32> to vector<8x8xf32>
    %41 = arith.mulf %36, %40 : vector<8x8xf32>
    %42 = arith.truncf %41 : vector<8x8xf32> to vector<8x8xbf16>
    %cst_21 = arith.constant dense<0.000000e+00> : vector<8x8xf32>
    %43 = tpu.matmul %42, %29, %cst_21 {dimension_numbers = #tpu.dot_dimension_numbers<[1], [0], [0], [1], [0, 0, 1, 1], [], []>} : vector<8x8xbf16>, vector<8x8xbf16>, vector<8x8xf32> -> vector<8x8xf32>
    %44 = vector.extract_strided_slice %9 {offsets = [0, 8], sizes = [8, 8], strides = [1, 1]} : vector<8x32xf32> to vector<8x8xf32>
    %45 = arith.truncf %44 : vector<8x8xf32> to vector<8x8xbf16>
    %46 = vector.extract_strided_slice %18 {offsets = [0, 8], sizes = [8, 8], strides = [1, 1]} : vector<8x32xf32> to vector<8x8xf32>
    %47 = arith.truncf %46 : vector<8x8xf32> to vector<8x8xbf16>
    %48 = vector.extract_strided_slice %19 {offsets = [0, 8], sizes = [8, 8], strides = [1, 1]} : vector<8x32xf32> to vector<8x8xf32>
    %49 = arith.truncf %48 : vector<8x8xf32> to vector<8x8xbf16>
    %cst_22 = arith.constant dense<0.000000e+00> : vector<8x8xf32>
    %50 = tpu.matmul %45, %47, %cst_22 {dimension_numbers = #tpu.dot_dimension_numbers<[1], [1], [0], [0], [0, 0, 1, 0], [], []>} : vector<8x8xbf16>, vector<8x8xbf16>, vector<8x8xf32> -> vector<8x8xf32>
    %51 = arith.addf %50, %23 : vector<8x8xf32>
    %cst_23 = arith.constant dense<0xFF800000> : vector<8xf32>
    %52 = vector.multi_reduction <maximumf>, %51, %cst_23 [1] : vector<8x8xf32> to vector<8xf32>
    %53 = vector.shape_cast %52 : vector<8xf32> to vector<8x1xf32>
    %54 = vector.broadcast %53 : vector<8x1xf32> to vector<8x8xf32>
    %55 = arith.subf %51, %54 : vector<8x8xf32>
    %56 = math.exp %55 : vector<8x8xf32>
    %cst_24 = arith.constant dense<0.000000e+00> : vector<8xf32>
    %57 = vector.multi_reduction <add>, %56, %cst_24 [1] : vector<8x8xf32> to vector<8xf32>
    %58 = vector.shape_cast %57 : vector<8xf32> to vector<8x1xf32>
    %59 = tpu.reciprocal %58 {approx = true} : vector<8x1xf32> -> vector<8x1xf32>
    %60 = vector.broadcast %59 : vector<8x1xf32> to vector<8x8xf32>
    %61 = arith.mulf %56, %60 : vector<8x8xf32>
    %62 = arith.truncf %61 : vector<8x8xf32> to vector<8x8xbf16>
    %cst_25 = arith.constant dense<0.000000e+00> : vector<8x8xf32>
    %63 = tpu.matmul %62, %49, %cst_25 {dimension_numbers = #tpu.dot_dimension_numbers<[1], [0], [0], [1], [0, 0, 1, 1], [], []>} : vector<8x8xbf16>, vector<8x8xbf16>, vector<8x8xf32> -> vector<8x8xf32>
    %64 = vector.extract_strided_slice %9 {offsets = [0, 16], sizes = [8, 8], strides = [1, 1]} : vector<8x32xf32> to vector<8x8xf32>
    %65 = arith.truncf %64 : vector<8x8xf32> to vector<8x8xbf16>
    %66 = vector.extract_strided_slice %18 {offsets = [0, 16], sizes = [8, 8], strides = [1, 1]} : vector<8x32xf32> to vector<8x8xf32>
    %67 = arith.truncf %66 : vector<8x8xf32> to vector<8x8xbf16>
    %68 = vector.extract_strided_slice %19 {offsets = [0, 16], sizes = [8, 8], strides = [1, 1]} : vector<8x32xf32> to vector<8x8xf32>
    %69 = arith.truncf %68 : vector<8x8xf32> to vector<8x8xbf16>
    %cst_26 = arith.constant dense<0.000000e+00> : vector<8x8xf32>
    %70 = tpu.matmul %65, %67, %cst_26 {dimension_numbers = #tpu.dot_dimension_numbers<[1], [1], [0], [0], [0, 0, 1, 0], [], []>} : vector<8x8xbf16>, vector<8x8xbf16>, vector<8x8xf32> -> vector<8x8xf32>
    %71 = arith.addf %70, %23 : vector<8x8xf32>
    %cst_27 = arith.constant dense<0xFF800000> : vector<8xf32>
    %72 = vector.multi_reduction <maximumf>, %71, %cst_27 [1] : vector<8x8xf32> to vector<8xf32>
    %73 = vector.shape_cast %72 : vector<8xf32> to vector<8x1xf32>
    %74 = vector.broadcast %73 : vector<8x1xf32> to vector<8x8xf32>
    %75 = arith.subf %71, %74 : vector<8x8xf32>
    %76 = math.exp %75 : vector<8x8xf32>
    %cst_28 = arith.constant dense<0.000000e+00> : vector<8xf32>
    %77 = vector.multi_reduction <add>, %76, %cst_28 [1] : vector<8x8xf32> to vector<8xf32>
    %78 = vector.shape_cast %77 : vector<8xf32> to vector<8x1xf32>
    %79 = tpu.reciprocal %78 {approx = true} : vector<8x1xf32> -> vector<8x1xf32>
    %80 = vector.broadcast %79 : vector<8x1xf32> to vector<8x8xf32>
    %81 = arith.mulf %76, %80 : vector<8x8xf32>
    %82 = arith.truncf %81 : vector<8x8xf32> to vector<8x8xbf16>
    %cst_29 = arith.constant dense<0.000000e+00> : vector<8x8xf32>
    %83 = tpu.matmul %82, %69, %cst_29 {dimension_numbers = #tpu.dot_dimension_numbers<[1], [0], [0], [1], [0, 0, 1, 1], [], []>} : vector<8x8xbf16>, vector<8x8xbf16>, vector<8x8xf32> -> vector<8x8xf32>
    %84 = vector.extract_strided_slice %9 {offsets = [0, 24], sizes = [8, 8], strides = [1, 1]} : vector<8x32xf32> to vector<8x8xf32>
    %85 = arith.truncf %84 : vector<8x8xf32> to vector<8x8xbf16>
    %86 = vector.extract_strided_slice %18 {offsets = [0, 24], sizes = [8, 8], strides = [1, 1]} : vector<8x32xf32> to vector<8x8xf32>
    %87 = arith.truncf %86 : vector<8x8xf32> to vector<8x8xbf16>
    %88 = vector.extract_strided_slice %19 {offsets = [0, 24], sizes = [8, 8], strides = [1, 1]} : vector<8x32xf32> to vector<8x8xf32>
    %89 = arith.truncf %88 : vector<8x8xf32> to vector<8x8xbf16>
    %cst_30 = arith.constant dense<0.000000e+00> : vector<8x8xf32>
    %90 = tpu.matmul %85, %87, %cst_30 {dimension_numbers = #tpu.dot_dimension_numbers<[1], [1], [0], [0], [0, 0, 1, 0], [], []>} : vector<8x8xbf16>, vector<8x8xbf16>, vector<8x8xf32> -> vector<8x8xf32>
    %91 = arith.addf %90, %23 : vector<8x8xf32>
    %cst_31 = arith.constant dense<0xFF800000> : vector<8xf32>
    %92 = vector.multi_reduction <maximumf>, %91, %cst_31 [1] : vector<8x8xf32> to vector<8xf32>
    %93 = vector.shape_cast %92 : vector<8xf32> to vector<8x1xf32>
    %94 = vector.broadcast %93 : vector<8x1xf32> to vector<8x8xf32>
    %95 = arith.subf %91, %94 : vector<8x8xf32>
    %96 = math.exp %95 : vector<8x8xf32>
    %cst_32 = arith.constant dense<0.000000e+00> : vector<8xf32>
    %97 = vector.multi_reduction <add>, %96, %cst_32 [1] : vector<8x8xf32> to vector<8xf32>
    %98 = vector.shape_cast %97 : vector<8xf32> to vector<8x1xf32>
    %99 = tpu.reciprocal %98 {approx = true} : vector<8x1xf32> -> vector<8x1xf32>
    %100 = vector.broadcast %99 : vector<8x1xf32> to vector<8x8xf32>
    %101 = arith.mulf %96, %100 : vector<8x8xf32>
    %102 = arith.truncf %101 : vector<8x8xf32> to vector<8x8xbf16>
    %cst_33 = arith.constant dense<0.000000e+00> : vector<8x8xf32>
    %103 = tpu.matmul %102, %89, %cst_33 {dimension_numbers = #tpu.dot_dimension_numbers<[1], [0], [0], [1], [0, 0, 1, 1], [], []>} : vector<8x8xbf16>, vector<8x8xbf16>, vector<8x8xf32> -> vector<8x8xf32>
    %104 = tpu.concatenate %43, %63, %83, %103 in 1 : vector<8x8xf32>, vector<8x8xf32>, vector<8x8xf32>, vector<8x8xf32> -> vector<8x32xf32>
    %105 = arith.truncf %104 : vector<8x32xf32> to vector<8x32xbf16>
    %c0_34 = arith.constant 0 : index
    %c0_35 = arith.constant 0 : index
    %106 = vector.load %arg9[%c0_34, %c0_35] : memref<32x32xbf16, #tpu.memory_space<vmem>>, vector<32x32xbf16>
    %cst_36 = arith.constant dense<0.000000e+00> : vector<8x32xf32>
    %107 = tpu.matmul %105, %106, %cst_36 {dimension_numbers = #tpu.dot_dimension_numbers<[1], [0], [0], [1], [0, 0, 1, 1], [], []>} : vector<8x32xbf16>, vector<32x32xbf16>, vector<8x32xf32> -> vector<8x32xf32>
    %c0_37 = arith.constant 0 : index
    %c0_38 = arith.constant 0 : index
    %108 = vector.load %arg10[%c0_37, %c0_38] : memref<1x32xf32, #tpu.memory_space<vmem>>, vector<1x32xf32>
    %109 = vector.broadcast %108 : vector<1x32xf32> to vector<8x32xf32>
    %110 = arith.addf %107, %109 : vector<8x32xf32>
    %111 = arith.addf %1, %110 : vector<8x32xf32>
    %cst_39 = arith.constant dense<0.000000e+00> : vector<8xf32>
    %112 = vector.multi_reduction <add>, %111, %cst_39 [1] : vector<8x32xf32> to vector<8xf32>
    %113 = vector.shape_cast %112 : vector<8xf32> to vector<8x1xf32>
    %cst_40 = arith.constant 3.200000e+01 : f32
    %114 = vector.broadcast %cst_40 : f32 to vector<8x1xf32>
    %115 = arith.divf %113, %114 : vector<8x1xf32>
    %116 = vector.broadcast %115 : vector<8x1xf32> to vector<8x32xf32>
    %117 = arith.subf %111, %116 : vector<8x32xf32>
    %118 = arith.mulf %117, %117 : vector<8x32xf32>
    %cst_41 = arith.constant dense<0.000000e+00> : vector<8xf32>
    %119 = vector.multi_reduction <add>, %118, %cst_41 [1] : vector<8x32xf32> to vector<8xf32>
    %120 = vector.shape_cast %119 : vector<8xf32> to vector<8x1xf32>
    %cst_42 = arith.constant 3.200000e+01 : f32
    %121 = vector.broadcast %cst_42 : f32 to vector<8x1xf32>
    %122 = arith.divf %120, %121 : vector<8x1xf32>
    %123 = vector.broadcast %115 : vector<8x1xf32> to vector<8x32xf32>
    %124 = arith.subf %111, %123 : vector<8x32xf32>
    %cst_43 = arith.constant 9.99999974E-6 : f32
    %125 = vector.broadcast %cst_43 : f32 to vector<8x1xf32>
    %126 = arith.addf %122, %125 : vector<8x1xf32>
    %127 = math.rsqrt %126 : vector<8x1xf32>
    %128 = vector.broadcast %127 : vector<8x1xf32> to vector<8x32xf32>
    %129 = arith.mulf %124, %128 : vector<8x32xf32>
    %c0_44 = arith.constant 0 : index
    %c0_45 = arith.constant 0 : index
    %130 = vector.load %arg11[%c0_44, %c0_45] : memref<1x32xf32, #tpu.memory_space<vmem>>, vector<1x32xf32>
    %131 = vector.broadcast %130 : vector<1x32xf32> to vector<8x32xf32>
    %132 = arith.mulf %129, %131 : vector<8x32xf32>
    %c0_46 = arith.constant 0 : index
    %c0_47 = arith.constant 0 : index
    %133 = vector.load %arg12[%c0_46, %c0_47] : memref<1x32xf32, #tpu.memory_space<vmem>>, vector<1x32xf32>
    %134 = vector.broadcast %133 : vector<1x32xf32> to vector<8x32xf32>
    %135 = arith.addf %132, %134 : vector<8x32xf32>
    %136 = arith.truncf %135 : vector<8x32xf32> to vector<8x32xbf16>
    %c0_48 = arith.constant 0 : index
    %c0_49 = arith.constant 0 : index
    %c0_50 = arith.constant 0 : index
    %137 = vector.load %arg13[%c0_48, %c0_49, %c0_50] : memref<1x8x32xbf16, #tpu.memory_space<vmem>>, vector<1x8x32xbf16>
    %138 = vector.shape_cast %137 : vector<1x8x32xbf16> to vector<8x32xbf16>
    %139 = vector.shape_cast %136 : vector<8x32xbf16> to vector<1x8x32xbf16>
    tpu.vector_store %arg13[%c0_48, %c0_49, %c0_50], %139 {strides = array<i32>} : memref<1x8x32xbf16, #tpu.memory_space<vmem>>, vector<1x8x32xbf16>,
    return
  }
  func.func @transform_0(%arg0: i32, %arg1: i32) -> (i32, i32, i32) {
    %c0_i32 = arith.constant 0 : i32
    %c0_i32_0 = arith.constant 0 : i32
    return %arg0, %arg1, %c0_i32 : i32, i32, i32
  }
  func.func @transform_1(%arg0: i32, %arg1: i32) -> (i32, i32, i32) {
    %c0_i32 = arith.constant 0 : i32
    %c0_i32_0 = arith.constant 0 : i32
    %c0_i32_1 = arith.constant 0 : i32
    return %arg0, %c0_i32, %c0_i32_0 : i32, i32, i32
  }
  func.func @transform_2(%arg0: i32, %arg1: i32) -> (i32, i32, i32) {
    %c0_i32 = arith.constant 0 : i32
    %c0_i32_0 = arith.constant 0 : i32
    %c0_i32_1 = arith.constant 0 : i32
    return %arg0, %c0_i32, %c0_i32_0 : i32, i32, i32
  }
  func.func @transform_3(%arg0: i32, %arg1: i32) -> (i32, i32) {
    %c0_i32 = arith.constant 0 : i32
    %c0_i32_0 = arith.constant 0 : i32
    %c0_i32_1 = arith.constant 0 : i32
    return %c0_i32, %c0_i32_0 : i32, i32
  }
  func.func @transform_4(%arg0: i32, %arg1: i32) -> (i32, i32) {
    %c0_i32 = arith.constant 0 : i32
    %c0_i32_0 = arith.constant 0 : i32
    %c0_i32_1 = arith.constant 0 : i32
    return %c0_i32, %c0_i32_0 : i32, i32
  }
  func.func @transform_5(%arg0: i32, %arg1: i32) -> (i32, i32) {
    %c0_i32 = arith.constant 0 : i32
    %c0_i32_0 = arith.constant 0 : i32
    %c0_i32_1 = arith.constant 0 : i32
    return %c0_i32, %c0_i32_0 : i32, i32
  }
  func.func @transform_6(%arg0: i32, %arg1: i32) -> (i32, i32) {
    %c0_i32 = arith.constant 0 : i32
    %c0_i32_0 = arith.constant 0 : i32
    %c0_i32_1 = arith.constant 0 : i32
    return %c0_i32, %c0_i32_0 : i32, i32
  }
  func.func @transform_7(%arg0: i32, %arg1: i32) -> (i32, i32) {
    %c0_i32 = arith.constant 0 : i32
    %c0_i32_0 = arith.constant 0 : i32
    %c0_i32_1 = arith.constant 0 : i32
    return %c0_i32, %c0_i32_0 : i32, i32
  }
  func.func @transform_8(%arg0: i32, %arg1: i32) -> (i32, i32) {
    %c0_i32 = arith.constant 0 : i32
    %c0_i32_0 = arith.constant 0 : i32
    %c0_i32_1 = arith.constant 0 : i32
    return %c0_i32, %c0_i32_0 : i32, i32
  }
  func.func @transform_9(%arg0: i32, %arg1: i32) -> (i32, i32) {
    %c0_i32 = arith.constant 0 : i32
    %c0_i32_0 = arith.constant 0 : i32
    %c0_i32_1 = arith.constant 0 : i32
    return %c0_i32, %c0_i32_0 : i32, i32
  }
  func.func @transform_10(%arg0: i32, %arg1: i32) -> (i32, i32) {
    %c0_i32 = arith.constant 0 : i32
    %c0_i32_0 = arith.constant 0 : i32
    %c0_i32_1 = arith.constant 0 : i32
    return %c0_i32, %c0_i32_0 : i32, i32
  }
  func.func @transform_11(%arg0: i32, %arg1: i32) -> (i32, i32, i32) {
    %c0_i32 = arith.constant 0 : i32
    %c0_i32_0 = arith.constant 0 : i32
    return %arg0, %arg1, %c0_i32 : i32, i32, i32
  }
}

module attributes {stable_mosaic.version = 11 : i64} {
  func.func @_ffn_kernel(%arg0: i32, %arg1: memref<16x32xbf16, #tpu.memory_space<vmem>>, %arg2: memref<32x128xbf16, #tpu.memory_space<vmem>>, %arg3: memref<1x128xf32, #tpu.memory_space<vmem>>, %arg4: memref<128x32xbf16, #tpu.memory_space<vmem>>, %arg5: memref<1x32xf32, #tpu.memory_space<vmem>>, %arg6: memref<1x32xf32, #tpu.memory_space<vmem>>, %arg7: memref<1x32xf32, #tpu.memory_space<vmem>>, %arg8: memref<16x32xbf16, #tpu.memory_space<vmem>>) attributes {dimension_semantics = [#tpu.dimension_semantics<parallel>], iteration_bounds = array<i64: 1>, scalar_prefetch = 0 : i64, scratch_operands = 0 : i64, tpu.core_type = #tpu.core_type<tc>, window_params = [{transform_indices = @transform_0, window_bounds = array<i64: 16, 32>}, {pipeline_mode = #tpu.pipeline_mode<synchronous>, transform_indices = @transform_1, window_bounds = array<i64: 32, 128>}, {pipeline_mode = #tpu.pipeline_mode<synchronous>, transform_indices = @transform_2, window_bounds = array<i64: 1, 128>}, {pipeline_mode = #tpu.pipeline_mode<synchronous>, transform_indices = @transform_3, window_bounds = array<i64: 128, 32>}, {pipeline_mode = #tpu.pipeline_mode<synchronous>, transform_indices = @transform_4, window_bounds = array<i64: 1, 32>}, {pipeline_mode = #tpu.pipeline_mode<synchronous>, transform_indices = @transform_5, window_bounds = array<i64: 1, 32>}, {pipeline_mode = #tpu.pipeline_mode<synchronous>, transform_indices = @transform_6, window_bounds = array<i64: 1, 32>}, {transform_indices = @transform_7, window_bounds = array<i64: 16, 32>}]} {
    %c0 = arith.constant 0 : index
    %c0_0 = arith.constant 0 : index
    %0 = vector.load %arg1[%c0, %c0_0] : memref<16x32xbf16, #tpu.memory_space<vmem>>, vector<16x32xbf16>
    %1 = arith.extf %0 : vector<16x32xbf16> to vector<16x32xf32>
    %c0_1 = arith.constant 0 : index
    %c0_2 = arith.constant 0 : index
    %2 = vector.load %arg1[%c0_1, %c0_2] : memref<16x32xbf16, #tpu.memory_space<vmem>>, vector<16x32xbf16>
    %c0_3 = arith.constant 0 : index
    %c0_4 = arith.constant 0 : index
    %3 = vector.load %arg2[%c0_3, %c0_4] : memref<32x128xbf16, #tpu.memory_space<vmem>>, vector<32x128xbf16>
    %cst = arith.constant dense<0.000000e+00> : vector<16x128xf32>
    %4 = tpu.matmul %2, %3, %cst {dimension_numbers = #tpu.dot_dimension_numbers<[1], [0], [0], [1], [0, 0, 1, 1], [], []>} : vector<16x32xbf16>, vector<32x128xbf16>, vector<16x128xf32> -> vector<16x128xf32>
    %c0_5 = arith.constant 0 : index
    %c0_6 = arith.constant 0 : index
    %5 = vector.load %arg3[%c0_5, %c0_6] : memref<1x128xf32, #tpu.memory_space<vmem>>, vector<1x128xf32>
    %6 = vector.broadcast %5 : vector<1x128xf32> to vector<16x128xf32>
    %7 = arith.addf %4, %6 : vector<16x128xf32>
    %cst_7 = arith.constant 0.000000e+00 : f32
    %8 = vector.broadcast %cst_7 : f32 to vector<16x128xf32>
    %9 = arith.maximumf %7, %8 : vector<16x128xf32>
    %10 = arith.truncf %9 : vector<16x128xf32> to vector<16x128xbf16>
    %c0_8 = arith.constant 0 : index
    %c0_9 = arith.constant 0 : index
    %11 = vector.load %arg4[%c0_8, %c0_9] : memref<128x32xbf16, #tpu.memory_space<vmem>>, vector<128x32xbf16>
    %cst_10 = arith.constant dense<0.000000e+00> : vector<16x32xf32>
    %12 = tpu.matmul %10, %11, %cst_10 {dimension_numbers = #tpu.dot_dimension_numbers<[1], [0], [0], [1], [0, 0, 1, 1], [], []>} : vector<16x128xbf16>, vector<128x32xbf16>, vector<16x32xf32> -> vector<16x32xf32>
    %c0_11 = arith.constant 0 : index
    %c0_12 = arith.constant 0 : index
    %13 = vector.load %arg5[%c0_11, %c0_12] : memref<1x32xf32, #tpu.memory_space<vmem>>, vector<1x32xf32>
    %14 = vector.broadcast %13 : vector<1x32xf32> to vector<16x32xf32>
    %15 = arith.addf %12, %14 : vector<16x32xf32>
    %16 = arith.addf %1, %15 : vector<16x32xf32>
    %cst_13 = arith.constant dense<0.000000e+00> : vector<16xf32>
    %17 = vector.multi_reduction <add>, %16, %cst_13 [1] : vector<16x32xf32> to vector<16xf32>
    %18 = vector.shape_cast %17 : vector<16xf32> to vector<16x1xf32>
    %cst_14 = arith.constant 3.200000e+01 : f32
    %19 = vector.broadcast %cst_14 : f32 to vector<16x1xf32>
    %20 = arith.divf %18, %19 : vector<16x1xf32>
    %21 = vector.broadcast %20 : vector<16x1xf32> to vector<16x32xf32>
    %22 = arith.subf %16, %21 : vector<16x32xf32>
    %23 = arith.mulf %22, %22 : vector<16x32xf32>
    %cst_15 = arith.constant dense<0.000000e+00> : vector<16xf32>
    %24 = vector.multi_reduction <add>, %23, %cst_15 [1] : vector<16x32xf32> to vector<16xf32>
    %25 = vector.shape_cast %24 : vector<16xf32> to vector<16x1xf32>
    %cst_16 = arith.constant 3.200000e+01 : f32
    %26 = vector.broadcast %cst_16 : f32 to vector<16x1xf32>
    %27 = arith.divf %25, %26 : vector<16x1xf32>
    %28 = vector.broadcast %20 : vector<16x1xf32> to vector<16x32xf32>
    %29 = arith.subf %16, %28 : vector<16x32xf32>
    %cst_17 = arith.constant 9.99999974E-6 : f32
    %30 = vector.broadcast %cst_17 : f32 to vector<16x1xf32>
    %31 = arith.addf %27, %30 : vector<16x1xf32>
    %32 = math.rsqrt %31 : vector<16x1xf32>
    %33 = vector.broadcast %32 : vector<16x1xf32> to vector<16x32xf32>
    %34 = arith.mulf %29, %33 : vector<16x32xf32>
    %c0_18 = arith.constant 0 : index
    %c0_19 = arith.constant 0 : index
    %35 = vector.load %arg6[%c0_18, %c0_19] : memref<1x32xf32, #tpu.memory_space<vmem>>, vector<1x32xf32>
    %36 = vector.broadcast %35 : vector<1x32xf32> to vector<16x32xf32>
    %37 = arith.mulf %34, %36 : vector<16x32xf32>
    %c0_20 = arith.constant 0 : index
    %c0_21 = arith.constant 0 : index
    %38 = vector.load %arg7[%c0_20, %c0_21] : memref<1x32xf32, #tpu.memory_space<vmem>>, vector<1x32xf32>
    %39 = vector.broadcast %38 : vector<1x32xf32> to vector<16x32xf32>
    %40 = arith.addf %37, %39 : vector<16x32xf32>
    %41 = arith.truncf %40 : vector<16x32xf32> to vector<16x32xbf16>
    %c0_22 = arith.constant 0 : index
    %c0_23 = arith.constant 0 : index
    %42 = vector.load %arg8[%c0_22, %c0_23] : memref<16x32xbf16, #tpu.memory_space<vmem>>, vector<16x32xbf16>
    tpu.vector_store %arg8[%c0_22, %c0_23], %41 {strides = array<i32>} : memref<16x32xbf16, #tpu.memory_space<vmem>>, vector<16x32xbf16>,
    return
  }
  func.func @transform_0(%arg0: i32) -> (i32, i32) {
    %c0_i32 = arith.constant 0 : i32
    %c0_i32_0 = arith.constant 0 : i32
    return %arg0, %c0_i32 : i32, i32
  }
  func.func @transform_1(%arg0: i32) -> (i32, i32) {
    %c0_i32 = arith.constant 0 : i32
    %c0_i32_0 = arith.constant 0 : i32
    %c0_i32_1 = arith.constant 0 : i32
    return %c0_i32, %c0_i32_0 : i32, i32
  }
  func.func @transform_2(%arg0: i32) -> (i32, i32) {
    %c0_i32 = arith.constant 0 : i32
    %c0_i32_0 = arith.constant 0 : i32
    %c0_i32_1 = arith.constant 0 : i32
    return %c0_i32, %c0_i32_0 : i32, i32
  }
  func.func @transform_3(%arg0: i32) -> (i32, i32) {
    %c0_i32 = arith.constant 0 : i32
    %c0_i32_0 = arith.constant 0 : i32
    %c0_i32_1 = arith.constant 0 : i32
    return %c0_i32, %c0_i32_0 : i32, i32
  }
  func.func @transform_4(%arg0: i32) -> (i32, i32) {
    %c0_i32 = arith.constant 0 : i32
    %c0_i32_0 = arith.constant 0 : i32
    %c0_i32_1 = arith.constant 0 : i32
    return %c0_i32, %c0_i32_0 : i32, i32
  }
  func.func @transform_5(%arg0: i32) -> (i32, i32) {
    %c0_i32 = arith.constant 0 : i32
    %c0_i32_0 = arith.constant 0 : i32
    %c0_i32_1 = arith.constant 0 : i32
    return %c0_i32, %c0_i32_0 : i32, i32
  }
  func.func @transform_6(%arg0: i32) -> (i32, i32) {
    %c0_i32 = arith.constant 0 : i32
    %c0_i32_0 = arith.constant 0 : i32
    %c0_i32_1 = arith.constant 0 : i32
    return %c0_i32, %c0_i32_0 : i32, i32
  }
  func.func @transform_7(%arg0: i32) -> (i32, i32) {
    %c0_i32 = arith.constant 0 : i32
    %c0_i32_0 = arith.constant 0 : i32
    return %arg0, %c0_i32 : i32, i32
  }
}

module attributes {stable_mosaic.version = 11 : i64} {
  func.func @kernel(%arg0: i32, %arg1: i32, %arg2: memref<1x8x32xbf16, #tpu.memory_space<vmem>>, %arg3: memref<1x8x32xbf16, #tpu.memory_space<vmem>>, %arg4: memref<1x1x8xf32, #tpu.memory_space<vmem>>, %arg5: memref<32x32xbf16, #tpu.memory_space<vmem>>, %arg6: memref<1x32xf32, #tpu.memory_space<vmem>>, %arg7: memref<32x64xbf16, #tpu.memory_space<vmem>>, %arg8: memref<1x64xf32, #tpu.memory_space<vmem>>, %arg9: memref<32x32xbf16, #tpu.memory_space<vmem>>, %arg10: memref<1x32xf32, #tpu.memory_space<vmem>>, %arg11: memref<1x32xf32, #tpu.memory_space<vmem>>, %arg12: memref<1x32xf32, #tpu.memory_space<vmem>>, %arg13: memref<1x8x32xbf16, #tpu.memory_space<vmem>>) attributes {dimension_semantics = [#tpu.dimension_semantics<parallel>, #tpu.dimension_semantics<parallel>], iteration_bounds = array<i64: 2, 1>, scalar_prefetch = 0 : i64, scratch_operands = 0 : i64, tpu.core_type = #tpu.core_type<tc>, window_params = [{transform_indices = @transform_0, window_bounds = array<i64: 1, 8, 32>}, {transform_indices = @transform_1, window_bounds = array<i64: 1, 8, 32>}, {transform_indices = @transform_2, window_bounds = array<i64: 1, 1, 8>}, {pipeline_mode = #tpu.pipeline_mode<synchronous>, transform_indices = @transform_3, window_bounds = array<i64: 32, 32>}, {pipeline_mode = #tpu.pipeline_mode<synchronous>, transform_indices = @transform_4, window_bounds = array<i64: 1, 32>}, {pipeline_mode = #tpu.pipeline_mode<synchronous>, transform_indices = @transform_5, window_bounds = array<i64: 32, 64>}, {pipeline_mode = #tpu.pipeline_mode<synchronous>, transform_indices = @transform_6, window_bounds = array<i64: 1, 64>}, {pipeline_mode = #tpu.pipeline_mode<synchronous>, transform_indices = @transform_7, window_bounds = array<i64: 32, 32>}, {pipeline_mode = #tpu.pipeline_mode<synchronous>, transform_indices = @transform_8, window_bounds = array<i64: 1, 32>}, {pipeline_mode = #tpu.pipeline_mode<synchronous>, transform_indices = @transform_9, window_bounds = array<i64: 1, 32>}, {pipeline_mode = #tpu.pipeline_mode<synchronous>, transform_indices = @transform_10, window_bounds = array<i64: 1, 32>}, {transform_indices = @transform_11, window_bounds = array<i64: 1, 8, 32>}]} {
    %c0 = arith.constant 0 : index
    %c0_0 = arith.constant 0 : index
    %c0_1 = arith.constant 0 : index
    %0 = vector.load %arg2[%c0, %c0_0, %c0_1] : memref<1x8x32xbf16, #tpu.memory_space<vmem>>, vector<1x8x32xbf16>
    %1 = vector.shape_cast %0 : vector<1x8x32xbf16> to vector<8x32xbf16>
    %2 = arith.extf %1 : vector<8x32xbf16> to vector<8x32xf32>
    %c0_2 = arith.constant 0 : index
    %c0_3 = arith.constant 0 : index
    %3 = vector.load %arg5[%c0_2, %c0_3] : memref<32x32xbf16, #tpu.memory_space<vmem>>, vector<32x32xbf16>
    %cst = arith.constant dense<0.000000e+00> : vector<8x32xf32>
    %4 = tpu.matmul %1, %3, %cst {dimension_numbers = #tpu.dot_dimension_numbers<[1], [0], [0], [1], [0, 0, 1, 1], [], []>} : vector<8x32xbf16>, vector<32x32xbf16>, vector<8x32xf32> -> vector<8x32xf32>
    %c0_4 = arith.constant 0 : index
    %c0_5 = arith.constant 0 : index
    %5 = vector.load %arg6[%c0_4, %c0_5] : memref<1x32xf32, #tpu.memory_space<vmem>>, vector<1x32xf32>
    %6 = vector.broadcast %5 : vector<1x32xf32> to vector<8x32xf32>
    %7 = arith.addf %4, %6 : vector<8x32xf32>
    %cst_6 = arith.constant 0.353553385 : f32
    %8 = vector.broadcast %cst_6 : f32 to vector<8x32xf32>
    %9 = arith.mulf %7, %8 : vector<8x32xf32>
    %c0_7 = arith.constant 0 : index
    %c0_8 = arith.constant 0 : index
    %c0_9 = arith.constant 0 : index
    %10 = vector.load %arg3[%c0_7, %c0_8, %c0_9] : memref<1x8x32xbf16, #tpu.memory_space<vmem>>, vector<1x8x32xbf16>
    %11 = vector.shape_cast %10 : vector<1x8x32xbf16> to vector<8x32xbf16>
    %c0_10 = arith.constant 0 : index
    %c0_11 = arith.constant 0 : index
    %12 = vector.load %arg7[%c0_10, %c0_11] : memref<32x64xbf16, #tpu.memory_space<vmem>>, vector<32x64xbf16>
    %cst_12 = arith.constant dense<0.000000e+00> : vector<8x64xf32>
    %13 = tpu.matmul %11, %12, %cst_12 {dimension_numbers = #tpu.dot_dimension_numbers<[1], [0], [0], [1], [0, 0, 1, 1], [], []>} : vector<8x32xbf16>, vector<32x64xbf16>, vector<8x64xf32> -> vector<8x64xf32>
    %c0_13 = arith.constant 0 : index
    %c0_14 = arith.constant 0 : index
    %14 = vector.load %arg8[%c0_13, %c0_14] : memref<1x64xf32, #tpu.memory_space<vmem>>, vector<1x64xf32>
    %15 = vector.broadcast %14 : vector<1x64xf32> to vector<8x64xf32>
    %16 = arith.addf %13, %15 : vector<8x64xf32>
    %17 = vector.extract_strided_slice %16 {offsets = [0, 0], sizes = [8, 32], strides = [1, 1]} : vector<8x64xf32> to vector<8x32xf32>
    %18 = vector.extract_strided_slice %16 {offsets = [0, 32], sizes = [8, 32], strides = [1, 1]} : vector<8x64xf32> to vector<8x32xf32>
    %c0_15 = arith.constant 0 : index
    %c0_16 = arith.constant 0 : index
    %c0_17 = arith.constant 0 : index
    %19 = vector.load %arg4[%c0_15, %c0_16, %c0_17] : memref<1x1x8xf32, #tpu.memory_space<vmem>>, vector<1x1x8xf32>
    %20 = vector.shape_cast %19 : vector<1x1x8xf32> to vector<1x8xf32>
    %21 = vector.shape_cast %20 : vector<1x8xf32> to vector<1x8xf32>
    %22 = vector.broadcast %21 : vector<1x8xf32> to vector<8x8xf32>
    %23 = vector.extract_strided_slice %9 {offsets = [0, 0], sizes = [8, 8], strides = [1, 1]} : vector<8x32xf32> to vector<8x8xf32>
    %24 = arith.truncf %23 : vector<8x8xf32> to vector<8x8xbf16>
    %25 = vector.extract_strided_slice %17 {offsets = [0, 0], sizes = [8, 8], strides = [1, 1]} : vector<8x32xf32> to vector<8x8xf32>
    %26 = arith.truncf %25 : vector<8x8xf32> to vector<8x8xbf16>
    %27 = vector.extract_strided_slice %18 {offsets = [0, 0], sizes = [8, 8], strides = [1, 1]} : vector<8x32xf32> to vector<8x8xf32>
    %28 = arith.truncf %27 : vector<8x8xf32> to vector<8x8xbf16>
    %cst_18 = arith.constant dense<0.000000e+00> : vector<8x8xf32>
    %29 = tpu.matmul %24, %26, %cst_18 {dimension_numbers = #tpu.dot_dimension_numbers<[1], [1], [0], [0], [0, 0, 1, 0], [], []>} : vector<8x8xbf16>, vector<8x8xbf16>, vector<8x8xf32> -> vector<8x8xf32>
    %30 = arith.addf %29, %22 : vector<8x8xf32>
    %cst_19 = arith.constant dense<0xFF800000> : vector<8xf32>
    %31 = vector.multi_reduction <maximumf>, %30, %cst_19 [1] : vector<8x8xf32> to vector<8xf32>
    %32 = vector.shape_cast %31 : vector<8xf32> to vector<8x1xf32>
    %33 = vector.broadcast %32 : vector<8x1xf32> to vector<8x8xf32>
    %34 = arith.subf %30, %33 : vector<8x8xf32>
    %35 = math.exp %34 : vector<8x8xf32>
    %cst_20 = arith.constant dense<0.000000e+00> : vector<8xf32>
    %36 = vector.multi_reduction <add>, %35, %cst_20 [1] : vector<8x8xf32> to vector<8xf32>
    %37 = vector.shape_cast %36 : vector<8xf32> to vector<8x1xf32>
    %38 = tpu.reciprocal %37 {approx = true} : vector<8x1xf32> -> vector<8x1xf32>
    %39 = vector.broadcast %38 : vector<8x1xf32> to vector<8x8xf32>
    %40 = arith.mulf %35, %39 : vector<8x8xf32>
    %41 = arith.truncf %40 : vector<8x8xf32> to vector<8x8xbf16>
    %cst_21 = arith.constant dense<0.000000e+00> : vector<8x8xf32>
    %42 = tpu.matmul %41, %28, %cst_21 {dimension_numbers = #tpu.dot_dimension_numbers<[1], [0], [0], [1], [0, 0, 1, 1], [], []>} : vector<8x8xbf16>, vector<8x8xbf16>, vector<8x8xf32> -> vector<8x8xf32>
    %43 = vector.extract_strided_slice %9 {offsets = [0, 8], sizes = [8, 8], strides = [1, 1]} : vector<8x32xf32> to vector<8x8xf32>
    %44 = arith.truncf %43 : vector<8x8xf32> to vector<8x8xbf16>
    %45 = vector.extract_strided_slice %17 {offsets = [0, 8], sizes = [8, 8], strides = [1, 1]} : vector<8x32xf32> to vector<8x8xf32>
    %46 = arith.truncf %45 : vector<8x8xf32> to vector<8x8xbf16>
    %47 = vector.extract_strided_slice %18 {offsets = [0, 8], sizes = [8, 8], strides = [1, 1]} : vector<8x32xf32> to vector<8x8xf32>
    %48 = arith.truncf %47 : vector<8x8xf32> to vector<8x8xbf16>
    %cst_22 = arith.constant dense<0.000000e+00> : vector<8x8xf32>
    %49 = tpu.matmul %44, %46, %cst_22 {dimension_numbers = #tpu.dot_dimension_numbers<[1], [1], [0], [0], [0, 0, 1, 0], [], []>} : vector<8x8xbf16>, vector<8x8xbf16>, vector<8x8xf32> -> vector<8x8xf32>
    %50 = arith.addf %49, %22 : vector<8x8xf32>
    %cst_23 = arith.constant dense<0xFF800000> : vector<8xf32>
    %51 = vector.multi_reduction <maximumf>, %50, %cst_23 [1] : vector<8x8xf32> to vector<8xf32>
    %52 = vector.shape_cast %51 : vector<8xf32> to vector<8x1xf32>
    %53 = vector.broadcast %52 : vector<8x1xf32> to vector<8x8xf32>
    %54 = arith.subf %50, %53 : vector<8x8xf32>
    %55 = math.exp %54 : vector<8x8xf32>
    %cst_24 = arith.constant dense<0.000000e+00> : vector<8xf32>
    %56 = vector.multi_reduction <add>, %55, %cst_24 [1] : vector<8x8xf32> to vector<8xf32>
    %57 = vector.shape_cast %56 : vector<8xf32> to vector<8x1xf32>
    %58 = tpu.reciprocal %57 {approx = true} : vector<8x1xf32> -> vector<8x1xf32>
    %59 = vector.broadcast %58 : vector<8x1xf32> to vector<8x8xf32>
    %60 = arith.mulf %55, %59 : vector<8x8xf32>
    %61 = arith.truncf %60 : vector<8x8xf32> to vector<8x8xbf16>
    %cst_25 = arith.constant dense<0.000000e+00> : vector<8x8xf32>
    %62 = tpu.matmul %61, %48, %cst_25 {dimension_numbers = #tpu.dot_dimension_numbers<[1], [0], [0], [1], [0, 0, 1, 1], [], []>} : vector<8x8xbf16>, vector<8x8xbf16>, vector<8x8xf32> -> vector<8x8xf32>
    %63 = vector.extract_strided_slice %9 {offsets = [0, 16], sizes = [8, 8], strides = [1, 1]} : vector<8x32xf32> to vector<8x8xf32>
    %64 = arith.truncf %63 : vector<8x8xf32> to vector<8x8xbf16>
    %65 = vector.extract_strided_slice %17 {offsets = [0, 16], sizes = [8, 8], strides = [1, 1]} : vector<8x32xf32> to vector<8x8xf32>
    %66 = arith.truncf %65 : vector<8x8xf32> to vector<8x8xbf16>
    %67 = vector.extract_strided_slice %18 {offsets = [0, 16], sizes = [8, 8], strides = [1, 1]} : vector<8x32xf32> to vector<8x8xf32>
    %68 = arith.truncf %67 : vector<8x8xf32> to vector<8x8xbf16>
    %cst_26 = arith.constant dense<0.000000e+00> : vector<8x8xf32>
    %69 = tpu.matmul %64, %66, %cst_26 {dimension_numbers = #tpu.dot_dimension_numbers<[1], [1], [0], [0], [0, 0, 1, 0], [], []>} : vector<8x8xbf16>, vector<8x8xbf16>, vector<8x8xf32> -> vector<8x8xf32>
    %70 = arith.addf %69, %22 : vector<8x8xf32>
    %cst_27 = arith.constant dense<0xFF800000> : vector<8xf32>
    %71 = vector.multi_reduction <maximumf>, %70, %cst_27 [1] : vector<8x8xf32> to vector<8xf32>
    %72 = vector.shape_cast %71 : vector<8xf32> to vector<8x1xf32>
    %73 = vector.broadcast %72 : vector<8x1xf32> to vector<8x8xf32>
    %74 = arith.subf %70, %73 : vector<8x8xf32>
    %75 = math.exp %74 : vector<8x8xf32>
    %cst_28 = arith.constant dense<0.000000e+00> : vector<8xf32>
    %76 = vector.multi_reduction <add>, %75, %cst_28 [1] : vector<8x8xf32> to vector<8xf32>
    %77 = vector.shape_cast %76 : vector<8xf32> to vector<8x1xf32>
    %78 = tpu.reciprocal %77 {approx = true} : vector<8x1xf32> -> vector<8x1xf32>
    %79 = vector.broadcast %78 : vector<8x1xf32> to vector<8x8xf32>
    %80 = arith.mulf %75, %79 : vector<8x8xf32>
    %81 = arith.truncf %80 : vector<8x8xf32> to vector<8x8xbf16>
    %cst_29 = arith.constant dense<0.000000e+00> : vector<8x8xf32>
    %82 = tpu.matmul %81, %68, %cst_29 {dimension_numbers = #tpu.dot_dimension_numbers<[1], [0], [0], [1], [0, 0, 1, 1], [], []>} : vector<8x8xbf16>, vector<8x8xbf16>, vector<8x8xf32> -> vector<8x8xf32>
    %83 = vector.extract_strided_slice %9 {offsets = [0, 24], sizes = [8, 8], strides = [1, 1]} : vector<8x32xf32> to vector<8x8xf32>
    %84 = arith.truncf %83 : vector<8x8xf32> to vector<8x8xbf16>
    %85 = vector.extract_strided_slice %17 {offsets = [0, 24], sizes = [8, 8], strides = [1, 1]} : vector<8x32xf32> to vector<8x8xf32>
    %86 = arith.truncf %85 : vector<8x8xf32> to vector<8x8xbf16>
    %87 = vector.extract_strided_slice %18 {offsets = [0, 24], sizes = [8, 8], strides = [1, 1]} : vector<8x32xf32> to vector<8x8xf32>
    %88 = arith.truncf %87 : vector<8x8xf32> to vector<8x8xbf16>
    %cst_30 = arith.constant dense<0.000000e+00> : vector<8x8xf32>
    %89 = tpu.matmul %84, %86, %cst_30 {dimension_numbers = #tpu.dot_dimension_numbers<[1], [1], [0], [0], [0, 0, 1, 0], [], []>} : vector<8x8xbf16>, vector<8x8xbf16>, vector<8x8xf32> -> vector<8x8xf32>
    %90 = arith.addf %89, %22 : vector<8x8xf32>
    %cst_31 = arith.constant dense<0xFF800000> : vector<8xf32>
    %91 = vector.multi_reduction <maximumf>, %90, %cst_31 [1] : vector<8x8xf32> to vector<8xf32>
    %92 = vector.shape_cast %91 : vector<8xf32> to vector<8x1xf32>
    %93 = vector.broadcast %92 : vector<8x1xf32> to vector<8x8xf32>
    %94 = arith.subf %90, %93 : vector<8x8xf32>
    %95 = math.exp %94 : vector<8x8xf32>
    %cst_32 = arith.constant dense<0.000000e+00> : vector<8xf32>
    %96 = vector.multi_reduction <add>, %95, %cst_32 [1] : vector<8x8xf32> to vector<8xf32>
    %97 = vector.shape_cast %96 : vector<8xf32> to vector<8x1xf32>
    %98 = tpu.reciprocal %97 {approx = true} : vector<8x1xf32> -> vector<8x1xf32>
    %99 = vector.broadcast %98 : vector<8x1xf32> to vector<8x8xf32>
    %100 = arith.mulf %95, %99 : vector<8x8xf32>
    %101 = arith.truncf %100 : vector<8x8xf32> to vector<8x8xbf16>
    %cst_33 = arith.constant dense<0.000000e+00> : vector<8x8xf32>
    %102 = tpu.matmul %101, %88, %cst_33 {dimension_numbers = #tpu.dot_dimension_numbers<[1], [0], [0], [1], [0, 0, 1, 1], [], []>} : vector<8x8xbf16>, vector<8x8xbf16>, vector<8x8xf32> -> vector<8x8xf32>
    %103 = tpu.concatenate %42, %62, %82, %102 in 1 : vector<8x8xf32>, vector<8x8xf32>, vector<8x8xf32>, vector<8x8xf32> -> vector<8x32xf32>
    %104 = arith.truncf %103 : vector<8x32xf32> to vector<8x32xbf16>
    %c0_34 = arith.constant 0 : index
    %c0_35 = arith.constant 0 : index
    %105 = vector.load %arg9[%c0_34, %c0_35] : memref<32x32xbf16, #tpu.memory_space<vmem>>, vector<32x32xbf16>
    %cst_36 = arith.constant dense<0.000000e+00> : vector<8x32xf32>
    %106 = tpu.matmul %104, %105, %cst_36 {dimension_numbers = #tpu.dot_dimension_numbers<[1], [0], [0], [1], [0, 0, 1, 1], [], []>} : vector<8x32xbf16>, vector<32x32xbf16>, vector<8x32xf32> -> vector<8x32xf32>
    %c0_37 = arith.constant 0 : index
    %c0_38 = arith.constant 0 : index
    %107 = vector.load %arg10[%c0_37, %c0_38] : memref<1x32xf32, #tpu.memory_space<vmem>>, vector<1x32xf32>
    %108 = vector.broadcast %107 : vector<1x32xf32> to vector<8x32xf32>
    %109 = arith.addf %106, %108 : vector<8x32xf32>
    %110 = arith.addf %2, %109 : vector<8x32xf32>
    %cst_39 = arith.constant dense<0.000000e+00> : vector<8xf32>
    %111 = vector.multi_reduction <add>, %110, %cst_39 [1] : vector<8x32xf32> to vector<8xf32>
    %112 = vector.shape_cast %111 : vector<8xf32> to vector<8x1xf32>
    %cst_40 = arith.constant 3.200000e+01 : f32
    %113 = vector.broadcast %cst_40 : f32 to vector<8x1xf32>
    %114 = arith.divf %112, %113 : vector<8x1xf32>
    %115 = vector.broadcast %114 : vector<8x1xf32> to vector<8x32xf32>
    %116 = arith.subf %110, %115 : vector<8x32xf32>
    %117 = arith.mulf %116, %116 : vector<8x32xf32>
    %cst_41 = arith.constant dense<0.000000e+00> : vector<8xf32>
    %118 = vector.multi_reduction <add>, %117, %cst_41 [1] : vector<8x32xf32> to vector<8xf32>
    %119 = vector.shape_cast %118 : vector<8xf32> to vector<8x1xf32>
    %cst_42 = arith.constant 3.200000e+01 : f32
    %120 = vector.broadcast %cst_42 : f32 to vector<8x1xf32>
    %121 = arith.divf %119, %120 : vector<8x1xf32>
    %122 = vector.broadcast %114 : vector<8x1xf32> to vector<8x32xf32>
    %123 = arith.subf %110, %122 : vector<8x32xf32>
    %cst_43 = arith.constant 9.99999974E-6 : f32
    %124 = vector.broadcast %cst_43 : f32 to vector<8x1xf32>
    %125 = arith.addf %121, %124 : vector<8x1xf32>
    %126 = math.rsqrt %125 : vector<8x1xf32>
    %127 = vector.broadcast %126 : vector<8x1xf32> to vector<8x32xf32>
    %128 = arith.mulf %123, %127 : vector<8x32xf32>
    %c0_44 = arith.constant 0 : index
    %c0_45 = arith.constant 0 : index
    %129 = vector.load %arg11[%c0_44, %c0_45] : memref<1x32xf32, #tpu.memory_space<vmem>>, vector<1x32xf32>
    %130 = vector.broadcast %129 : vector<1x32xf32> to vector<8x32xf32>
    %131 = arith.mulf %128, %130 : vector<8x32xf32>
    %c0_46 = arith.constant 0 : index
    %c0_47 = arith.constant 0 : index
    %132 = vector.load %arg12[%c0_46, %c0_47] : memref<1x32xf32, #tpu.memory_space<vmem>>, vector<1x32xf32>
    %133 = vector.broadcast %132 : vector<1x32xf32> to vector<8x32xf32>
    %134 = arith.addf %131, %133 : vector<8x32xf32>
    %135 = arith.truncf %134 : vector<8x32xf32> to vector<8x32xbf16>
    %c0_48 = arith.constant 0 : index
    %c0_49 = arith.constant 0 : index
    %c0_50 = arith.constant 0 : index
    %136 = vector.load %arg13[%c0_48, %c0_49, %c0_50] : memref<1x8x32xbf16, #tpu.memory_space<vmem>>, vector<1x8x32xbf16>
    %137 = vector.shape_cast %136 : vector<1x8x32xbf16> to vector<8x32xbf16>
    %138 = vector.shape_cast %135 : vector<8x32xbf16> to vector<1x8x32xbf16>
    tpu.vector_store %arg13[%c0_48, %c0_49, %c0_50], %138 {strides = array<i32>} : memref<1x8x32xbf16, #tpu.memory_space<vmem>>, vector<1x8x32xbf16>,
    return
  }
  func.func @transform_0(%arg0: i32, %arg1: i32) -> (i32, i32, i32) {
    %c0_i32 = arith.constant 0 : i32
    %c0_i32_0 = arith.constant 0 : i32
    return %arg0, %arg1, %c0_i32 : i32, i32, i32
  }
  func.func @transform_1(%arg0: i32, %arg1: i32) -> (i32, i32, i32) {
    %c0_i32 = arith.constant 0 : i32
    %c0_i32_0 = arith.constant 0 : i32
    %c0_i32_1 = arith.constant 0 : i32
    return %arg0, %c0_i32, %c0_i32_0 : i32, i32, i32
  }
  func.func @transform_2(%arg0: i32, %arg1: i32) -> (i32, i32, i32) {
    %c0_i32 = arith.constant 0 : i32
    %c0_i32_0 = arith.constant 0 : i32
    %c0_i32_1 = arith.constant 0 : i32
    return %arg0, %c0_i32, %c0_i32_0 : i32, i32, i32
  }
  func.func @transform_3(%arg0: i32, %arg1: i32) -> (i32, i32) {
    %c0_i32 = arith.constant 0 : i32
    %c0_i32_0 = arith.constant 0 : i32
    %c0_i32_1 = arith.constant 0 : i32
    return %c0_i32, %c0_i32_0 : i32, i32
  }
  func.func @transform_4(%arg0: i32, %arg1: i32) -> (i32, i32) {
    %c0_i32 = arith.constant 0 : i32
    %c0_i32_0 = arith.constant 0 : i32
    %c0_i32_1 = arith.constant 0 : i32
    return %c0_i32, %c0_i32_0 : i32, i32
  }
  func.func @transform_5(%arg0: i32, %arg1: i32) -> (i32, i32) {
    %c0_i32 = arith.constant 0 : i32
    %c0_i32_0 = arith.constant 0 : i32
    %c0_i32_1 = arith.constant 0 : i32
    return %c0_i32, %c0_i32_0 : i32, i32
  }
  func.func @transform_6(%arg0: i32, %arg1: i32) -> (i32, i32) {
    %c0_i32 = arith.constant 0 : i32
    %c0_i32_0 = arith.constant 0 : i32
    %c0_i32_1 = arith.constant 0 : i32
    return %c0_i32, %c0_i32_0 : i32, i32
  }
  func.func @transform_7(%arg0: i32, %arg1: i32) -> (i32, i32) {
    %c0_i32 = arith.constant 0 : i32
    %c0_i32_0 = arith.constant 0 : i32
    %c0_i32_1 = arith.constant 0 : i32
    return %c0_i32, %c0_i32_0 : i32, i32
  }
  func.func @transform_8(%arg0: i32, %arg1: i32) -> (i32, i32) {
    %c0_i32 = arith.constant 0 : i32
    %c0_i32_0 = arith.constant 0 : i32
    %c0_i32_1 = arith.constant 0 : i32
    return %c0_i32, %c0_i32_0 : i32, i32
  }
  func.func @transform_9(%arg0: i32, %arg1: i32) -> (i32, i32) {
    %c0_i32 = arith.constant 0 : i32
    %c0_i32_0 = arith.constant 0 : i32
    %c0_i32_1 = arith.constant 0 : i32
    return %c0_i32, %c0_i32_0 : i32, i32
  }
  func.func @transform_10(%arg0: i32, %arg1: i32) -> (i32, i32) {
    %c0_i32 = arith.constant 0 : i32
    %c0_i32_0 = arith.constant 0 : i32
    %c0_i32_1 = arith.constant 0 : i32
    return %c0_i32, %c0_i32_0 : i32, i32
  }
  func.func @transform_11(%arg0: i32, %arg1: i32) -> (i32, i32, i32) {
    %c0_i32 = arith.constant 0 : i32
    %c0_i32_0 = arith.constant 0 : i32
    return %arg0, %arg1, %c0_i32 : i32, i32, i32
  }
}

module attributes {stable_mosaic.version = 11 : i64} {
  func.func @kernel(%arg0: i32, %arg1: i32, %arg2: memref<1x8x32xf32, #tpu.memory_space<vmem>>, %arg3: memref<1x8x32xf32, #tpu.memory_space<vmem>>, %arg4: memref<1x1x8xf32, #tpu.memory_space<vmem>>, %arg5: memref<32x32xbf16, #tpu.memory_space<vmem>>, %arg6: memref<1x32xf32, #tpu.memory_space<vmem>>, %arg7: memref<32x64xbf16, #tpu.memory_space<vmem>>, %arg8: memref<1x64xf32, #tpu.memory_space<vmem>>, %arg9: memref<32x32xbf16, #tpu.memory_space<vmem>>, %arg10: memref<1x32xf32, #tpu.memory_space<vmem>>, %arg11: memref<1x32xf32, #tpu.memory_space<vmem>>, %arg12: memref<1x32xf32, #tpu.memory_space<vmem>>, %arg13: memref<1x8x32xbf16, #tpu.memory_space<vmem>>) attributes {dimension_semantics = [#tpu.dimension_semantics<parallel>, #tpu.dimension_semantics<parallel>], iteration_bounds = array<i64: 2, 1>, scalar_prefetch = 0 : i64, scratch_operands = 0 : i64, tpu.core_type = #tpu.core_type<tc>, window_params = [{transform_indices = @transform_0, window_bounds = array<i64: 1, 8, 32>}, {transform_indices = @transform_1, window_bounds = array<i64: 1, 8, 32>}, {transform_indices = @transform_2, window_bounds = array<i64: 1, 1, 8>}, {pipeline_mode = #tpu.pipeline_mode<synchronous>, transform_indices = @transform_3, window_bounds = array<i64: 32, 32>}, {pipeline_mode = #tpu.pipeline_mode<synchronous>, transform_indices = @transform_4, window_bounds = array<i64: 1, 32>}, {pipeline_mode = #tpu.pipeline_mode<synchronous>, transform_indices = @transform_5, window_bounds = array<i64: 32, 64>}, {pipeline_mode = #tpu.pipeline_mode<synchronous>, transform_indices = @transform_6, window_bounds = array<i64: 1, 64>}, {pipeline_mode = #tpu.pipeline_mode<synchronous>, transform_indices = @transform_7, window_bounds = array<i64: 32, 32>}, {pipeline_mode = #tpu.pipeline_mode<synchronous>, transform_indices = @transform_8, window_bounds = array<i64: 1, 32>}, {pipeline_mode = #tpu.pipeline_mode<synchronous>, transform_indices = @transform_9, window_bounds = array<i64: 1, 32>}, {pipeline_mode = #tpu.pipeline_mode<synchronous>, transform_indices = @transform_10, window_bounds = array<i64: 1, 32>}, {transform_indices = @transform_11, window_bounds = array<i64: 1, 8, 32>}]} {
    %c0 = arith.constant 0 : index
    %c0_0 = arith.constant 0 : index
    %c0_1 = arith.constant 0 : index
    %0 = vector.load %arg2[%c0, %c0_0, %c0_1] : memref<1x8x32xf32, #tpu.memory_space<vmem>>, vector<1x8x32xf32>
    %1 = vector.shape_cast %0 : vector<1x8x32xf32> to vector<8x32xf32>
    %2 = arith.truncf %1 : vector<8x32xf32> to vector<8x32xbf16>
    %c0_2 = arith.constant 0 : index
    %c0_3 = arith.constant 0 : index
    %3 = vector.load %arg5[%c0_2, %c0_3] : memref<32x32xbf16, #tpu.memory_space<vmem>>, vector<32x32xbf16>
    %cst = arith.constant dense<0.000000e+00> : vector<8x32xf32>
    %4 = tpu.matmul %2, %3, %cst {dimension_numbers = #tpu.dot_dimension_numbers<[1], [0], [0], [1], [0, 0, 1, 1], [], []>} : vector<8x32xbf16>, vector<32x32xbf16>, vector<8x32xf32> -> vector<8x32xf32>
    %c0_4 = arith.constant 0 : index
    %c0_5 = arith.constant 0 : index
    %5 = vector.load %arg6[%c0_4, %c0_5] : memref<1x32xf32, #tpu.memory_space<vmem>>, vector<1x32xf32>
    %6 = vector.broadcast %5 : vector<1x32xf32> to vector<8x32xf32>
    %7 = arith.addf %4, %6 : vector<8x32xf32>
    %cst_6 = arith.constant 0.353553385 : f32
    %8 = vector.broadcast %cst_6 : f32 to vector<8x32xf32>
    %9 = arith.mulf %7, %8 : vector<8x32xf32>
    %c0_7 = arith.constant 0 : index
    %c0_8 = arith.constant 0 : index
    %c0_9 = arith.constant 0 : index
    %10 = vector.load %arg3[%c0_7, %c0_8, %c0_9] : memref<1x8x32xf32, #tpu.memory_space<vmem>>, vector<1x8x32xf32>
    %11 = vector.shape_cast %10 : vector<1x8x32xf32> to vector<8x32xf32>
    %12 = arith.truncf %11 : vector<8x32xf32> to vector<8x32xbf16>
    %c0_10 = arith.constant 0 : index
    %c0_11 = arith.constant 0 : index
    %13 = vector.load %arg7[%c0_10, %c0_11] : memref<32x64xbf16, #tpu.memory_space<vmem>>, vector<32x64xbf16>
    %cst_12 = arith.constant dense<0.000000e+00> : vector<8x64xf32>
    %14 = tpu.matmul %12, %13, %cst_12 {dimension_numbers = #tpu.dot_dimension_numbers<[1], [0], [0], [1], [0, 0, 1, 1], [], []>} : vector<8x32xbf16>, vector<32x64xbf16>, vector<8x64xf32> -> vector<8x64xf32>
    %c0_13 = arith.constant 0 : index
    %c0_14 = arith.constant 0 : index
    %15 = vector.load %arg8[%c0_13, %c0_14] : memref<1x64xf32, #tpu.memory_space<vmem>>, vector<1x64xf32>
    %16 = vector.broadcast %15 : vector<1x64xf32> to vector<8x64xf32>
    %17 = arith.addf %14, %16 : vector<8x64xf32>
    %18 = vector.extract_strided_slice %17 {offsets = [0, 0], sizes = [8, 32], strides = [1, 1]} : vector<8x64xf32> to vector<8x32xf32>
    %19 = vector.extract_strided_slice %17 {offsets = [0, 32], sizes = [8, 32], strides = [1, 1]} : vector<8x64xf32> to vector<8x32xf32>
    %c0_15 = arith.constant 0 : index
    %c0_16 = arith.constant 0 : index
    %c0_17 = arith.constant 0 : index
    %20 = vector.load %arg4[%c0_15, %c0_16, %c0_17] : memref<1x1x8xf32, #tpu.memory_space<vmem>>, vector<1x1x8xf32>
    %21 = vector.shape_cast %20 : vector<1x1x8xf32> to vector<1x8xf32>
    %22 = vector.shape_cast %21 : vector<1x8xf32> to vector<1x8xf32>
    %23 = vector.broadcast %22 : vector<1x8xf32> to vector<8x8xf32>
    %c8_i32 = arith.constant 8 : i32
    %24 = arith.muli %arg1, %c8_i32 : i32
    %25 = tpu.iota {dimensions = array<i32: 0>} : vector<8x8xi32>
    %26 = vector.broadcast %24 : i32 to vector<8x8xi32>
    %27 = arith.addi %25, %26 : vector<8x8xi32>
    %28 = tpu.iota {dimensions = array<i32: 1>} : vector<8x8xi32>
    %29 = arith.cmpi sge, %27, %28 : vector<8x8xi32>
    %cst_18 = arith.constant 0.000000e+00 : f32
    %cst_19 = arith.constant -1.000000e+09 : f32
    %30 = vector.broadcast %cst_18 : f32 to vector<8x8xf32>
    %31 = vector.broadcast %cst_19 : f32 to vector<8x8xf32>
    %32 = arith.select %29, %30, %31 : vector<8x8xi1>, vector<8x8xf32>
    %33 = arith.addf %23, %32 : vector<8x8xf32>
    %34 = vector.extract_strided_slice %9 {offsets = [0, 0], sizes = [8, 8], strides = [1, 1]} : vector<8x32xf32> to vector<8x8xf32>
    %35 = arith.truncf %34 : vector<8x8xf32> to vector<8x8xbf16>
    %36 = vector.extract_strided_slice %18 {offsets = [0, 0], sizes = [8, 8], strides = [1, 1]} : vector<8x32xf32> to vector<8x8xf32>
    %37 = arith.truncf %36 : vector<8x8xf32> to vector<8x8xbf16>
    %38 = vector.extract_strided_slice %19 {offsets = [0, 0], sizes = [8, 8], strides = [1, 1]} : vector<8x32xf32> to vector<8x8xf32>
    %39 = arith.truncf %38 : vector<8x8xf32> to vector<8x8xbf16>
    %cst_20 = arith.constant dense<0.000000e+00> : vector<8x8xf32>
    %40 = tpu.matmul %35, %37, %cst_20 {dimension_numbers = #tpu.dot_dimension_numbers<[1], [1], [0], [0], [0, 0, 1, 0], [], []>} : vector<8x8xbf16>, vector<8x8xbf16>, vector<8x8xf32> -> vector<8x8xf32>
    %41 = arith.addf %40, %33 : vector<8x8xf32>
    %cst_21 = arith.constant dense<0xFF800000> : vector<8xf32>
    %42 = vector.multi_reduction <maximumf>, %41, %cst_21 [1] : vector<8x8xf32> to vector<8xf32>
    %43 = vector.shape_cast %42 : vector<8xf32> to vector<8x1xf32>
    %44 = vector.broadcast %43 : vector<8x1xf32> to vector<8x8xf32>
    %45 = arith.subf %41, %44 : vector<8x8xf32>
    %46 = math.exp %45 : vector<8x8xf32>
    %cst_22 = arith.constant dense<0.000000e+00> : vector<8xf32>
    %47 = vector.multi_reduction <add>, %46, %cst_22 [1] : vector<8x8xf32> to vector<8xf32>
    %48 = vector.shape_cast %47 : vector<8xf32> to vector<8x1xf32>
    %49 = tpu.reciprocal %48 {approx = true} : vector<8x1xf32> -> vector<8x1xf32>
    %50 = vector.broadcast %49 : vector<8x1xf32> to vector<8x8xf32>
    %51 = arith.mulf %46, %50 : vector<8x8xf32>
    %52 = arith.truncf %51 : vector<8x8xf32> to vector<8x8xbf16>
    %cst_23 = arith.constant dense<0.000000e+00> : vector<8x8xf32>
    %53 = tpu.matmul %52, %39, %cst_23 {dimension_numbers = #tpu.dot_dimension_numbers<[1], [0], [0], [1], [0, 0, 1, 1], [], []>} : vector<8x8xbf16>, vector<8x8xbf16>, vector<8x8xf32> -> vector<8x8xf32>
    %54 = vector.extract_strided_slice %9 {offsets = [0, 8], sizes = [8, 8], strides = [1, 1]} : vector<8x32xf32> to vector<8x8xf32>
    %55 = arith.truncf %54 : vector<8x8xf32> to vector<8x8xbf16>
    %56 = vector.extract_strided_slice %18 {offsets = [0, 8], sizes = [8, 8], strides = [1, 1]} : vector<8x32xf32> to vector<8x8xf32>
    %57 = arith.truncf %56 : vector<8x8xf32> to vector<8x8xbf16>
    %58 = vector.extract_strided_slice %19 {offsets = [0, 8], sizes = [8, 8], strides = [1, 1]} : vector<8x32xf32> to vector<8x8xf32>
    %59 = arith.truncf %58 : vector<8x8xf32> to vector<8x8xbf16>
    %cst_24 = arith.constant dense<0.000000e+00> : vector<8x8xf32>
    %60 = tpu.matmul %55, %57, %cst_24 {dimension_numbers = #tpu.dot_dimension_numbers<[1], [1], [0], [0], [0, 0, 1, 0], [], []>} : vector<8x8xbf16>, vector<8x8xbf16>, vector<8x8xf32> -> vector<8x8xf32>
    %61 = arith.addf %60, %33 : vector<8x8xf32>
    %cst_25 = arith.constant dense<0xFF800000> : vector<8xf32>
    %62 = vector.multi_reduction <maximumf>, %61, %cst_25 [1] : vector<8x8xf32> to vector<8xf32>
    %63 = vector.shape_cast %62 : vector<8xf32> to vector<8x1xf32>
    %64 = vector.broadcast %63 : vector<8x1xf32> to vector<8x8xf32>
    %65 = arith.subf %61, %64 : vector<8x8xf32>
    %66 = math.exp %65 : vector<8x8xf32>
    %cst_26 = arith.constant dense<0.000000e+00> : vector<8xf32>
    %67 = vector.multi_reduction <add>, %66, %cst_26 [1] : vector<8x8xf32> to vector<8xf32>
    %68 = vector.shape_cast %67 : vector<8xf32> to vector<8x1xf32>
    %69 = tpu.reciprocal %68 {approx = true} : vector<8x1xf32> -> vector<8x1xf32>
    %70 = vector.broadcast %69 : vector<8x1xf32> to vector<8x8xf32>
    %71 = arith.mulf %66, %70 : vector<8x8xf32>
    %72 = arith.truncf %71 : vector<8x8xf32> to vector<8x8xbf16>
    %cst_27 = arith.constant dense<0.000000e+00> : vector<8x8xf32>
    %73 = tpu.matmul %72, %59, %cst_27 {dimension_numbers = #tpu.dot_dimension_numbers<[1], [0], [0], [1], [0, 0, 1, 1], [], []>} : vector<8x8xbf16>, vector<8x8xbf16>, vector<8x8xf32> -> vector<8x8xf32>
    %74 = vector.extract_strided_slice %9 {offsets = [0, 16], sizes = [8, 8], strides = [1, 1]} : vector<8x32xf32> to vector<8x8xf32>
    %75 = arith.truncf %74 : vector<8x8xf32> to vector<8x8xbf16>
    %76 = vector.extract_strided_slice %18 {offsets = [0, 16], sizes = [8, 8], strides = [1, 1]} : vector<8x32xf32> to vector<8x8xf32>
    %77 = arith.truncf %76 : vector<8x8xf32> to vector<8x8xbf16>
    %78 = vector.extract_strided_slice %19 {offsets = [0, 16], sizes = [8, 8], strides = [1, 1]} : vector<8x32xf32> to vector<8x8xf32>
    %79 = arith.truncf %78 : vector<8x8xf32> to vector<8x8xbf16>
    %cst_28 = arith.constant dense<0.000000e+00> : vector<8x8xf32>
    %80 = tpu.matmul %75, %77, %cst_28 {dimension_numbers = #tpu.dot_dimension_numbers<[1], [1], [0], [0], [0, 0, 1, 0], [], []>} : vector<8x8xbf16>, vector<8x8xbf16>, vector<8x8xf32> -> vector<8x8xf32>
    %81 = arith.addf %80, %33 : vector<8x8xf32>
    %cst_29 = arith.constant dense<0xFF800000> : vector<8xf32>
    %82 = vector.multi_reduction <maximumf>, %81, %cst_29 [1] : vector<8x8xf32> to vector<8xf32>
    %83 = vector.shape_cast %82 : vector<8xf32> to vector<8x1xf32>
    %84 = vector.broadcast %83 : vector<8x1xf32> to vector<8x8xf32>
    %85 = arith.subf %81, %84 : vector<8x8xf32>
    %86 = math.exp %85 : vector<8x8xf32>
    %cst_30 = arith.constant dense<0.000000e+00> : vector<8xf32>
    %87 = vector.multi_reduction <add>, %86, %cst_30 [1] : vector<8x8xf32> to vector<8xf32>
    %88 = vector.shape_cast %87 : vector<8xf32> to vector<8x1xf32>
    %89 = tpu.reciprocal %88 {approx = true} : vector<8x1xf32> -> vector<8x1xf32>
    %90 = vector.broadcast %89 : vector<8x1xf32> to vector<8x8xf32>
    %91 = arith.mulf %86, %90 : vector<8x8xf32>
    %92 = arith.truncf %91 : vector<8x8xf32> to vector<8x8xbf16>
    %cst_31 = arith.constant dense<0.000000e+00> : vector<8x8xf32>
    %93 = tpu.matmul %92, %79, %cst_31 {dimension_numbers = #tpu.dot_dimension_numbers<[1], [0], [0], [1], [0, 0, 1, 1], [], []>} : vector<8x8xbf16>, vector<8x8xbf16>, vector<8x8xf32> -> vector<8x8xf32>
    %94 = vector.extract_strided_slice %9 {offsets = [0, 24], sizes = [8, 8], strides = [1, 1]} : vector<8x32xf32> to vector<8x8xf32>
    %95 = arith.truncf %94 : vector<8x8xf32> to vector<8x8xbf16>
    %96 = vector.extract_strided_slice %18 {offsets = [0, 24], sizes = [8, 8], strides = [1, 1]} : vector<8x32xf32> to vector<8x8xf32>
    %97 = arith.truncf %96 : vector<8x8xf32> to vector<8x8xbf16>
    %98 = vector.extract_strided_slice %19 {offsets = [0, 24], sizes = [8, 8], strides = [1, 1]} : vector<8x32xf32> to vector<8x8xf32>
    %99 = arith.truncf %98 : vector<8x8xf32> to vector<8x8xbf16>
    %cst_32 = arith.constant dense<0.000000e+00> : vector<8x8xf32>
    %100 = tpu.matmul %95, %97, %cst_32 {dimension_numbers = #tpu.dot_dimension_numbers<[1], [1], [0], [0], [0, 0, 1, 0], [], []>} : vector<8x8xbf16>, vector<8x8xbf16>, vector<8x8xf32> -> vector<8x8xf32>
    %101 = arith.addf %100, %33 : vector<8x8xf32>
    %cst_33 = arith.constant dense<0xFF800000> : vector<8xf32>
    %102 = vector.multi_reduction <maximumf>, %101, %cst_33 [1] : vector<8x8xf32> to vector<8xf32>
    %103 = vector.shape_cast %102 : vector<8xf32> to vector<8x1xf32>
    %104 = vector.broadcast %103 : vector<8x1xf32> to vector<8x8xf32>
    %105 = arith.subf %101, %104 : vector<8x8xf32>
    %106 = math.exp %105 : vector<8x8xf32>
    %cst_34 = arith.constant dense<0.000000e+00> : vector<8xf32>
    %107 = vector.multi_reduction <add>, %106, %cst_34 [1] : vector<8x8xf32> to vector<8xf32>
    %108 = vector.shape_cast %107 : vector<8xf32> to vector<8x1xf32>
    %109 = tpu.reciprocal %108 {approx = true} : vector<8x1xf32> -> vector<8x1xf32>
    %110 = vector.broadcast %109 : vector<8x1xf32> to vector<8x8xf32>
    %111 = arith.mulf %106, %110 : vector<8x8xf32>
    %112 = arith.truncf %111 : vector<8x8xf32> to vector<8x8xbf16>
    %cst_35 = arith.constant dense<0.000000e+00> : vector<8x8xf32>
    %113 = tpu.matmul %112, %99, %cst_35 {dimension_numbers = #tpu.dot_dimension_numbers<[1], [0], [0], [1], [0, 0, 1, 1], [], []>} : vector<8x8xbf16>, vector<8x8xbf16>, vector<8x8xf32> -> vector<8x8xf32>
    %114 = tpu.concatenate %53, %73, %93, %113 in 1 : vector<8x8xf32>, vector<8x8xf32>, vector<8x8xf32>, vector<8x8xf32> -> vector<8x32xf32>
    %115 = arith.truncf %114 : vector<8x32xf32> to vector<8x32xbf16>
    %c0_36 = arith.constant 0 : index
    %c0_37 = arith.constant 0 : index
    %116 = vector.load %arg9[%c0_36, %c0_37] : memref<32x32xbf16, #tpu.memory_space<vmem>>, vector<32x32xbf16>
    %cst_38 = arith.constant dense<0.000000e+00> : vector<8x32xf32>
    %117 = tpu.matmul %115, %116, %cst_38 {dimension_numbers = #tpu.dot_dimension_numbers<[1], [0], [0], [1], [0, 0, 1, 1], [], []>} : vector<8x32xbf16>, vector<32x32xbf16>, vector<8x32xf32> -> vector<8x32xf32>
    %c0_39 = arith.constant 0 : index
    %c0_40 = arith.constant 0 : index
    %118 = vector.load %arg10[%c0_39, %c0_40] : memref<1x32xf32, #tpu.memory_space<vmem>>, vector<1x32xf32>
    %119 = vector.broadcast %118 : vector<1x32xf32> to vector<8x32xf32>
    %120 = arith.addf %117, %119 : vector<8x32xf32>
    %121 = arith.addf %1, %120 : vector<8x32xf32>
    %cst_41 = arith.constant dense<0.000000e+00> : vector<8xf32>
    %122 = vector.multi_reduction <add>, %121, %cst_41 [1] : vector<8x32xf32> to vector<8xf32>
    %123 = vector.shape_cast %122 : vector<8xf32> to vector<8x1xf32>
    %cst_42 = arith.constant 3.200000e+01 : f32
    %124 = vector.broadcast %cst_42 : f32 to vector<8x1xf32>
    %125 = arith.divf %123, %124 : vector<8x1xf32>
    %126 = vector.broadcast %125 : vector<8x1xf32> to vector<8x32xf32>
    %127 = arith.subf %121, %126 : vector<8x32xf32>
    %128 = arith.mulf %127, %127 : vector<8x32xf32>
    %cst_43 = arith.constant dense<0.000000e+00> : vector<8xf32>
    %129 = vector.multi_reduction <add>, %128, %cst_43 [1] : vector<8x32xf32> to vector<8xf32>
    %130 = vector.shape_cast %129 : vector<8xf32> to vector<8x1xf32>
    %cst_44 = arith.constant 3.200000e+01 : f32
    %131 = vector.broadcast %cst_44 : f32 to vector<8x1xf32>
    %132 = arith.divf %130, %131 : vector<8x1xf32>
    %133 = vector.broadcast %125 : vector<8x1xf32> to vector<8x32xf32>
    %134 = arith.subf %121, %133 : vector<8x32xf32>
    %cst_45 = arith.constant 9.99999974E-6 : f32
    %135 = vector.broadcast %cst_45 : f32 to vector<8x1xf32>
    %136 = arith.addf %132, %135 : vector<8x1xf32>
    %137 = math.rsqrt %136 : vector<8x1xf32>
    %138 = vector.broadcast %137 : vector<8x1xf32> to vector<8x32xf32>
    %139 = arith.mulf %134, %138 : vector<8x32xf32>
    %c0_46 = arith.constant 0 : index
    %c0_47 = arith.constant 0 : index
    %140 = vector.load %arg11[%c0_46, %c0_47] : memref<1x32xf32, #tpu.memory_space<vmem>>, vector<1x32xf32>
    %141 = vector.broadcast %140 : vector<1x32xf32> to vector<8x32xf32>
    %142 = arith.mulf %139, %141 : vector<8x32xf32>
    %c0_48 = arith.constant 0 : index
    %c0_49 = arith.constant 0 : index
    %143 = vector.load %arg12[%c0_48, %c0_49] : memref<1x32xf32, #tpu.memory_space<vmem>>, vector<1x32xf32>
    %144 = vector.broadcast %143 : vector<1x32xf32> to vector<8x32xf32>
    %145 = arith.addf %142, %144 : vector<8x32xf32>
    %146 = arith.truncf %145 : vector<8x32xf32> to vector<8x32xbf16>
    %c0_50 = arith.constant 0 : index
    %c0_51 = arith.constant 0 : index
    %c0_52 = arith.constant 0 : index
    %147 = vector.load %arg13[%c0_50, %c0_51, %c0_52] : memref<1x8x32xbf16, #tpu.memory_space<vmem>>, vector<1x8x32xbf16>
    %148 = vector.shape_cast %147 : vector<1x8x32xbf16> to vector<8x32xbf16>
    %149 = vector.shape_cast %146 : vector<8x32xbf16> to vector<1x8x32xbf16>
    tpu.vector_store %arg13[%c0_50, %c0_51, %c0_52], %149 {strides = array<i32>} : memref<1x8x32xbf16, #tpu.memory_space<vmem>>, vector<1x8x32xbf16>,
    return
  }
  func.func @transform_0(%arg0: i32, %arg1: i32) -> (i32, i32, i32) {
    %c0_i32 = arith.constant 0 : i32
    %c0_i32_0 = arith.constant 0 : i32
    return %arg0, %arg1, %c0_i32 : i32, i32, i32
  }
  func.func @transform_1(%arg0: i32, %arg1: i32) -> (i32, i32, i32) {
    %c0_i32 = arith.constant 0 : i32
    %c0_i32_0 = arith.constant 0 : i32
    %c0_i32_1 = arith.constant 0 : i32
    return %arg0, %c0_i32, %c0_i32_0 : i32, i32, i32
  }
  func.func @transform_2(%arg0: i32, %arg1: i32) -> (i32, i32, i32) {
    %c0_i32 = arith.constant 0 : i32
    %c0_i32_0 = arith.constant 0 : i32
    %c0_i32_1 = arith.constant 0 : i32
    return %arg0, %c0_i32, %c0_i32_0 : i32, i32, i32
  }
  func.func @transform_3(%arg0: i32, %arg1: i32) -> (i32, i32) {
    %c0_i32 = arith.constant 0 : i32
    %c0_i32_0 = arith.constant 0 : i32
    %c0_i32_1 = arith.constant 0 : i32
    return %c0_i32, %c0_i32_0 : i32, i32
  }
  func.func @transform_4(%arg0: i32, %arg1: i32) -> (i32, i32) {
    %c0_i32 = arith.constant 0 : i32
    %c0_i32_0 = arith.constant 0 : i32
    %c0_i32_1 = arith.constant 0 : i32
    return %c0_i32, %c0_i32_0 : i32, i32
  }
  func.func @transform_5(%arg0: i32, %arg1: i32) -> (i32, i32) {
    %c0_i32 = arith.constant 0 : i32
    %c0_i32_0 = arith.constant 0 : i32
    %c0_i32_1 = arith.constant 0 : i32
    return %c0_i32, %c0_i32_0 : i32, i32
  }
  func.func @transform_6(%arg0: i32, %arg1: i32) -> (i32, i32) {
    %c0_i32 = arith.constant 0 : i32
    %c0_i32_0 = arith.constant 0 : i32
    %c0_i32_1 = arith.constant 0 : i32
    return %c0_i32, %c0_i32_0 : i32, i32
  }
  func.func @transform_7(%arg0: i32, %arg1: i32) -> (i32, i32) {
    %c0_i32 = arith.constant 0 : i32
    %c0_i32_0 = arith.constant 0 : i32
    %c0_i32_1 = arith.constant 0 : i32
    return %c0_i32, %c0_i32_0 : i32, i32
  }
  func.func @transform_8(%arg0: i32, %arg1: i32) -> (i32, i32) {
    %c0_i32 = arith.constant 0 : i32
    %c0_i32_0 = arith.constant 0 : i32
    %c0_i32_1 = arith.constant 0 : i32
    return %c0_i32, %c0_i32_0 : i32, i32
  }
  func.func @transform_9(%arg0: i32, %arg1: i32) -> (i32, i32) {
    %c0_i32 = arith.constant 0 : i32
    %c0_i32_0 = arith.constant 0 : i32
    %c0_i32_1 = arith.constant 0 : i32
    return %c0_i32, %c0_i32_0 : i32, i32
  }
  func.func @transform_10(%arg0: i32, %arg1: i32) -> (i32, i32) {
    %c0_i32 = arith.constant 0 : i32
    %c0_i32_0 = arith.constant 0 : i32
    %c0_i32_1 = arith.constant 0 : i32
    return %c0_i32, %c0_i32_0 : i32, i32
  }
  func.func @transform_11(%arg0: i32, %arg1: i32) -> (i32, i32, i32) {
    %c0_i32 = arith.constant 0 : i32
    %c0_i32_0 = arith.constant 0 : i32
    return %arg0, %arg1, %c0_i32 : i32, i32, i32
  }
}

module attributes {stable_mosaic.version = 11 : i64} {
  func.func @kernel(%arg0: i32, %arg1: i32, %arg2: memref<1x8x32xbf16, #tpu.memory_space<vmem>>, %arg3: memref<1x8x32xbf16, #tpu.memory_space<vmem>>, %arg4: memref<1x1x8xf32, #tpu.memory_space<vmem>>, %arg5: memref<32x32xbf16, #tpu.memory_space<vmem>>, %arg6: memref<1x32xf32, #tpu.memory_space<vmem>>, %arg7: memref<32x64xbf16, #tpu.memory_space<vmem>>, %arg8: memref<1x64xf32, #tpu.memory_space<vmem>>, %arg9: memref<32x32xbf16, #tpu.memory_space<vmem>>, %arg10: memref<1x32xf32, #tpu.memory_space<vmem>>, %arg11: memref<1x32xf32, #tpu.memory_space<vmem>>, %arg12: memref<1x32xf32, #tpu.memory_space<vmem>>, %arg13: memref<1x8x32xbf16, #tpu.memory_space<vmem>>) attributes {dimension_semantics = [#tpu.dimension_semantics<parallel>, #tpu.dimension_semantics<parallel>], iteration_bounds = array<i64: 2, 1>, scalar_prefetch = 0 : i64, scratch_operands = 0 : i64, tpu.core_type = #tpu.core_type<tc>, window_params = [{transform_indices = @transform_0, window_bounds = array<i64: 1, 8, 32>}, {transform_indices = @transform_1, window_bounds = array<i64: 1, 8, 32>}, {transform_indices = @transform_2, window_bounds = array<i64: 1, 1, 8>}, {pipeline_mode = #tpu.pipeline_mode<synchronous>, transform_indices = @transform_3, window_bounds = array<i64: 32, 32>}, {pipeline_mode = #tpu.pipeline_mode<synchronous>, transform_indices = @transform_4, window_bounds = array<i64: 1, 32>}, {pipeline_mode = #tpu.pipeline_mode<synchronous>, transform_indices = @transform_5, window_bounds = array<i64: 32, 64>}, {pipeline_mode = #tpu.pipeline_mode<synchronous>, transform_indices = @transform_6, window_bounds = array<i64: 1, 64>}, {pipeline_mode = #tpu.pipeline_mode<synchronous>, transform_indices = @transform_7, window_bounds = array<i64: 32, 32>}, {pipeline_mode = #tpu.pipeline_mode<synchronous>, transform_indices = @transform_8, window_bounds = array<i64: 1, 32>}, {pipeline_mode = #tpu.pipeline_mode<synchronous>, transform_indices = @transform_9, window_bounds = array<i64: 1, 32>}, {pipeline_mode = #tpu.pipeline_mode<synchronous>, transform_indices = @transform_10, window_bounds = array<i64: 1, 32>}, {transform_indices = @transform_11, window_bounds = array<i64: 1, 8, 32>}]} {
    %c0 = arith.constant 0 : index
    %c0_0 = arith.constant 0 : index
    %c0_1 = arith.constant 0 : index
    %0 = vector.load %arg2[%c0, %c0_0, %c0_1] : memref<1x8x32xbf16, #tpu.memory_space<vmem>>, vector<1x8x32xbf16>
    %1 = vector.shape_cast %0 : vector<1x8x32xbf16> to vector<8x32xbf16>
    %2 = arith.extf %1 : vector<8x32xbf16> to vector<8x32xf32>
    %c0_2 = arith.constant 0 : index
    %c0_3 = arith.constant 0 : index
    %3 = vector.load %arg5[%c0_2, %c0_3] : memref<32x32xbf16, #tpu.memory_space<vmem>>, vector<32x32xbf16>
    %cst = arith.constant dense<0.000000e+00> : vector<8x32xf32>
    %4 = tpu.matmul %1, %3, %cst {dimension_numbers = #tpu.dot_dimension_numbers<[1], [0], [0], [1], [0, 0, 1, 1], [], []>} : vector<8x32xbf16>, vector<32x32xbf16>, vector<8x32xf32> -> vector<8x32xf32>
    %c0_4 = arith.constant 0 : index
    %c0_5 = arith.constant 0 : index
    %5 = vector.load %arg6[%c0_4, %c0_5] : memref<1x32xf32, #tpu.memory_space<vmem>>, vector<1x32xf32>
    %6 = vector.broadcast %5 : vector<1x32xf32> to vector<8x32xf32>
    %7 = arith.addf %4, %6 : vector<8x32xf32>
    %cst_6 = arith.constant 0.353553385 : f32
    %8 = vector.broadcast %cst_6 : f32 to vector<8x32xf32>
    %9 = arith.mulf %7, %8 : vector<8x32xf32>
    %c0_7 = arith.constant 0 : index
    %c0_8 = arith.constant 0 : index
    %c0_9 = arith.constant 0 : index
    %10 = vector.load %arg3[%c0_7, %c0_8, %c0_9] : memref<1x8x32xbf16, #tpu.memory_space<vmem>>, vector<1x8x32xbf16>
    %11 = vector.shape_cast %10 : vector<1x8x32xbf16> to vector<8x32xbf16>
    %c0_10 = arith.constant 0 : index
    %c0_11 = arith.constant 0 : index
    %12 = vector.load %arg7[%c0_10, %c0_11] : memref<32x64xbf16, #tpu.memory_space<vmem>>, vector<32x64xbf16>
    %cst_12 = arith.constant dense<0.000000e+00> : vector<8x64xf32>
    %13 = tpu.matmul %11, %12, %cst_12 {dimension_numbers = #tpu.dot_dimension_numbers<[1], [0], [0], [1], [0, 0, 1, 1], [], []>} : vector<8x32xbf16>, vector<32x64xbf16>, vector<8x64xf32> -> vector<8x64xf32>
    %c0_13 = arith.constant 0 : index
    %c0_14 = arith.constant 0 : index
    %14 = vector.load %arg8[%c0_13, %c0_14] : memref<1x64xf32, #tpu.memory_space<vmem>>, vector<1x64xf32>
    %15 = vector.broadcast %14 : vector<1x64xf32> to vector<8x64xf32>
    %16 = arith.addf %13, %15 : vector<8x64xf32>
    %17 = vector.extract_strided_slice %16 {offsets = [0, 0], sizes = [8, 32], strides = [1, 1]} : vector<8x64xf32> to vector<8x32xf32>
    %18 = vector.extract_strided_slice %16 {offsets = [0, 32], sizes = [8, 32], strides = [1, 1]} : vector<8x64xf32> to vector<8x32xf32>
    %c0_15 = arith.constant 0 : index
    %c0_16 = arith.constant 0 : index
    %c0_17 = arith.constant 0 : index
    %19 = vector.load %arg4[%c0_15, %c0_16, %c0_17] : memref<1x1x8xf32, #tpu.memory_space<vmem>>, vector<1x1x8xf32>
    %20 = vector.shape_cast %19 : vector<1x1x8xf32> to vector<1x8xf32>
    %21 = vector.shape_cast %20 : vector<1x8xf32> to vector<1x8xf32>
    %22 = vector.broadcast %21 : vector<1x8xf32> to vector<8x8xf32>
    %c8_i32 = arith.constant 8 : i32
    %23 = arith.muli %arg1, %c8_i32 : i32
    %24 = tpu.iota {dimensions = array<i32: 0>} : vector<8x8xi32>
    %25 = vector.broadcast %23 : i32 to vector<8x8xi32>
    %26 = arith.addi %24, %25 : vector<8x8xi32>
    %27 = tpu.iota {dimensions = array<i32: 1>} : vector<8x8xi32>
    %28 = arith.cmpi sge, %26, %27 : vector<8x8xi32>
    %cst_18 = arith.constant 0.000000e+00 : f32
    %cst_19 = arith.constant -1.000000e+09 : f32
    %29 = vector.broadcast %cst_18 : f32 to vector<8x8xf32>
    %30 = vector.broadcast %cst_19 : f32 to vector<8x8xf32>
    %31 = arith.select %28, %29, %30 : vector<8x8xi1>, vector<8x8xf32>
    %32 = arith.addf %22, %31 : vector<8x8xf32>
    %33 = vector.extract_strided_slice %9 {offsets = [0, 0], sizes = [8, 8], strides = [1, 1]} : vector<8x32xf32> to vector<8x8xf32>
    %34 = arith.truncf %33 : vector<8x8xf32> to vector<8x8xbf16>
    %35 = vector.extract_strided_slice %17 {offsets = [0, 0], sizes = [8, 8], strides = [1, 1]} : vector<8x32xf32> to vector<8x8xf32>
    %36 = arith.truncf %35 : vector<8x8xf32> to vector<8x8xbf16>
    %37 = vector.extract_strided_slice %18 {offsets = [0, 0], sizes = [8, 8], strides = [1, 1]} : vector<8x32xf32> to vector<8x8xf32>
    %38 = arith.truncf %37 : vector<8x8xf32> to vector<8x8xbf16>
    %cst_20 = arith.constant dense<0.000000e+00> : vector<8x8xf32>
    %39 = tpu.matmul %34, %36, %cst_20 {dimension_numbers = #tpu.dot_dimension_numbers<[1], [1], [0], [0], [0, 0, 1, 0], [], []>} : vector<8x8xbf16>, vector<8x8xbf16>, vector<8x8xf32> -> vector<8x8xf32>
    %40 = arith.addf %39, %32 : vector<8x8xf32>
    %cst_21 = arith.constant dense<0xFF800000> : vector<8xf32>
    %41 = vector.multi_reduction <maximumf>, %40, %cst_21 [1] : vector<8x8xf32> to vector<8xf32>
    %42 = vector.shape_cast %41 : vector<8xf32> to vector<8x1xf32>
    %43 = vector.broadcast %42 : vector<8x1xf32> to vector<8x8xf32>
    %44 = arith.subf %40, %43 : vector<8x8xf32>
    %45 = math.exp %44 : vector<8x8xf32>
    %cst_22 = arith.constant dense<0.000000e+00> : vector<8xf32>
    %46 = vector.multi_reduction <add>, %45, %cst_22 [1] : vector<8x8xf32> to vector<8xf32>
    %47 = vector.shape_cast %46 : vector<8xf32> to vector<8x1xf32>
    %48 = tpu.reciprocal %47 {approx = true} : vector<8x1xf32> -> vector<8x1xf32>
    %49 = vector.broadcast %48 : vector<8x1xf32> to vector<8x8xf32>
    %50 = arith.mulf %45, %49 : vector<8x8xf32>
    %51 = arith.truncf %50 : vector<8x8xf32> to vector<8x8xbf16>
    %cst_23 = arith.constant dense<0.000000e+00> : vector<8x8xf32>
    %52 = tpu.matmul %51, %38, %cst_23 {dimension_numbers = #tpu.dot_dimension_numbers<[1], [0], [0], [1], [0, 0, 1, 1], [], []>} : vector<8x8xbf16>, vector<8x8xbf16>, vector<8x8xf32> -> vector<8x8xf32>
    %53 = vector.extract_strided_slice %9 {offsets = [0, 8], sizes = [8, 8], strides = [1, 1]} : vector<8x32xf32> to vector<8x8xf32>
    %54 = arith.truncf %53 : vector<8x8xf32> to vector<8x8xbf16>
    %55 = vector.extract_strided_slice %17 {offsets = [0, 8], sizes = [8, 8], strides = [1, 1]} : vector<8x32xf32> to vector<8x8xf32>
    %56 = arith.truncf %55 : vector<8x8xf32> to vector<8x8xbf16>
    %57 = vector.extract_strided_slice %18 {offsets = [0, 8], sizes = [8, 8], strides = [1, 1]} : vector<8x32xf32> to vector<8x8xf32>
    %58 = arith.truncf %57 : vector<8x8xf32> to vector<8x8xbf16>
    %cst_24 = arith.constant dense<0.000000e+00> : vector<8x8xf32>
    %59 = tpu.matmul %54, %56, %cst_24 {dimension_numbers = #tpu.dot_dimension_numbers<[1], [1], [0], [0], [0, 0, 1, 0], [], []>} : vector<8x8xbf16>, vector<8x8xbf16>, vector<8x8xf32> -> vector<8x8xf32>
    %60 = arith.addf %59, %32 : vector<8x8xf32>
    %cst_25 = arith.constant dense<0xFF800000> : vector<8xf32>
    %61 = vector.multi_reduction <maximumf>, %60, %cst_25 [1] : vector<8x8xf32> to vector<8xf32>
    %62 = vector.shape_cast %61 : vector<8xf32> to vector<8x1xf32>
    %63 = vector.broadcast %62 : vector<8x1xf32> to vector<8x8xf32>
    %64 = arith.subf %60, %63 : vector<8x8xf32>
    %65 = math.exp %64 : vector<8x8xf32>
    %cst_26 = arith.constant dense<0.000000e+00> : vector<8xf32>
    %66 = vector.multi_reduction <add>, %65, %cst_26 [1] : vector<8x8xf32> to vector<8xf32>
    %67 = vector.shape_cast %66 : vector<8xf32> to vector<8x1xf32>
    %68 = tpu.reciprocal %67 {approx = true} : vector<8x1xf32> -> vector<8x1xf32>
    %69 = vector.broadcast %68 : vector<8x1xf32> to vector<8x8xf32>
    %70 = arith.mulf %65, %69 : vector<8x8xf32>
    %71 = arith.truncf %70 : vector<8x8xf32> to vector<8x8xbf16>
    %cst_27 = arith.constant dense<0.000000e+00> : vector<8x8xf32>
    %72 = tpu.matmul %71, %58, %cst_27 {dimension_numbers = #tpu.dot_dimension_numbers<[1], [0], [0], [1], [0, 0, 1, 1], [], []>} : vector<8x8xbf16>, vector<8x8xbf16>, vector<8x8xf32> -> vector<8x8xf32>
    %73 = vector.extract_strided_slice %9 {offsets = [0, 16], sizes = [8, 8], strides = [1, 1]} : vector<8x32xf32> to vector<8x8xf32>
    %74 = arith.truncf %73 : vector<8x8xf32> to vector<8x8xbf16>
    %75 = vector.extract_strided_slice %17 {offsets = [0, 16], sizes = [8, 8], strides = [1, 1]} : vector<8x32xf32> to vector<8x8xf32>
    %76 = arith.truncf %75 : vector<8x8xf32> to vector<8x8xbf16>
    %77 = vector.extract_strided_slice %18 {offsets = [0, 16], sizes = [8, 8], strides = [1, 1]} : vector<8x32xf32> to vector<8x8xf32>
    %78 = arith.truncf %77 : vector<8x8xf32> to vector<8x8xbf16>
    %cst_28 = arith.constant dense<0.000000e+00> : vector<8x8xf32>
    %79 = tpu.matmul %74, %76, %cst_28 {dimension_numbers = #tpu.dot_dimension_numbers<[1], [1], [0], [0], [0, 0, 1, 0], [], []>} : vector<8x8xbf16>, vector<8x8xbf16>, vector<8x8xf32> -> vector<8x8xf32>
    %80 = arith.addf %79, %32 : vector<8x8xf32>
    %cst_29 = arith.constant dense<0xFF800000> : vector<8xf32>
    %81 = vector.multi_reduction <maximumf>, %80, %cst_29 [1] : vector<8x8xf32> to vector<8xf32>
    %82 = vector.shape_cast %81 : vector<8xf32> to vector<8x1xf32>
    %83 = vector.broadcast %82 : vector<8x1xf32> to vector<8x8xf32>
    %84 = arith.subf %80, %83 : vector<8x8xf32>
    %85 = math.exp %84 : vector<8x8xf32>
    %cst_30 = arith.constant dense<0.000000e+00> : vector<8xf32>
    %86 = vector.multi_reduction <add>, %85, %cst_30 [1] : vector<8x8xf32> to vector<8xf32>
    %87 = vector.shape_cast %86 : vector<8xf32> to vector<8x1xf32>
    %88 = tpu.reciprocal %87 {approx = true} : vector<8x1xf32> -> vector<8x1xf32>
    %89 = vector.broadcast %88 : vector<8x1xf32> to vector<8x8xf32>
    %90 = arith.mulf %85, %89 : vector<8x8xf32>
    %91 = arith.truncf %90 : vector<8x8xf32> to vector<8x8xbf16>
    %cst_31 = arith.constant dense<0.000000e+00> : vector<8x8xf32>
    %92 = tpu.matmul %91, %78, %cst_31 {dimension_numbers = #tpu.dot_dimension_numbers<[1], [0], [0], [1], [0, 0, 1, 1], [], []>} : vector<8x8xbf16>, vector<8x8xbf16>, vector<8x8xf32> -> vector<8x8xf32>
    %93 = vector.extract_strided_slice %9 {offsets = [0, 24], sizes = [8, 8], strides = [1, 1]} : vector<8x32xf32> to vector<8x8xf32>
    %94 = arith.truncf %93 : vector<8x8xf32> to vector<8x8xbf16>
    %95 = vector.extract_strided_slice %17 {offsets = [0, 24], sizes = [8, 8], strides = [1, 1]} : vector<8x32xf32> to vector<8x8xf32>
    %96 = arith.truncf %95 : vector<8x8xf32> to vector<8x8xbf16>
    %97 = vector.extract_strided_slice %18 {offsets = [0, 24], sizes = [8, 8], strides = [1, 1]} : vector<8x32xf32> to vector<8x8xf32>
    %98 = arith.truncf %97 : vector<8x8xf32> to vector<8x8xbf16>
    %cst_32 = arith.constant dense<0.000000e+00> : vector<8x8xf32>
    %99 = tpu.matmul %94, %96, %cst_32 {dimension_numbers = #tpu.dot_dimension_numbers<[1], [1], [0], [0], [0, 0, 1, 0], [], []>} : vector<8x8xbf16>, vector<8x8xbf16>, vector<8x8xf32> -> vector<8x8xf32>
    %100 = arith.addf %99, %32 : vector<8x8xf32>
    %cst_33 = arith.constant dense<0xFF800000> : vector<8xf32>
    %101 = vector.multi_reduction <maximumf>, %100, %cst_33 [1] : vector<8x8xf32> to vector<8xf32>
    %102 = vector.shape_cast %101 : vector<8xf32> to vector<8x1xf32>
    %103 = vector.broadcast %102 : vector<8x1xf32> to vector<8x8xf32>
    %104 = arith.subf %100, %103 : vector<8x8xf32>
    %105 = math.exp %104 : vector<8x8xf32>
    %cst_34 = arith.constant dense<0.000000e+00> : vector<8xf32>
    %106 = vector.multi_reduction <add>, %105, %cst_34 [1] : vector<8x8xf32> to vector<8xf32>
    %107 = vector.shape_cast %106 : vector<8xf32> to vector<8x1xf32>
    %108 = tpu.reciprocal %107 {approx = true} : vector<8x1xf32> -> vector<8x1xf32>
    %109 = vector.broadcast %108 : vector<8x1xf32> to vector<8x8xf32>
    %110 = arith.mulf %105, %109 : vector<8x8xf32>
    %111 = arith.truncf %110 : vector<8x8xf32> to vector<8x8xbf16>
    %cst_35 = arith.constant dense<0.000000e+00> : vector<8x8xf32>
    %112 = tpu.matmul %111, %98, %cst_35 {dimension_numbers = #tpu.dot_dimension_numbers<[1], [0], [0], [1], [0, 0, 1, 1], [], []>} : vector<8x8xbf16>, vector<8x8xbf16>, vector<8x8xf32> -> vector<8x8xf32>
    %113 = tpu.concatenate %52, %72, %92, %112 in 1 : vector<8x8xf32>, vector<8x8xf32>, vector<8x8xf32>, vector<8x8xf32> -> vector<8x32xf32>
    %114 = arith.truncf %113 : vector<8x32xf32> to vector<8x32xbf16>
    %c0_36 = arith.constant 0 : index
    %c0_37 = arith.constant 0 : index
    %115 = vector.load %arg9[%c0_36, %c0_37] : memref<32x32xbf16, #tpu.memory_space<vmem>>, vector<32x32xbf16>
    %cst_38 = arith.constant dense<0.000000e+00> : vector<8x32xf32>
    %116 = tpu.matmul %114, %115, %cst_38 {dimension_numbers = #tpu.dot_dimension_numbers<[1], [0], [0], [1], [0, 0, 1, 1], [], []>} : vector<8x32xbf16>, vector<32x32xbf16>, vector<8x32xf32> -> vector<8x32xf32>
    %c0_39 = arith.constant 0 : index
    %c0_40 = arith.constant 0 : index
    %117 = vector.load %arg10[%c0_39, %c0_40] : memref<1x32xf32, #tpu.memory_space<vmem>>, vector<1x32xf32>
    %118 = vector.broadcast %117 : vector<1x32xf32> to vector<8x32xf32>
    %119 = arith.addf %116, %118 : vector<8x32xf32>
    %120 = arith.addf %2, %119 : vector<8x32xf32>
    %cst_41 = arith.constant dense<0.000000e+00> : vector<8xf32>
    %121 = vector.multi_reduction <add>, %120, %cst_41 [1] : vector<8x32xf32> to vector<8xf32>
    %122 = vector.shape_cast %121 : vector<8xf32> to vector<8x1xf32>
    %cst_42 = arith.constant 3.200000e+01 : f32
    %123 = vector.broadcast %cst_42 : f32 to vector<8x1xf32>
    %124 = arith.divf %122, %123 : vector<8x1xf32>
    %125 = vector.broadcast %124 : vector<8x1xf32> to vector<8x32xf32>
    %126 = arith.subf %120, %125 : vector<8x32xf32>
    %127 = arith.mulf %126, %126 : vector<8x32xf32>
    %cst_43 = arith.constant dense<0.000000e+00> : vector<8xf32>
    %128 = vector.multi_reduction <add>, %127, %cst_43 [1] : vector<8x32xf32> to vector<8xf32>
    %129 = vector.shape_cast %128 : vector<8xf32> to vector<8x1xf32>
    %cst_44 = arith.constant 3.200000e+01 : f32
    %130 = vector.broadcast %cst_44 : f32 to vector<8x1xf32>
    %131 = arith.divf %129, %130 : vector<8x1xf32>
    %132 = vector.broadcast %124 : vector<8x1xf32> to vector<8x32xf32>
    %133 = arith.subf %120, %132 : vector<8x32xf32>
    %cst_45 = arith.constant 9.99999974E-6 : f32
    %134 = vector.broadcast %cst_45 : f32 to vector<8x1xf32>
    %135 = arith.addf %131, %134 : vector<8x1xf32>
    %136 = math.rsqrt %135 : vector<8x1xf32>
    %137 = vector.broadcast %136 : vector<8x1xf32> to vector<8x32xf32>
    %138 = arith.mulf %133, %137 : vector<8x32xf32>
    %c0_46 = arith.constant 0 : index
    %c0_47 = arith.constant 0 : index
    %139 = vector.load %arg11[%c0_46, %c0_47] : memref<1x32xf32, #tpu.memory_space<vmem>>, vector<1x32xf32>
    %140 = vector.broadcast %139 : vector<1x32xf32> to vector<8x32xf32>
    %141 = arith.mulf %138, %140 : vector<8x32xf32>
    %c0_48 = arith.constant 0 : index
    %c0_49 = arith.constant 0 : index
    %142 = vector.load %arg12[%c0_48, %c0_49] : memref<1x32xf32, #tpu.memory_space<vmem>>, vector<1x32xf32>
    %143 = vector.broadcast %142 : vector<1x32xf32> to vector<8x32xf32>
    %144 = arith.addf %141, %143 : vector<8x32xf32>
    %145 = arith.truncf %144 : vector<8x32xf32> to vector<8x32xbf16>
    %c0_50 = arith.constant 0 : index
    %c0_51 = arith.constant 0 : index
    %c0_52 = arith.constant 0 : index
    %146 = vector.load %arg13[%c0_50, %c0_51, %c0_52] : memref<1x8x32xbf16, #tpu.memory_space<vmem>>, vector<1x8x32xbf16>
    %147 = vector.shape_cast %146 : vector<1x8x32xbf16> to vector<8x32xbf16>
    %148 = vector.shape_cast %145 : vector<8x32xbf16> to vector<1x8x32xbf16>
    tpu.vector_store %arg13[%c0_50, %c0_51, %c0_52], %148 {strides = array<i32>} : memref<1x8x32xbf16, #tpu.memory_space<vmem>>, vector<1x8x32xbf16>,
    return
  }
  func.func @transform_0(%arg0: i32, %arg1: i32) -> (i32, i32, i32) {
    %c0_i32 = arith.constant 0 : i32
    %c0_i32_0 = arith.constant 0 : i32
    return %arg0, %arg1, %c0_i32 : i32, i32, i32
  }
  func.func @transform_1(%arg0: i32, %arg1: i32) -> (i32, i32, i32) {
    %c0_i32 = arith.constant 0 : i32
    %c0_i32_0 = arith.constant 0 : i32
    %c0_i32_1 = arith.constant 0 : i32
    return %arg0, %c0_i32, %c0_i32_0 : i32, i32, i32
  }
  func.func @transform_2(%arg0: i32, %arg1: i32) -> (i32, i32, i32) {
    %c0_i32 = arith.constant 0 : i32
    %c0_i32_0 = arith.constant 0 : i32
    %c0_i32_1 = arith.constant 0 : i32
    return %arg0, %c0_i32, %c0_i32_0 : i32, i32, i32
  }
  func.func @transform_3(%arg0: i32, %arg1: i32) -> (i32, i32) {
    %c0_i32 = arith.constant 0 : i32
    %c0_i32_0 = arith.constant 0 : i32
    %c0_i32_1 = arith.constant 0 : i32
    return %c0_i32, %c0_i32_0 : i32, i32
  }
  func.func @transform_4(%arg0: i32, %arg1: i32) -> (i32, i32) {
    %c0_i32 = arith.constant 0 : i32
    %c0_i32_0 = arith.constant 0 : i32
    %c0_i32_1 = arith.constant 0 : i32
    return %c0_i32, %c0_i32_0 : i32, i32
  }
  func.func @transform_5(%arg0: i32, %arg1: i32) -> (i32, i32) {
    %c0_i32 = arith.constant 0 : i32
    %c0_i32_0 = arith.constant 0 : i32
    %c0_i32_1 = arith.constant 0 : i32
    return %c0_i32, %c0_i32_0 : i32, i32
  }
  func.func @transform_6(%arg0: i32, %arg1: i32) -> (i32, i32) {
    %c0_i32 = arith.constant 0 : i32
    %c0_i32_0 = arith.constant 0 : i32
    %c0_i32_1 = arith.constant 0 : i32
    return %c0_i32, %c0_i32_0 : i32, i32
  }
  func.func @transform_7(%arg0: i32, %arg1: i32) -> (i32, i32) {
    %c0_i32 = arith.constant 0 : i32
    %c0_i32_0 = arith.constant 0 : i32
    %c0_i32_1 = arith.constant 0 : i32
    return %c0_i32, %c0_i32_0 : i32, i32
  }
  func.func @transform_8(%arg0: i32, %arg1: i32) -> (i32, i32) {
    %c0_i32 = arith.constant 0 : i32
    %c0_i32_0 = arith.constant 0 : i32
    %c0_i32_1 = arith.constant 0 : i32
    return %c0_i32, %c0_i32_0 : i32, i32
  }
  func.func @transform_9(%arg0: i32, %arg1: i32) -> (i32, i32) {
    %c0_i32 = arith.constant 0 : i32
    %c0_i32_0 = arith.constant 0 : i32
    %c0_i32_1 = arith.constant 0 : i32
    return %c0_i32, %c0_i32_0 : i32, i32
  }
  func.func @transform_10(%arg0: i32, %arg1: i32) -> (i32, i32) {
    %c0_i32 = arith.constant 0 : i32
    %c0_i32_0 = arith.constant 0 : i32
    %c0_i32_1 = arith.constant 0 : i32
    return %c0_i32, %c0_i32_0 : i32, i32
  }
  func.func @transform_11(%arg0: i32, %arg1: i32) -> (i32, i32, i32) {
    %c0_i32 = arith.constant 0 : i32
    %c0_i32_0 = arith.constant 0 : i32
    return %arg0, %arg1, %c0_i32 : i32, i32, i32
  }
}

module attributes {stable_mosaic.version = 11 : i64} {
  func.func @_ffn_kernel(%arg0: i32, %arg1: memref<16x32xbf16, #tpu.memory_space<vmem>>, %arg2: memref<32x128xbf16, #tpu.memory_space<vmem>>, %arg3: memref<1x128xf32, #tpu.memory_space<vmem>>, %arg4: memref<128x32xbf16, #tpu.memory_space<vmem>>, %arg5: memref<1x32xf32, #tpu.memory_space<vmem>>, %arg6: memref<1x32xf32, #tpu.memory_space<vmem>>, %arg7: memref<1x32xf32, #tpu.memory_space<vmem>>, %arg8: memref<16x32xf32, #tpu.memory_space<vmem>>) attributes {dimension_semantics = [#tpu.dimension_semantics<parallel>], iteration_bounds = array<i64: 1>, scalar_prefetch = 0 : i64, scratch_operands = 0 : i64, tpu.core_type = #tpu.core_type<tc>, window_params = [{transform_indices = @transform_0, window_bounds = array<i64: 16, 32>}, {pipeline_mode = #tpu.pipeline_mode<synchronous>, transform_indices = @transform_1, window_bounds = array<i64: 32, 128>}, {pipeline_mode = #tpu.pipeline_mode<synchronous>, transform_indices = @transform_2, window_bounds = array<i64: 1, 128>}, {pipeline_mode = #tpu.pipeline_mode<synchronous>, transform_indices = @transform_3, window_bounds = array<i64: 128, 32>}, {pipeline_mode = #tpu.pipeline_mode<synchronous>, transform_indices = @transform_4, window_bounds = array<i64: 1, 32>}, {pipeline_mode = #tpu.pipeline_mode<synchronous>, transform_indices = @transform_5, window_bounds = array<i64: 1, 32>}, {pipeline_mode = #tpu.pipeline_mode<synchronous>, transform_indices = @transform_6, window_bounds = array<i64: 1, 32>}, {transform_indices = @transform_7, window_bounds = array<i64: 16, 32>}]} {
    %c0 = arith.constant 0 : index
    %c0_0 = arith.constant 0 : index
    %0 = vector.load %arg1[%c0, %c0_0] : memref<16x32xbf16, #tpu.memory_space<vmem>>, vector<16x32xbf16>
    %1 = arith.extf %0 : vector<16x32xbf16> to vector<16x32xf32>
    %c0_1 = arith.constant 0 : index
    %c0_2 = arith.constant 0 : index
    %2 = vector.load %arg1[%c0_1, %c0_2] : memref<16x32xbf16, #tpu.memory_space<vmem>>, vector<16x32xbf16>
    %c0_3 = arith.constant 0 : index
    %c0_4 = arith.constant 0 : index
    %3 = vector.load %arg2[%c0_3, %c0_4] : memref<32x128xbf16, #tpu.memory_space<vmem>>, vector<32x128xbf16>
    %cst = arith.constant dense<0.000000e+00> : vector<16x128xf32>
    %4 = tpu.matmul %2, %3, %cst {dimension_numbers = #tpu.dot_dimension_numbers<[1], [0], [0], [1], [0, 0, 1, 1], [], []>} : vector<16x32xbf16>, vector<32x128xbf16>, vector<16x128xf32> -> vector<16x128xf32>
    %c0_5 = arith.constant 0 : index
    %c0_6 = arith.constant 0 : index
    %5 = vector.load %arg3[%c0_5, %c0_6] : memref<1x128xf32, #tpu.memory_space<vmem>>, vector<1x128xf32>
    %6 = vector.broadcast %5 : vector<1x128xf32> to vector<16x128xf32>
    %7 = arith.addf %4, %6 : vector<16x128xf32>
    %cst_7 = arith.constant 0.000000e+00 : f32
    %8 = vector.broadcast %cst_7 : f32 to vector<16x128xf32>
    %9 = arith.maximumf %7, %8 : vector<16x128xf32>
    %10 = arith.truncf %9 : vector<16x128xf32> to vector<16x128xbf16>
    %c0_8 = arith.constant 0 : index
    %c0_9 = arith.constant 0 : index
    %11 = vector.load %arg4[%c0_8, %c0_9] : memref<128x32xbf16, #tpu.memory_space<vmem>>, vector<128x32xbf16>
    %cst_10 = arith.constant dense<0.000000e+00> : vector<16x32xf32>
    %12 = tpu.matmul %10, %11, %cst_10 {dimension_numbers = #tpu.dot_dimension_numbers<[1], [0], [0], [1], [0, 0, 1, 1], [], []>} : vector<16x128xbf16>, vector<128x32xbf16>, vector<16x32xf32> -> vector<16x32xf32>
    %c0_11 = arith.constant 0 : index
    %c0_12 = arith.constant 0 : index
    %13 = vector.load %arg5[%c0_11, %c0_12] : memref<1x32xf32, #tpu.memory_space<vmem>>, vector<1x32xf32>
    %14 = vector.broadcast %13 : vector<1x32xf32> to vector<16x32xf32>
    %15 = arith.addf %12, %14 : vector<16x32xf32>
    %16 = arith.addf %1, %15 : vector<16x32xf32>
    %cst_13 = arith.constant dense<0.000000e+00> : vector<16xf32>
    %17 = vector.multi_reduction <add>, %16, %cst_13 [1] : vector<16x32xf32> to vector<16xf32>
    %18 = vector.shape_cast %17 : vector<16xf32> to vector<16x1xf32>
    %cst_14 = arith.constant 3.200000e+01 : f32
    %19 = vector.broadcast %cst_14 : f32 to vector<16x1xf32>
    %20 = arith.divf %18, %19 : vector<16x1xf32>
    %21 = vector.broadcast %20 : vector<16x1xf32> to vector<16x32xf32>
    %22 = arith.subf %16, %21 : vector<16x32xf32>
    %23 = arith.mulf %22, %22 : vector<16x32xf32>
    %cst_15 = arith.constant dense<0.000000e+00> : vector<16xf32>
    %24 = vector.multi_reduction <add>, %23, %cst_15 [1] : vector<16x32xf32> to vector<16xf32>
    %25 = vector.shape_cast %24 : vector<16xf32> to vector<16x1xf32>
    %cst_16 = arith.constant 3.200000e+01 : f32
    %26 = vector.broadcast %cst_16 : f32 to vector<16x1xf32>
    %27 = arith.divf %25, %26 : vector<16x1xf32>
    %28 = vector.broadcast %20 : vector<16x1xf32> to vector<16x32xf32>
    %29 = arith.subf %16, %28 : vector<16x32xf32>
    %cst_17 = arith.constant 9.99999974E-6 : f32
    %30 = vector.broadcast %cst_17 : f32 to vector<16x1xf32>
    %31 = arith.addf %27, %30 : vector<16x1xf32>
    %32 = math.rsqrt %31 : vector<16x1xf32>
    %33 = vector.broadcast %32 : vector<16x1xf32> to vector<16x32xf32>
    %34 = arith.mulf %29, %33 : vector<16x32xf32>
    %c0_18 = arith.constant 0 : index
    %c0_19 = arith.constant 0 : index
    %35 = vector.load %arg6[%c0_18, %c0_19] : memref<1x32xf32, #tpu.memory_space<vmem>>, vector<1x32xf32>
    %36 = vector.broadcast %35 : vector<1x32xf32> to vector<16x32xf32>
    %37 = arith.mulf %34, %36 : vector<16x32xf32>
    %c0_20 = arith.constant 0 : index
    %c0_21 = arith.constant 0 : index
    %38 = vector.load %arg7[%c0_20, %c0_21] : memref<1x32xf32, #tpu.memory_space<vmem>>, vector<1x32xf32>
    %39 = vector.broadcast %38 : vector<1x32xf32> to vector<16x32xf32>
    %40 = arith.addf %37, %39 : vector<16x32xf32>
    %c0_22 = arith.constant 0 : index
    %c0_23 = arith.constant 0 : index
    %41 = vector.load %arg8[%c0_22, %c0_23] : memref<16x32xf32, #tpu.memory_space<vmem>>, vector<16x32xf32>
    tpu.vector_store %arg8[%c0_22, %c0_23], %40 {strides = array<i32>} : memref<16x32xf32, #tpu.memory_space<vmem>>, vector<16x32xf32>,
    return
  }
  func.func @transform_0(%arg0: i32) -> (i32, i32) {
    %c0_i32 = arith.constant 0 : i32
    %c0_i32_0 = arith.constant 0 : i32
    return %arg0, %c0_i32 : i32, i32
  }
  func.func @transform_1(%arg0: i32) -> (i32, i32) {
    %c0_i32 = arith.constant 0 : i32
    %c0_i32_0 = arith.constant 0 : i32
    %c0_i32_1 = arith.constant 0 : i32
    return %c0_i32, %c0_i32_0 : i32, i32
  }
  func.func @transform_2(%arg0: i32) -> (i32, i32) {
    %c0_i32 = arith.constant 0 : i32
    %c0_i32_0 = arith.constant 0 : i32
    %c0_i32_1 = arith.constant 0 : i32
    return %c0_i32, %c0_i32_0 : i32, i32
  }
  func.func @transform_3(%arg0: i32) -> (i32, i32) {
    %c0_i32 = arith.constant 0 : i32
    %c0_i32_0 = arith.constant 0 : i32
    %c0_i32_1 = arith.constant 0 : i32
    return %c0_i32, %c0_i32_0 : i32, i32
  }
  func.func @transform_4(%arg0: i32) -> (i32, i32) {
    %c0_i32 = arith.constant 0 : i32
    %c0_i32_0 = arith.constant 0 : i32
    %c0_i32_1 = arith.constant 0 : i32
    return %c0_i32, %c0_i32_0 : i32, i32
  }
  func.func @transform_5(%arg0: i32) -> (i32, i32) {
    %c0_i32 = arith.constant 0 : i32
    %c0_i32_0 = arith.constant 0 : i32
    %c0_i32_1 = arith.constant 0 : i32
    return %c0_i32, %c0_i32_0 : i32, i32
  }
  func.func @transform_6(%arg0: i32) -> (i32, i32) {
    %c0_i32 = arith.constant 0 : i32
    %c0_i32_0 = arith.constant 0 : i32
    %c0_i32_1 = arith.constant 0 : i32
    return %c0_i32, %c0_i32_0 : i32, i32
  }
  func.func @transform_7(%arg0: i32) -> (i32, i32) {
    %c0_i32 = arith.constant 0 : i32
    %c0_i32_0 = arith.constant 0 : i32
    return %arg0, %c0_i32 : i32, i32
  }
}

</mosaic_0001>

<llo_original>
// kernel: _lambda_.11
$region0: #{_lambda_.11}
  #allocation0 [shape = 'u32[]', space=smem, size = 0x4, offset = 0x4, fixed_abs, tag = 'smem constant byte address 0x4 - core index']
  #allocation1 [shape = 'u32[72,128]{1,0:T(1,128)}', space=vmem, size = 0x9000, scoped, tag = 'internal scratch']
  %s0 = inlined_call_operand.vmem [shape: bf16[16,32], index: 0, kind: input, shape index: {}]
  %s1 = inlined_call_operand.vmem [shape: bf16[32,128], index: 1, kind: input, shape index: {}]
  %s2 = inlined_call_operand.vmem [shape: f32[1,128], index: 2, kind: input, shape index: {}]
  %s3 = inlined_call_operand.vmem [shape: bf16[128,32], index: 3, kind: input, shape index: {}]
  %s4 = inlined_call_operand.vmem [shape: f32[1,32], index: 4, kind: input, shape index: {}]
  %s5 = inlined_call_operand.vmem [shape: f32[1,32], index: 5, kind: input, shape index: {}]
  %s6 = inlined_call_operand.vmem [shape: f32[1,32], index: 6, kind: input, shape index: {}]
  %s7 = inlined_call_operand.vmem [shape: bf16[16,32], index: 7, kind: output, shape index: {}]
  %s8 = sld [smem:[#allocation0]]
  $region38: #{_lambda_.11} parent=0
    _
  %s10 = ssub.s32 1, %s8
  %s11 = scalar_select 0, %s10, %s8
  // Predicated region
  $region2: #{_lambda_.11} parent=0 // pred_check
    _
  $region3: #{_lambda_.11} parent=0 // pred_check_branch
    %13 = sbr.rel (0) target = $region5
  $region4: #{_lambda_.11} parent=0 // pred_region
    _
  $region5: #{_lambda_.11} parent=0 // pred_fallthru
    _
  // Predicated region
  $region6: #{_lambda_.11} parent=0 // pred_check
    _
  $region7: #{_lambda_.11} parent=0 // pred_check_branch
    %15 = sbr.rel (0) target = $region9
  $region8: #{_lambda_.11} parent=0 // pred_region
    _
  $region9: #{_lambda_.11} parent=0 // pred_fallthru
    _
  // Predicated region
  $region10: #{_lambda_.11} parent=0 // pred_check
    _
  $region11: #{_lambda_.11} parent=0 // pred_check_branch
    %17 = sbr.rel (0) target = $region13
  $region12: #{_lambda_.11} parent=0 // pred_region
    _
  $region13: #{_lambda_.11} parent=0 // pred_fallthru
    _
  // Predicated region
  $region14: #{_lambda_.11} parent=0 // pred_check
    _
  $region15: #{_lambda_.11} parent=0 // pred_check_branch
    %19 = sbr.rel (0) target = $region17
  $region16: #{_lambda_.11} parent=0 // pred_region
    _
  $region17: #{_lambda_.11} parent=0 // pred_fallthru
    _
  // Predicated region
  $region18: #{_lambda_.11} parent=0 // pred_check
    _
  $region19: #{_lambda_.11} parent=0 // pred_check_branch
    %21 = sbr.rel (0) target = $region21
  $region20: #{_lambda_.11} parent=0 // pred_region
    _
  $region21: #{_lambda_.11} parent=0 // pred_fallthru
    _
  // Predicated region
  $region22: #{_lambda_.11} parent=0 // pred_check
    _
  $region23: #{_lambda_.11} parent=0 // pred_check_branch
    %23 = sbr.rel (0) target = $region25
  $region24: #{_lambda_.11} parent=0 // pred_region
    _
  $region25: #{_lambda_.11} parent=0 // pred_fallthru
    _
  // Predicated region
  $region26: #{_lambda_.11} parent=0 // pred_check
    _
  $region27: #{_lambda_.11} parent=0 // pred_check_branch
    %25 = sbr.rel (0) target = $region29
  $region28: #{_lambda_.11} parent=0 // pred_region
    _
  $region29: #{_lambda_.11} parent=0 // pred_fallthru
    _
  %v27 = vld [vmem:[%s0] sm:$0xf]
  %v28 = vld [vmem:[%s0 + $0x4] sm:$0xf]
  %v29 = vunpack.c.l.bf16 %v27
  %v30 = vunpack.c.l.bf16 %v28
  %v31 = vld [vmem:[%s1] sm:$0xf]
  %v32 = vld [vmem:[%s1 + $0x4] sm:$0xf]
  %v33 = vld [vmem:[%s1 + $0x8] sm:$0xf]
  %v34 = vld [vmem:[%s1 + $0xc] sm:$0xf]
  %v35 = vld [vmem:[%s2] sm:$0x1]
  %v37 = vperm.slane %v35, 0
  %v41 = vunpack.c.l.b16 %v27
  %v42 = vunpack.c.l.b16 %v28
  %v43 = vpack.c.b16 %v42, %v41
  %v48 = vunpack.c.l.b16 %v31
  %v49 = vunpack.c.l.b16 %v32
  %v50 = vunpack.c.l.b16 %v33
  %v51 = vunpack.c.l.b16 %v34
  %v52 = vpack.c.b16 %v49, %v48
  %v53 = vpack.c.b16 %v51, %v50
  %vm56 = vcmask 261120
  %v58 = vsel %vm56, %v43, 0
  %60 = vmatpush.bf16.msra.mxu0 0
  %61 = vmatpush.bf16.msra.mxu0 0
  %62 = vmatpush.bf16.msra.mxu0 0
  %63 = vmatpush.bf16.msra.mxu0 0
  %64 = vmatpush.bf16.msra.mxu0 0
  %65 = vmatpush.bf16.msra.mxu0 0
  %66 = vmatpush.bf16.msra.mxu0 %v53
  %67 = vmatpush.bf16.msra.mxu0 %v52
  %68 = vmatmul.bf16.gmra.mxu0 %v58
  %v69 = vpop.f32.mrf.mxu0
  %v70 = vadd.f32 %v37, %v69
  %v71 = vpop.f32.mrf.mxu0
  %v72 = vadd.f32 %v37, %v71
  %73 = vdwg.mxu0
  %v74 = vmax.f32 %v70, 0.0
  %v75 = vmax.f32 %v72, 0.0
  %v76 = vpack.c.bf16 %v75, %v74
  %v77 = vld [vmem:[%s3] sm:$0xf]
  %v78 = vld [vmem:[%s3 + $0x4] sm:$0xf]
  %v79 = vld [vmem:[%s3 + $0x8] sm:$0xf]
  %v80 = vld [vmem:[%s3 + $0xc] sm:$0xf]
  %v81 = vld [vmem:[%s3 + $0x10] sm:$0xf]
  %v82 = vld [vmem:[%s3 + $0x14] sm:$0xf]
  %v83 = vld [vmem:[%s3 + $0x18] sm:$0xf]
  %v84 = vld [vmem:[%s3 + $0x1c] sm:$0xf]
  %v85 = vld [vmem:[%s3 + $0x20] sm:$0xf]
  %v86 = vld [vmem:[%s3 + $0x24] sm:$0xf]
  %v87 = vld [vmem:[%s3 + $0x28] sm:$0xf]
  %v88 = vld [vmem:[%s3 + $0x2c] sm:$0xf]
  %v89 = vld [vmem:[%s3 + $0x30] sm:$0xf]
  %v90 = vld [vmem:[%s3 + $0x34] sm:$0xf]
  %v91 = vld [vmem:[%s3 + $0x38] sm:$0xf]
  %v92 = vld [vmem:[%s3 + $0x3c] sm:$0xf]
  %v93 = vld [vmem:[%s4] sm:$0x1]
  %v95 = vperm.slane %v93, 0
  %v113 = vunpack.c.l.b16 %v77
  %v114 = vunpack.c.l.b16 %v78
  %v115 = vunpack.c.l.b16 %v79
  %v116 = vunpack.c.l.b16 %v80
  %v117 = vunpack.c.l.b16 %v81
  %v118 = vunpack.c.l.b16 %v82
  %v119 = vunpack.c.l.b16 %v83
  %v120 = vunpack.c.l.b16 %v84
  %v121 = vunpack.c.l.b16 %v85
  %v122 = vunpack.c.l.b16 %v86
  %v123 = vunpack.c.l.b16 %v87
  %v124 = vunpack.c.l.b16 %v88
  %v125 = vunpack.c.l.b16 %v89
  %v126 = vunpack.c.l.b16 %v90
  %v127 = vunpack.c.l.b16 %v91
  %v128 = vunpack.c.l.b16 %v92
  %v129 = vpack.c.b16 %v114, %v113
  %v130 = vpack.c.b16 %v116, %v115
  %v131 = vpack.c.b16 %v118, %v117
  %v132 = vpack.c.b16 %v120, %v119
  %v133 = vpack.c.b16 %v122, %v121
  %v134 = vpack.c.b16 %v124, %v123
  %v135 = vpack.c.b16 %v126, %v125
  %v136 = vpack.c.b16 %v128, %v127
  %145 = vmatpush.bf16.msra.mxu0 %v136
  %146 = vmatpush.bf16.msra.mxu0 %v135
  %147 = vmatpush.bf16.msra.mxu0 %v134
  %148 = vmatpush.bf16.msra.mxu0 %v133
  %149 = vmatpush.bf16.msra.mxu0 %v132
  %150 = vmatpush.bf16.msra.mxu0 %v131
  %151 = vmatpush.bf16.msra.mxu0 %v130
  %152 = vmatpush.bf16.msra.mxu0 %v129
  %153 = vmatmul.bf16.gmra.mxu0 %v76
  %v154 = vpop.f32.mrf.mxu0
  %v155 = vadd.f32 %v95, %v154
  %v156 = vpop.f32.mrf.mxu0
  %v157 = vadd.f32 %v95, %v156
  %158 = vdwg.mxu0
  %v159 = vadd.f32 %v29, %v155
  %v160 = vadd.f32 %v30, %v157
  %v161 = vsel %vm56, %v159, 0.0
  %162 = vadd.xlane.f32.xlu0 %v161
  %v163 = vpop.xlane.xlu0 %162
  %v164 = vsel %vm56, %v160, 0.0
  %165 = vadd.xlane.f32.xlu0 %v164
  %v166 = vpop.xlane.xlu0 %165
  %v167 = vrcp.pop 32.0
  %v168 = vmul.f32 32.0, %v167
  %v169 = vsub.f32 1.0, %v168
  %v170 = vmul.f32 %v167, %v169
  %v171 = vadd.f32 %v167, %v170
  %vm172 = vweird.f32 %v167
  %v173 = vsel %vm172, %v167, %v171
  %v174 = vmul.f32 %v163, %v173
  %v175 = vmul.f32 %v166, %v173
  %v176 = vsub.f32 %v159, %v174
  %v177 = vsub.f32 %v160, %v175
  %v178 = vmul.f32 %v176, %v176
  %v179 = vmul.f32 %v177, %v177
  %v180 = vsel %vm56, %v178, 0.0
  %181 = vadd.xlane.f32.xlu0 %v180
  %v182 = vpop.xlane.xlu0 %181
  %v183 = vsel %vm56, %v179, 0.0
  %184 = vadd.xlane.f32.xlu0 %v183
  %v185 = vpop.xlane.xlu0 %184
  %v186 = vmul.f32 %v182, %v173
  %v187 = vmul.f32 %v185, %v173
  %v188 = vadd.f32 %v186, 1e-05
  %v189 = vadd.f32 %v187, 1e-05
  %v190 = vrsqrt.pop %v188
  %v191 = vmul.f32 %v190, %v188
  %v192 = vmul.f32 %v191, %v190
  %v193 = vmul.f32 0.5, %v192
  %v194 = vsub.f32 1.5, %v193
  %v195 = vmul.f32 %v190, %v194
  %vm196 = vweird.f32 %v188
  %vm197 = vweird.f32 %v190
  %vm198 = vmor %vm196, %vm197
  %v199 = vsel %vm198, %v190, %v195
  %v200 = vrsqrt.pop %v189
  %v201 = vmul.f32 %v200, %v189
  %v202 = vmul.f32 %v201, %v200
  %v203 = vmul.f32 0.5, %v202
  %v204 = vsub.f32 1.5, %v203
  %v205 = vmul.f32 %v200, %v204
  %vm206 = vweird.f32 %v189
  %vm207 = vweird.f32 %v200
  %vm208 = vmor %vm206, %vm207
  %v209 = vsel %vm208, %v200, %v205
  %v210 = vmul.f32 %v176, %v199
  %v211 = vmul.f32 %v177, %v209
  %v212 = vld [vmem:[%s5] sm:$0x1]
  %v214 = vperm.slane %v212, 0
  %v216 = vmul.f32 %v210, %v214
  %v217 = vmul.f32 %v211, %v214
  %v218 = vld [vmem:[%s6] sm:$0x1]
  %v220 = vperm.slane %v218, 0
  %v222 = vadd.f32 %v216, %v220
  %v223 = vadd.f32 %v217, %v220
  %v224 = vpack.c.bf16 %v222, %v222
  %v225 = vpack.c.bf16 %v223, %v223
  %vm226 = vcmask 257024
  %227 = vst.msk [vmem:[%s7] sm:$0xf] %vm226, %v224
  %228 = vst.msk [vmem:[%s7 + $0x4] sm:$0xf] %vm226, %v225
  // Predicated region
  $region30: #{_lambda_.11} parent=0 // pred_check
    _
  $region31: #{_lambda_.11} parent=0 // pred_check_branch
    %230 = sbr.rel (0) target = $region33
  $region32: #{_lambda_.11} parent=0 // pred_region
    _
  $region33: #{_lambda_.11} parent=0 // pred_fallthru
    _
  // Predicated region
  $region34: #{_lambda_.11} parent=0 // pred_check
    _
  $region35: #{_lambda_.11} parent=0 // pred_check_branch
    %232 = sbr.rel (0) target = $region37
  $region36: #{_lambda_.11} parent=0 // pred_region
    _
  $region37: #{_lambda_.11} parent=0 // pred_fallthru
    _

// kernel: _lambda_.10
$region0: #{_lambda_.10}
  #allocation0 [shape = 'u32[]', space=smem, size = 0x4, offset = 0x4, fixed_abs, tag = 'smem constant byte address 0x4 - core index']
  #allocation1 [shape = 'u32[72,128]{1,0:T(1,128)}', space=vmem, size = 0x9000, scoped, tag = 'internal scratch']
  %s0 = inlined_call_operand.vmem [shape: f32[2,8,32], index: 0, kind: input, shape index: {}, may-alias: {0,1}]
  %s1 = inlined_call_operand.vmem [shape: f32[2,8,32], index: 1, kind: input, shape index: {}, may-alias: {0,1}]
  %s2 = inlined_call_operand.vmem [shape: f32[2,1,8], index: 2, kind: input, shape index: {}]
  %s3 = inlined_call_operand.vmem [shape: bf16[32,32], index: 3, kind: input, shape index: {}]
  %s4 = inlined_call_operand.vmem [shape: f32[1,32], index: 4, kind: input, shape index: {}]
  %s5 = inlined_call_operand.vmem [shape: bf16[32,64], index: 5, kind: input, shape index: {}]
  %s6 = inlined_call_operand.vmem [shape: f32[1,64], index: 6, kind: input, shape index: {}]
  %s7 = inlined_call_operand.vmem [shape: bf16[32,32], index: 7, kind: input, shape index: {}]
  %s8 = inlined_call_operand.vmem [shape: f32[1,32], index: 8, kind: input, shape index: {}]
  %s9 = inlined_call_operand.vmem [shape: f32[1,32], index: 9, kind: input, shape index: {}]
  %s10 = inlined_call_operand.vmem [shape: f32[1,32], index: 10, kind: input, shape index: {}]
  %s11 = inlined_call_operand.vmem [shape: bf16[2,8,32], index: 11, kind: output, shape index: {}]
  %s12 = sld [smem:[#allocation0]]
  $region77: #{_lambda_.10} parent=0
    _
  %s14 = ssub.s32 1, %s12
  %s15 = scalar_select 0, %s14, %s12
  loop: start=0, step=1, limit=4
  $region2: #{_lambda_.10} parent=0 // loop_pre_header
    _
  $region3: #{_lambda_.10} parent=0 // loop_header
    %s17 = sphi 0, %s21
    %p18 = scmp.ge.s32.totalorder %s17, 4
    %s24 = sphi 0, %s36
    %s25 = sphi 0, %s32
    %s26 = sphi 0, %s24
    %s27 = sphi 0, %s25
    %s28 = sphi 0, %s26
    %s29 = sphi 0, %s27
    %s41 = sphi 0, %s43
    %s44 = sphi 0, %s41
    %s45 = sphi 0, %s44
    %s61 = sphi 0, %s45
    %s67 = sphi 0, %s69
    %s70 = sphi 0, %s67
    %s71 = sphi 0, %s70
    %s87 = sphi 0, %s71
    %s93 = sphi 0, %s95
    %s96 = sphi 0, %s93
    %s97 = sphi 0, %s96
    %s113 = sphi 0, %s97
    %s117 = sphi 0, %s117
    %s119 = sphi 0, %s117
    %s120 = sphi 0, %s119
    %s134 = sphi 0, %s120
    %s138 = sphi 0, %s138
    %s140 = sphi 0, %s138
    %s141 = sphi 0, %s140
    %s155 = sphi 0, %s141
    %s159 = sphi 0, %s159
    %s161 = sphi 0, %s159
    %s162 = sphi 0, %s161
    %s176 = sphi 0, %s162
    %s180 = sphi 0, %s180
    %s182 = sphi 0, %s180
    %s183 = sphi 0, %s182
    %s197 = sphi 0, %s183
    %s201 = sphi 0, %s201
    %s203 = sphi 0, %s201
    %s204 = sphi 0, %s203
    %s218 = sphi 0, %s204
    %s222 = sphi 0, %s222
    %s224 = sphi 0, %s222
    %s225 = sphi 0, %s224
    %s239 = sphi 0, %s225
    %s243 = sphi 0, %s243
    %s245 = sphi 0, %s243
    %s246 = sphi 0, %s245
    %s260 = sphi 0, %s246
    %s264 = sphi 0, %s264
    %s266 = sphi 0, %s264
    %s267 = sphi 0, %s266
    %s281 = sphi 0, %s267
    %s289 = sphi 0, %s291
    %s292 = sphi 0, %s289
    %s293 = sphi 0, %s292
    %s309 = sphi 0, %s293
  $region4: #{_lambda_.10} parent=0 // loop_header_branch
    %20 = sbr.rel (%p18) target = $region8
  $region5: #{_lambda_.10} parent=0 // loop_body
    %s22 = ssub.s32 %s17, 1
    %s23 = ssub.s32 %s17, 2
    %s30 = sadd.s32 1, %s25
    %p31 = scmp.ge.s32.totalorder %s30, 1
    %s32 = scalar_select %p31, 0, %s30
    %s33 = sadd.s32 1, %s24
    %s34 = scalar_select %p31, %s33, %s24
    %p35 = scmp.ge.s32.totalorder %s34, 2
    %s36 = scalar_select %p35, 0, %s34
    %s37 = ssub.s32 %s24, %s36
    %s38 = ssub.s32 %s25, %s32
    %s39 = sor.u32 %s37, %s38
    %p40 = scmp.eq.s32.totalorder %s39, 0
    %s42 = sadd.s32 %s41, 1
    %s43 = scalar_select %p40, %s41, %s42
    %p46 = pneg %p40
    %p47 = scmp.eq.s32.totalorder %s17, 1
    %p48 = por %p46, %p47
    %p49 = scmp.ne.s32.totalorder %s41, %s44
    %p50 = scmp.eq.s32.totalorder %s17, 0
    %p51 = por %p49, %p50
    %p52 = scmp.ne.s32.totalorder %s41, %s44
    %p53 = scmp.eq.s32.totalorder %s22, 1
    %p54 = por %p52, %p53
    %p55 = scmp.ne.s32.totalorder %s44, %s45
    %p56 = scmp.eq.s32.totalorder %s22, 0
    %p57 = por %p55, %p56
    %p58 = scmp.ne.s32.totalorder %s44, %s45
    %p59 = scmp.eq.s32.totalorder %s23, 1
    %p60 = por %p58, %p59
    %p62 = scmp.ne.s32.totalorder %s45, %s61
    %p63 = scmp.eq.s32.totalorder %s23, 0
    %p64 = por %p62, %p63
    %s65 = ssub.s32 %s24, %s36
    %p66 = scmp.eq.s32.totalorder %s65, 0
    %s68 = sadd.s32 %s67, 1
    %s69 = scalar_select %p66, %s67, %s68
    %p72 = pneg %p66
    %p73 = scmp.eq.s32.totalorder %s17, 1
    %p74 = por %p72, %p73
    %p75 = scmp.ne.s32.totalorder %s67, %s70
    %p76 = scmp.eq.s32.totalorder %s17, 0
    %p77 = por %p75, %p76
    %p78 = scmp.ne.s32.totalorder %s67, %s70
    %p79 = scmp.eq.s32.totalorder %s22, 1
    %p80 = por %p78, %p79
    %p81 = scmp.ne.s32.totalorder %s70, %s71
    %p82 = scmp.eq.s32.totalorder %s22, 0
    %p83 = por %p81, %p82
    %p84 = scmp.ne.s32.totalorder %s70, %s71
    %p85 = scmp.eq.s32.totalorder %s23, 1
    %p86 = por %p84, %p85
    %p88 = scmp.ne.s32.totalorder %s71, %s87
    %p89 = scmp.eq.s32.totalorder %s23, 0
    %p90 = por %p88, %p89
    %s91 = ssub.s32 %s24, %s36
    %p92 = scmp.eq.s32.totalorder %s91, 0
    %s94 = sadd.s32 %s93, 1
    %s95 = scalar_select %p92, %s93, %s94
    %p98 = pneg %p92
    %p99 = scmp.eq.s32.totalorder %s17, 1
    %p100 = por %p98, %p99
    %p101 = scmp.ne.s32.totalorder %s93, %s96
    %p102 = scmp.eq.s32.totalorder %s17, 0
    %p103 = por %p101, %p102
    %p104 = scmp.ne.s32.totalorder %s93, %s96
    %p105 = scmp.eq.s32.totalorder %s22, 1
    %p106 = por %p104, %p105
    %p107 = scmp.ne.s32.totalorder %s96, %s97
    %p108 = scmp.eq.s32.totalorder %s22, 0
    %p109 = por %p107, %p108
    %p110 = scmp.ne.s32.totalorder %s96, %s97
    %p111 = scmp.eq.s32.totalorder %s23, 1
    %p112 = por %p110, %p111
    %p114 = scmp.ne.s32.totalorder %s97, %s113
    %p115 = scmp.eq.s32.totalorder %s23, 0
    %p116 = por %p114, %p115
    %s118 = sadd.s32 %s117, 1
    %p121 = scmp.eq.s32.totalorder %s17, 1
    %p122 = scmp.ne.s32.totalorder %s117, %s119
    %p123 = scmp.eq.s32.totalorder %s17, 0
    %p124 = por %p122, %p123
    %p125 = scmp.ne.s32.totalorder %s117, %s119
    %p126 = scmp.eq.s32.totalorder %s22, 1
    %p127 = por %p125, %p126
    %p128 = scmp.ne.s32.totalorder %s119, %s120
    %p129 = scmp.eq.s32.totalorder %s22, 0
    %p130 = por %p128, %p129
    %p131 = scmp.ne.s32.totalorder %s119, %s120
    %p132 = scmp.eq.s32.totalorder %s23, 1
    %p133 = por %p131, %p132
    %p135 = scmp.ne.s32.totalorder %s120, %s134
    %p136 = scmp.eq.s32.totalorder %s23, 0
    %p137 = por %p135, %p136
    %s139 = sadd.s32 %s138, 1
    %p142 = scmp.eq.s32.totalorder %s17, 1
    %p143 = scmp.ne.s32.totalorder %s138, %s140
    %p144 = scmp.eq.s32.totalorder %s17, 0
    %p145 = por %p143, %p144
    %p146 = scmp.ne.s32.totalorder %s138, %s140
    %p147 = scmp.eq.s32.totalorder %s22, 1
    %p148 = por %p146, %p147
    %p149 = scmp.ne.s32.totalorder %s140, %s141
    %p150 = scmp.eq.s32.totalorder %s22, 0
    %p151 = por %p149, %p150
    %p152 = scmp.ne.s32.totalorder %s140, %s141
    %p153 = scmp.eq.s32.totalorder %s23, 1
    %p154 = por %p152, %p153
    %p156 = scmp.ne.s32.totalorder %s141, %s155
    %p157 = scmp.eq.s32.totalorder %s23, 0
    %p158 = por %p156, %p157
    %s160 = sadd.s32 %s159, 1
    %p163 = scmp.eq.s32.totalorder %s17, 1
    %p164 = scmp.ne.s32.totalorder %s159, %s161
    %p165 = scmp.eq.s32.totalorder %s17, 0
    %p166 = por %p164, %p165
    %p167 = scmp.ne.s32.totalorder %s159, %s161
    %p168 = scmp.eq.s32.totalorder %s22, 1
    %p169 = por %p167, %p168
    %p170 = scmp.ne.s32.totalorder %s161, %s162
    %p171 = scmp.eq.s32.totalorder %s22, 0
    %p172 = por %p170, %p171
    %p173 = scmp.ne.s32.totalorder %s161, %s162
    %p174 = scmp.eq.s32.totalorder %s23, 1
    %p175 = por %p173, %p174
    %p177 = scmp.ne.s32.totalorder %s162, %s176
    %p178 = scmp.eq.s32.totalorder %s23, 0
    %p179 = por %p177, %p178
    %s181 = sadd.s32 %s180, 1
    %p184 = scmp.eq.s32.totalorder %s17, 1
    %p185 = scmp.ne.s32.totalorder %s180, %s182
    %p186 = scmp.eq.s32.totalorder %s17, 0
    %p187 = por %p185, %p186
    %p188 = scmp.ne.s32.totalorder %s180, %s182
    %p189 = scmp.eq.s32.totalorder %s22, 1
    %p190 = por %p188, %p189
    %p191 = scmp.ne.s32.totalorder %s182, %s183
    %p192 = scmp.eq.s32.totalorder %s22, 0
    %p193 = por %p191, %p192
    %p194 = scmp.ne.s32.totalorder %s182, %s183
    %p195 = scmp.eq.s32.totalorder %s23, 1
    %p196 = por %p194, %p195
    %p198 = scmp.ne.s32.totalorder %s183, %s197
    %p199 = scmp.eq.s32.totalorder %s23, 0
    %p200 = por %p198, %p199
    %s202 = sadd.s32 %s201, 1
    %p205 = scmp.eq.s32.totalorder %s17, 1
    %p206 = scmp.ne.s32.totalorder %s201, %s203
    %p207 = scmp.eq.s32.totalorder %s17, 0
    %p208 = por %p206, %p207
    %p209 = scmp.ne.s32.totalorder %s201, %s203
    %p210 = scmp.eq.s32.totalorder %s22, 1
    %p211 = por %p209, %p210
    %p212 = scmp.ne.s32.totalorder %s203, %s204
    %p213 = scmp.eq.s32.totalorder %s22, 0
    %p214 = por %p212, %p213
    %p215 = scmp.ne.s32.totalorder %s203, %s204
    %p216 = scmp.eq.s32.totalorder %s23, 1
    %p217 = por %p215, %p216
    %p219 = scmp.ne.s32.totalorder %s204, %s218
    %p220 = scmp.eq.s32.totalorder %s23, 0
    %p221 = por %p219, %p220
    %s223 = sadd.s32 %s222, 1
    %p226 = scmp.eq.s32.totalorder %s17, 1
    %p227 = scmp.ne.s32.totalorder %s222, %s224
    %p228 = scmp.eq.s32.totalorder %s17, 0
    %p229 = por %p227, %p228
    %p230 = scmp.ne.s32.totalorder %s222, %s224
    %p231 = scmp.eq.s32.totalorder %s22, 1
    %p232 = por %p230, %p231
    %p233 = scmp.ne.s32.totalorder %s224, %s225
    %p234 = scmp.eq.s32.totalorder %s22, 0
    %p235 = por %p233, %p234
    %p236 = scmp.ne.s32.totalorder %s224, %s225
    %p237 = scmp.eq.s32.totalorder %s23, 1
    %p238 = por %p236, %p237
    %p240 = scmp.ne.s32.totalorder %s225, %s239
    %p241 = scmp.eq.s32.totalorder %s23, 0
    %p242 = por %p240, %p241
    %s244 = sadd.s32 %s243, 1
    %p247 = scmp.eq.s32.totalorder %s17, 1
    %p248 = scmp.ne.s32.totalorder %s243, %s245
    %p249 = scmp.eq.s32.totalorder %s17, 0
    %p250 = por %p248, %p249
    %p251 = scmp.ne.s32.totalorder %s243, %s245
    %p252 = scmp.eq.s32.totalorder %s22, 1
    %p253 = por %p251, %p252
    %p254 = scmp.ne.s32.totalorder %s245, %s246
    %p255 = scmp.eq.s32.totalorder %s22, 0
    %p256 = por %p254, %p255
    %p257 = scmp.ne.s32.totalorder %s245, %s246
    %p258 = scmp.eq.s32.totalorder %s23, 1
    %p259 = por %p257, %p258
    %p261 = scmp.ne.s32.totalorder %s246, %s260
    %p262 = scmp.eq.s32.totalorder %s23, 0
    %p263 = por %p261, %p262
    %s265 = sadd.s32 %s264, 1
    %p268 = scmp.eq.s32.totalorder %s17, 1
    %p269 = scmp.ne.s32.totalorder %s264, %s266
    %p270 = scmp.eq.s32.totalorder %s17, 0
    %p271 = por %p269, %p270
    %p272 = scmp.ne.s32.totalorder %s264, %s266
    %p273 = scmp.eq.s32.totalorder %s22, 1
    %p274 = por %p272, %p273
    %p275 = scmp.ne.s32.totalorder %s266, %s267
    %p276 = scmp.eq.s32.totalorder %s22, 0
    %p277 = por %p275, %p276
    %p278 = scmp.ne.s32.totalorder %s266, %s267
    %p279 = scmp.eq.s32.totalorder %s23, 1
    %p280 = por %p278, %p279
    %p282 = scmp.ne.s32.totalorder %s267, %s281
    %p283 = scmp.eq.s32.totalorder %s23, 0
    %p284 = por %p282, %p283
    %s285 = ssub.s32 %s24, %s36
    %s286 = ssub.s32 %s25, %s32
    %s287 = sor.u32 %s285, %s286
    %p288 = scmp.eq.s32.totalorder %s287, 0
    %s290 = sadd.s32 %s289, 1
    %s291 = scalar_select %p288, %s289, %s290
    %p294 = pneg %p288
    %p295 = scmp.eq.s32.totalorder %s17, 1
    %p296 = por %p294, %p295
    %p297 = scmp.ne.s32.totalorder %s289, %s292
    %p298 = scmp.eq.s32.totalorder %s17, 0
    %p299 = por %p297, %p298
    %p300 = scmp.ne.s32.totalorder %s289, %s292
    %p301 = scmp.eq.s32.totalorder %s22, 1
    %p302 = por %p300, %p301
    %p303 = scmp.ne.s32.totalorder %s292, %s293
    %p304 = scmp.eq.s32.totalorder %s22, 0
    %p305 = por %p303, %p304
    %p306 = scmp.ne.s32.totalorder %s292, %s293
    %p307 = scmp.eq.s32.totalorder %s23, 1
    %p308 = por %p306, %p307
    %p310 = scmp.ne.s32.totalorder %s293, %s309
    %p311 = scmp.eq.s32.totalorder %s23, 0
    %p312 = por %p310, %p311
    %p313 = scmp.le.s32.totalorder 1, %s17
    %p314 = scmp.lt.s32.totalorder %s17, 3
    %p315 = pnand %p313, %p314
    %p316 = pneg %p315
    // Predicated region
    $region9: #{_lambda_.10} parent=5 // pred_check
      _
    $region10: #{_lambda_.10} parent=5 // pred_check_branch
      %318 = sbr.rel (%p315) target = $region12
    $region11: #{_lambda_.10} parent=5 // pred_region
      %s319 = ssub.s32 %s17, 1
      // Predicated region
      $region13: #{_lambda_.10} parent=11 // pred_check
        %p320 = pneg %p130
      $region14: #{_lambda_.10} parent=11 // pred_check_branch
        %322 = sbr.rel (%p320) target = $region16
      $region15: #{_lambda_.10} parent=11 // pred_region
        _
      $region16: #{_lambda_.10} parent=11 // pred_fallthru
        _
      // Predicated region
      $region17: #{_lambda_.10} parent=11 // pred_check
        %p323 = pneg %p151
      $region18: #{_lambda_.10} parent=11 // pred_check_branch
        %325 = sbr.rel (%p323) target = $region20
      $region19: #{_lambda_.10} parent=11 // pred_region
        _
      $region20: #{_lambda_.10} parent=11 // pred_fallthru
        _
      // Predicated region
      $region21: #{_lambda_.10} parent=11 // pred_check
        %p326 = pneg %p172
      $region22: #{_lambda_.10} parent=11 // pred_check_branch
        %328 = sbr.rel (%p326) target = $region24
      $region23: #{_lambda_.10} parent=11 // pred_region
        _
      $region24: #{_lambda_.10} parent=11 // pred_fallthru
        _
      // Predicated region
      $region25: #{_lambda_.10} parent=11 // pred_check
        %p329 = pneg %p193
      $region26: #{_lambda_.10} parent=11 // pred_check_branch
        %331 = sbr.rel (%p329) target = $region28
      $region27: #{_lambda_.10} parent=11 // pred_region
        _
      $region28: #{_lambda_.10} parent=11 // pred_fallthru
        _
      // Predicated region
      $region29: #{_lambda_.10} parent=11 // pred_check
        %p332 = pneg %p214
      $region30: #{_lambda_.10} parent=11 // pred_check_branch
        %334 = sbr.rel (%p332) target = $region32
      $region31: #{_lambda_.10} parent=11 // pred_region
        _
      $region32: #{_lambda_.10} parent=11 // pred_fallthru
        _
      // Predicated region
      $region33: #{_lambda_.10} parent=11 // pred_check
        %p335 = pneg %p235
      $region34: #{_lambda_.10} parent=11 // pred_check_branch
        %337 = sbr.rel (%p335) target = $region36
      $region35: #{_lambda_.10} parent=11 // pred_region
        _
      $region36: #{_lambda_.10} parent=11 // pred_fallthru
        _
      // Predicated region
      $region37: #{_lambda_.10} parent=11 // pred_check
        %p338 = pneg %p256
      $region38: #{_lambda_.10} parent=11 // pred_check_branch
        %340 = sbr.rel (%p338) target = $region40
      $region39: #{_lambda_.10} parent=11 // pred_region
        _
      $region40: #{_lambda_.10} parent=11 // pred_fallthru
        _
      // Predicated region
      $region41: #{_lambda_.10} parent=11 // pred_check
        %p341 = pneg %p277
      $region42: #{_lambda_.10} parent=11 // pred_check_branch
        %343 = sbr.rel (%p341) target = $region44
      $region43: #{_lambda_.10} parent=11 // pred_region
        _
      $region44: #{_lambda_.10} parent=11 // pred_fallthru
        _
    $region12: #{_lambda_.10} parent=5 // pred_fallthru
      _
    %p344 = scmp.lt.s32.totalorder %s17, 2
    // Predicated region
    $region45: #{_lambda_.10} parent=5 // pred_check
      %p345 = pneg %p344
    $region46: #{_lambda_.10} parent=5 // pred_check_branch
      %347 = sbr.rel (%p345) target = $region48
    $region47: #{_lambda_.10} parent=5 // pred_region
      // Predicated region
      $region49: #{_lambda_.10} parent=47 // pred_check
        %p348 = pneg %p51
      $region50: #{_lambda_.10} parent=47 // pred_check_branch
        %350 = sbr.rel (%p348) target = $region52
      $region51: #{_lambda_.10} parent=47 // pred_region
        %p351 = scmp.lt.s32.totalorder %s24, 1
        %s352 = scalar_select %p351, %s24, 1
        %p353 = scmp.lt.s32.totalorder %s25, 0
        %s354 = scalar_select %p353, %s25, 0
        %s355 = sadd.s32 %s354, %s352
        %s356 = smul.addr %s355, 8
        %s357 = scalar_lea.vmem %s0, %s356
      $region52: #{_lambda_.10} parent=47 // pred_fallthru
        _
      // Predicated region
      $region53: #{_lambda_.10} parent=47 // pred_check
        %p358 = pneg %p77
      $region54: #{_lambda_.10} parent=47 // pred_check_branch
        %360 = sbr.rel (%p358) target = $region56
      $region55: #{_lambda_.10} parent=47 // pred_region
        %p361 = scmp.lt.s32.totalorder %s24, 1
        %s362 = scalar_select %p361, %s24, 1
        %s363 = smul.addr %s362, 8
        %s364 = scalar_lea.vmem %s1, %s363
      $region56: #{_lambda_.10} parent=47 // pred_fallthru
        _
      // Predicated region
      $region57: #{_lambda_.10} parent=47 // pred_check
        %p365 = pneg %p103
      $region58: #{_lambda_.10} parent=47 // pred_check_branch
        %367 = sbr.rel (%p365) target = $region60
      $region59: #{_lambda_.10} parent=47 // pred_region
        %p368 = scmp.lt.s32.totalorder %s24, 1
        %s369 = scalar_select %p368, %s24, 1
        %s370 = scalar_lea.vmem %s2, %s369
      $region60: #{_lambda_.10} parent=47 // pred_fallthru
        _
    $region48: #{_lambda_.10} parent=5 // pred_fallthru
      _
    %p371 = scmp.le.s32.totalorder 1, %s17
    %p372 = scmp.lt.s32.totalorder %s17, 3
    %p373 = pnand %p371, %p372
    %p374 = pneg %p373
    // Predicated region
    $region61: #{_lambda_.10} parent=5 // pred_check
      _
    $region62: #{_lambda_.10} parent=5 // pred_check_branch
      %376 = sbr.rel (%p373) target = $region64
    $region63: #{_lambda_.10} parent=5 // pred_region
      %s377 = ssub.s32 %s17, 1
      %p378 = scmp.lt.s32.totalorder %s26, 1
      %s379 = scalar_select %p378, %s26, 1
      %p380 = scmp.lt.s32.totalorder %s27, 0
      %s381 = scalar_select %p380, %s27, 0
      %s382 = sadd.s32 %s381, %s379
      %s383 = smul.addr %s382, 8
      %s384 = scalar_lea.vmem %s0, %s383
      %p385 = pneg %p57
      %p386 = pneg %p54
      %p387 = scmp.lt.s32.totalorder %s26, 1
      %s388 = scalar_select %p387, %s26, 1
      %s389 = smul.addr %s388, 8
      %s390 = scalar_lea.vmem %s1, %s389
      %p391 = pneg %p83
      %p392 = pneg %p80
      %p393 = scmp.lt.s32.totalorder %s26, 1
      %s394 = scalar_select %p393, %s26, 1
      %s395 = scalar_lea.vmem %s2, %s394
      %p396 = pneg %p109
      %p397 = pneg %p106
      %p398 = pneg %p130
      %p399 = pneg %p127
      %p400 = pneg %p151
      %p401 = pneg %p148
      %p402 = pneg %p172
      %p403 = pneg %p169
      %p404 = pneg %p193
      %p405 = pneg %p190
      %p406 = pneg %p214
      %p407 = pneg %p211
      %p408 = pneg %p235
      %p409 = pneg %p232
      %p410 = pneg %p256
      %p411 = pneg %p253
      %p412 = pneg %p277
      %p413 = pneg %p274
      %p414 = pneg %p305
      %p415 = pneg %p302
      %p416 = scmp.lt.s32.totalorder %s26, 1
      %s417 = scalar_select %p416, %s26, 1
      %p418 = scmp.lt.s32.totalorder %s27, 0
      %s419 = scalar_select %p418, %s27, 0
      %s420 = sadd.s32 %s419, %s417
      %s421 = smul.addr %s420, 4
      %s422 = scalar_lea.vmem %s11, %s421
      %p423 = scmp.lt.s32.totalorder %s26, 1
      %s424 = scalar_select %p423, %s26, 1
      %p425 = scmp.lt.s32.totalorder %s27, 0
      %s426 = scalar_select %p425, %s27, 0
      %s427 = sadd.s32 %s426, %s424
      %s428 = smul.addr %s427, 8
      %s429 = scalar_lea.vmem %s0, %s428
      %p430 = scmp.lt.s32.totalorder %s26, 1
      %s431 = scalar_select %p430, %s26, 1
      %s432 = smul.addr %s431, 8
      %s433 = scalar_lea.vmem %s1, %s432
      %p434 = scmp.lt.s32.totalorder %s26, 1
      %s435 = scalar_select %p434, %s26, 1
      %s436 = scalar_lea.vmem %s2, %s435
      %p437 = scmp.lt.s32.totalorder %s26, 1
      %s438 = scalar_select %p437, %s26, 1
      %p439 = scmp.lt.s32.totalorder %s27, 0
      %s440 = scalar_select %p439, %s27, 0
      %s441 = sadd.s32 %s440, %s438
      %s442 = smul.addr %s441, 4
      %s443 = scalar_lea.vmem %s11, %s442
      %v445 = vld [vmem:[%s429] sm:$0xff]
      %v446 = vpack.c.bf16 %v445, %v445
      %v447 = vld [vmem:[%s3] sm:$0xf]
      %v448 = vld [vmem:[%s3 + $0x4] sm:$0xf]
      %v449 = vld [vmem:[%s3 + $0x8] sm:$0xf]
      %v450 = vld [vmem:[%s3 + $0xc] sm:$0xf]
      %v451 = vld [vmem:[%s4] sm:$0x1]
      %v453 = vperm.slane %v451, 0
      %v459 = vunpack.c.l.b16 %v447
      %v460 = vunpack.c.l.b16 %v448
      %v461 = vunpack.c.l.b16 %v449
      %v462 = vunpack.c.l.b16 %v450
      %v463 = vpack.c.b16 %v460, %v459
      %v464 = vpack.c.b16 %v462, %v461
      %vm467 = vcmask 261120
      %v469 = vsel %vm467, %v446, 0
      %471 = vmatpush.bf16.msra.mxu0 0
      %472 = vmatpush.bf16.msra.mxu0 0
      %473 = vmatpush.bf16.msra.mxu0 0
      %474 = vmatpush.bf16.msra.mxu0 0
      %475 = vmatpush.bf16.msra.mxu0 0
      %476 = vmatpush.bf16.msra.mxu0 0
      %477 = vmatpush.bf16.msra.mxu0 %v464
      %478 = vmatpush.bf16.msra.mxu0 %v463
      %479 = vmatmul.bf16.gmra.mxu0 %v469
      %v480 = vpop.f32.mrf.mxu0
      %v481 = vadd.f32 %v453, %v480
      %v482 = vpop.f32.mrf.mxu0
      %483 = vdwg.mxu0
      %v484 = vmul.f32 %v481, 0.35355338
      %v485 = vld [vmem:[%s433] sm:$0xff]
      %v486 = vpack.c.bf16 %v485, %v485
      %v487 = vld [vmem:[%s5] sm:$0xf]
      %v488 = vld [vmem:[%s5 + $0x4] sm:$0xf]
      %v489 = vld [vmem:[%s5 + $0x8] sm:$0xf]
      %v490 = vld [vmem:[%s5 + $0xc] sm:$0xf]
      %v491 = vld [vmem:[%s6] sm:$0x1]
      %v493 = vperm.slane %v491, 0
      %v499 = vunpack.c.l.b16 %v487
      %v500 = vunpack.c.l.b16 %v488
      %v501 = vunpack.c.l.b16 %v489
      %v502 = vunpack.c.l.b16 %v490
      %v503 = vpack.c.b16 %v500, %v499
      %v504 = vpack.c.b16 %v502, %v501
      %v508 = vsel %vm467, %v486, 0
      %510 = vmatpush.bf16.msra.mxu0 0
      %511 = vmatpush.bf16.msra.mxu0 0
      %512 = vmatpush.bf16.msra.mxu0 0
      %513 = vmatpush.bf16.msra.mxu0 0
      %514 = vmatpush.bf16.msra.mxu0 0
      %515 = vmatpush.bf16.msra.mxu0 0
      %516 = vmatpush.bf16.msra.mxu0 %v504
      %517 = vmatpush.bf16.msra.mxu0 %v503
      %518 = vmatmul.bf16.gmra.mxu0 %v508
      %v519 = vpop.f32.mrf.mxu0
      %v520 = vadd.f32 %v493, %v519
      %v521 = vpop.f32.mrf.mxu0
      %522 = vdwg.mxu0
      %v523 = vld [vmem:[%s436] sm:$0x1]
      %v525 = vperm.slane %v523, 0
      %v527 = vpack.c.bf16 %v484, %v484
      %v528 = vpack.c.bf16 %v520, %v520
      %vm529 = vcmask 64512
      %v531 = vsel %vm529, %v527, 0
      %v534 = vsel %vm529, %v528, 0
      %536 = vmatpush.bf16.xpose.msra.mxu0 0
      %537 = vmatpush.bf16.xpose.msra.mxu0 0
      %538 = vmatpush.bf16.xpose.msra.mxu0 0
      %539 = vmatpush.bf16.xpose.msra.mxu0 0
      %540 = vmatpush.bf16.xpose.msra.mxu0 0
      %541 = vmatpush.bf16.xpose.msra.mxu0 0
      %542 = vmatpush.bf16.xpose.msra.mxu0 0
      %543 = vmatpush.bf16.xpose.msra.mxu0 %v534
      %544 = vmatmul.bf16.gmra.mxu0 %v531
      %v545 = vpop.f32.mrf.mxu0
      %v546 = vadd.f32 %v525, %v545
      %v547 = vpop.f32.mrf.mxu0
      %548 = vdwg.mxu0
      %v549 = vsel %vm529, %v546, -inf
      %550 = vmax.xlane.f32.xlu0 %v549
      %v551 = vpop.xlane.xlu0 %550
      %v552 = vsub.f32 %v546, %v551
      %v553 = vmul.f32 %v552, 1.442695
      %v554 = vpow.pop %v553
      %v555 = vsel %vm529, %v554, 0.0
      %556 = vadd.xlane.f32.xlu0 %v555
      %v557 = vpop.xlane.xlu0 %556
      %v558 = vrcp.pop %v557
      %v559 = vmul.f32 %v554, %v558
      %v560 = vpack.c.bf16 %v559, %v559
      %562 = vrot.lane.b32.xlu0 %v528, 96
      %v563 = vpop.permute.xlu0 %562
      %v565 = vsel %vm529, %v560, 0
      %vm567 = vcmask 1043456
      %v569 = vsel %vm567, %v563, 0
      %571 = vmatpush.bf16.msra.mxu0 0
      %572 = vmatpush.bf16.msra.mxu0 0
      %573 = vmatpush.bf16.msra.mxu0 0
      %574 = vmatpush.bf16.msra.mxu0 0
      %575 = vmatpush.bf16.msra.mxu0 0
      %576 = vmatpush.bf16.msra.mxu0 0
      %577 = vmatpush.bf16.msra.mxu0 0
      %578 = vmatpush.bf16.msra.mxu0 %v569
      %579 = vmatmul.bf16.gmra.mxu0 %v565
      %v580 = vpop.f32.mrf.mxu0
      %v581 = vadd.f32 0.0, %v580
      %v582 = vpop.f32.mrf.mxu0
      %583 = vdwg.mxu0
      %585 = vrot.lane.b32.xlu0 %v527, 120
      %v586 = vpop.permute.xlu0 %585
      %587 = vrot.lane.b32.xlu0 %v528, 120
      %v588 = vpop.permute.xlu0 %587
      %v590 = vsel %vm529, %v586, 0
      %v593 = vsel %vm529, %v588, 0
      %595 = vmatpush.bf16.xpose.msra.mxu0 0
      %596 = vmatpush.bf16.xpose.msra.mxu0 0
      %597 = vmatpush.bf16.xpose.msra.mxu0 0
      %598 = vmatpush.bf16.xpose.msra.mxu0 0
      %599 = vmatpush.bf16.xpose.msra.mxu0 0
      %600 = vmatpush.bf16.xpose.msra.mxu0 0
      %601 = vmatpush.bf16.xpose.msra.mxu0 0
      %602 = vmatpush.bf16.xpose.msra.mxu0 %v593
      %603 = vmatmul.bf16.gmra.mxu0 %v590
      %v604 = vpop.f32.mrf.mxu0
      %v605 = vadd.f32 %v525, %v604
      %v606 = vpop.f32.mrf.mxu0
      %607 = vdwg.mxu0
      %v608 = vsel %vm529, %v605, -inf
      %609 = vmax.xlane.f32.xlu0 %v608
      %v610 = vpop.xlane.xlu0 %609
      %v611 = vsub.f32 %v605, %v610
      %v612 = vmul.f32 %v611, 1.442695
      %v613 = vpow.pop %v612
      %v614 = vsel %vm529, %v613, 0.0
      %615 = vadd.xlane.f32.xlu0 %v614
      %v616 = vpop.xlane.xlu0 %615
      %v617 = vrcp.pop %v616
      %v618 = vmul.f32 %v613, %v617
      %v619 = vpack.c.bf16 %v618, %v618
      %620 = vrot.lane.b32.xlu0 %v528, 88
      %v621 = vpop.permute.xlu0 %620
      %v623 = vsel %vm529, %v619, 0
      %v626 = vsel %vm567, %v621, 0
      %628 = vmatpush.bf16.msra.mxu0 0
      %629 = vmatpush.bf16.msra.mxu0 0
      %630 = vmatpush.bf16.msra.mxu0 0
      %631 = vmatpush.bf16.msra.mxu0 0
      %632 = vmatpush.bf16.msra.mxu0 0
      %633 = vmatpush.bf16.msra.mxu0 0
      %634 = vmatpush.bf16.msra.mxu0 0
      %635 = vmatpush.bf16.msra.mxu0 %v626
      %636 = vmatmul.bf16.gmra.mxu0 %v623
      %v637 = vpop.f32.mrf.mxu0
      %v638 = vadd.f32 0.0, %v637
      %v639 = vpop.f32.mrf.mxu0
      %640 = vdwg.mxu0
      %641 = vrot.lane.b32.xlu0 %v527, 112
      %v642 = vpop.permute.xlu0 %641
      %643 = vrot.lane.b32.xlu0 %v528, 112
      %v644 = vpop.permute.xlu0 %643
      %v646 = vsel %vm529, %v642, 0
      %v649 = vsel %vm529, %v644, 0
      %651 = vmatpush.bf16.xpose.msra.mxu0 0
      %652 = vmatpush.bf16.xpose.msra.mxu0 0
      %653 = vmatpush.bf16.xpose.msra.mxu0 0
      %654 = vmatpush.bf16.xpose.msra.mxu0 0
      %655 = vmatpush.bf16.xpose.msra.mxu0 0
      %656 = vmatpush.bf16.xpose.msra.mxu0 0
      %657 = vmatpush.bf16.xpose.msra.mxu0 0
      %658 = vmatpush.bf16.xpose.msra.mxu0 %v649
      %659 = vmatmul.bf16.gmra.mxu0 %v646
      %v660 = vpop.f32.mrf.mxu0
      %v661 = vadd.f32 %v525, %v660
      %v662 = vpop.f32.mrf.mxu0
      %663 = vdwg.mxu0
      %v664 = vsel %vm529, %v661, -inf
      %665 = vmax.xlane.f32.xlu0 %v664
      %v666 = vpop.xlane.xlu0 %665
      %v667 = vsub.f32 %v661, %v666
      %v668 = vmul.f32 %v667, 1.442695
      %v669 = vpow.pop %v668
      %v670 = vsel %vm529, %v669, 0.0
      %671 = vadd.xlane.f32.xlu0 %v670
      %v672 = vpop.xlane.xlu0 %671
      %v673 = vrcp.pop %v672
      %v674 = vmul.f32 %v669, %v673
      %v675 = vpack.c.bf16 %v674, %v674
      %676 = vrot.lane.b32.xlu0 %v528, 80
      %v677 = vpop.permute.xlu0 %676
      %v679 = vsel %vm529, %v675, 0
      %v682 = vsel %vm567, %v677, 0
      %684 = vmatpush.bf16.msra.mxu0 0
      %685 = vmatpush.bf16.msra.mxu0 0
      %686 = vmatpush.bf16.msra.mxu0 0
      %687 = vmatpush.bf16.msra.mxu0 0
      %688 = vmatpush.bf16.msra.mxu0 0
      %689 = vmatpush.bf16.msra.mxu0 0
      %690 = vmatpush.bf16.msra.mxu0 0
      %691 = vmatpush.bf16.msra.mxu0 %v682
      %692 = vmatmul.bf16.gmra.mxu0 %v679
      %v693 = vpop.f32.mrf.mxu0
      %v694 = vadd.f32 0.0, %v693
      %v695 = vpop.f32.mrf.mxu0
      %696 = vdwg.mxu0
      %697 = vrot.lane.b32.xlu0 %v527, 104
      %v698 = vpop.permute.xlu0 %697
      %699 = vrot.lane.b32.xlu0 %v528, 104
      %v700 = vpop.permute.xlu0 %699
      %v702 = vsel %vm529, %v698, 0
      %v705 = vsel %vm529, %v700, 0
      %707 = vmatpush.bf16.xpose.msra.mxu0 0
      %708 = vmatpush.bf16.xpose.msra.mxu0 0
      %709 = vmatpush.bf16.xpose.msra.mxu0 0
      %710 = vmatpush.bf16.xpose.msra.mxu0 0
      %711 = vmatpush.bf16.xpose.msra.mxu0 0
      %712 = vmatpush.bf16.xpose.msra.mxu0 0
      %713 = vmatpush.bf16.xpose.msra.mxu0 0
      %714 = vmatpush.bf16.xpose.msra.mxu0 %v705
      %715 = vmatmul.bf16.gmra.mxu0 %v702
      %v716 = vpop.f32.mrf.mxu0
      %v717 = vadd.f32 %v525, %v716
      %v718 = vpop.f32.mrf.mxu0
      %719 = vdwg.mxu0
      %v720 = vsel %vm529, %v717, -inf
      %721 = vmax.xlane.f32.xlu0 %v720
      %v722 = vpop.xlane.xlu0 %721
      %v723 = vsub.f32 %v717, %v722
      %v724 = vmul.f32 %v723, 1.442695
      %v725 = vpow.pop %v724
      %v726 = vsel %vm529, %v725, 0.0
      %727 = vadd.xlane.f32.xlu0 %v726
      %v728 = vpop.xlane.xlu0 %727
      %v729 = vrcp.pop %v728
      %v730 = vmul.f32 %v725, %v729
      %v731 = vpack.c.bf16 %v730, %v730
      %732 = vrot.lane.b32.xlu0 %v528, 72
      %v733 = vpop.permute.xlu0 %732
      %v735 = vsel %vm529, %v731, 0
      %v738 = vsel %vm567, %v733, 0
      %740 = vmatpush.bf16.msra.mxu0 0
      %741 = vmatpush.bf16.msra.mxu0 0
      %742 = vmatpush.bf16.msra.mxu0 0
      %743 = vmatpush.bf16.msra.mxu0 0
      %744 = vmatpush.bf16.msra.mxu0 0
      %745 = vmatpush.bf16.msra.mxu0 0
      %746 = vmatpush.bf16.msra.mxu0 0
      %747 = vmatpush.bf16.msra.mxu0 %v738
      %748 = vmatmul.bf16.gmra.mxu0 %v735
      %v749 = vpop.f32.mrf.mxu0
      %v750 = vadd.f32 0.0, %v749
      %v751 = vpop.f32.mrf.mxu0
      %752 = vdwg.mxu0
      %754 = vrot.lane.b32.xlu0 %v638, 8
      %v755 = vpop.permute.xlu0 %754
      %758 = vrot.lane.b32.xlu0 %v694, 16
      %v759 = vpop.permute.xlu0 %758
      %762 = vrot.lane.b32.xlu0 %v750, 24
      %v763 = vpop.permute.xlu0 %762
      %v765 = vsel %vm529, %v581, %v755
      %vm766 = vcmask 130048
      %v767 = vsel %vm766, %v765, %v759
      %vm768 = vcmask 195584
      %v769 = vsel %vm768, %v767, %v763
      %v770 = vpack.c.bf16 %v769, %v769
      %v771 = vld [vmem:[%s7] sm:$0xf]
      %v772 = vld [vmem:[%s7 + $0x4] sm:$0xf]
      %v773 = vld [vmem:[%s7 + $0x8] sm:$0xf]
      %v774 = vld [vmem:[%s7 + $0xc] sm:$0xf]
      %v775 = vld [vmem:[%s8] sm:$0x1]
      %v777 = vperm.slane %v775, 0
      %v783 = vunpack.c.l.b16 %v771
      %v784 = vunpack.c.l.b16 %v772
      %v785 = vunpack.c.l.b16 %v773
      %v786 = vunpack.c.l.b16 %v774
      %v787 = vpack.c.b16 %v784, %v783
      %v788 = vpack.c.b16 %v786, %v785
      %v792 = vsel %vm467, %v770, 0
      %794 = vmatpush.bf16.msra.mxu0 0
      %795 = vmatpush.bf16.msra.mxu0 0
      %796 = vmatpush.bf16.msra.mxu0 0
      %797 = vmatpush.bf16.msra.mxu0 0
      %798 = vmatpush.bf16.msra.mxu0 0
      %799 = vmatpush.bf16.msra.mxu0 0
      %800 = vmatpush.bf16.msra.mxu0 %v788
      %801 = vmatpush.bf16.msra.mxu0 %v787
      %802 = vmatmul.bf16.gmra.mxu0 %v792
      %v803 = vpop.f32.mrf.mxu0
      %v804 = vadd.f32 %v777, %v803
      %v805 = vpop.f32.mrf.mxu0
      %806 = vdwg.mxu0
      %v807 = vadd.f32 %v445, %v804
      %v808 = vsel %vm467, %v807, 0.0
      %809 = vadd.xlane.f32.xlu0 %v808
      %v810 = vpop.xlane.xlu0 %809
      %v811 = vrcp.pop 32.0
      %v812 = vmul.f32 32.0, %v811
      %v813 = vsub.f32 1.0, %v812
      %v814 = vmul.f32 %v811, %v813
      %v815 = vadd.f32 %v811, %v814
      %vm816 = vweird.f32 %v811
      %v817 = vsel %vm816, %v811, %v815
      %v818 = vmul.f32 %v810, %v817
      %v819 = vsub.f32 %v807, %v818
      %v820 = vmul.f32 %v819, %v819
      %v821 = vsel %vm467, %v820, 0.0
      %822 = vadd.xlane.f32.xlu0 %v821
      %v823 = vpop.xlane.xlu0 %822
      %v824 = vmul.f32 %v823, %v817
      %v825 = vadd.f32 %v824, 1e-05
      %v826 = vrsqrt.pop %v825
      %v827 = vmul.f32 %v826, %v825
      %v828 = vmul.f32 %v827, %v826
      %v829 = vmul.f32 0.5, %v828
      %v830 = vsub.f32 1.5, %v829
      %v831 = vmul.f32 %v826, %v830
      %vm832 = vweird.f32 %v825
      %vm833 = vweird.f32 %v826
      %vm834 = vmor %vm832, %vm833
      %v835 = vsel %vm834, %v826, %v831
      %v836 = vmul.f32 %v819, %v835
      %v837 = vld [vmem:[%s9] sm:$0x1]
      %v839 = vperm.slane %v837, 0
      %v841 = vmul.f32 %v836, %v839
      %v842 = vld [vmem:[%s10] sm:$0x1]
      %v844 = vperm.slane %v842, 0
      %v846 = vadd.f32 %v841, %v844
      %v847 = vpack.c.bf16 %v846, %v846
      %vm848 = vcmask 257024
      %849 = vst.msk [vmem:[%s443] sm:$0xf] %vm848, %v847
      %p850 = scmp.lt.s32.totalorder %s26, 1
      %s851 = scalar_select %p850, %s26, 1
      %p852 = scmp.lt.s32.totalorder %s27, 0
      %s853 = scalar_select %p852, %s27, 0
      %s854 = sadd.s32 %s853, %s851
      %s855 = smul.addr %s854, 4
      %s856 = scalar_lea.vmem %s11, %s855
      // Predicated region
      $region65: #{_lambda_.10} parent=63 // pred_check
        %p857 = pneg %p302
      $region66: #{_lambda_.10} parent=63 // pred_check_branch
        %859 = sbr.rel (%p857) target = $region68
      $region67: #{_lambda_.10} parent=63 // pred_region
        _
      $region68: #{_lambda_.10} parent=63 // pred_fallthru
        _
    $region64: #{_lambda_.10} parent=5 // pred_fallthru
      _
    %p860 = scmp.le.s32.totalorder 2, %s17
    // Predicated region
    $region69: #{_lambda_.10} parent=5 // pred_check
      %p861 = pneg %p860
    $region70: #{_lambda_.10} parent=5 // pred_check_branch
      %863 = sbr.rel (%p861) target = $region72
    $region71: #{_lambda_.10} parent=5 // pred_region
      %s864 = ssub.s32 %s17, 2
      // Predicated region
      $region73: #{_lambda_.10} parent=71 // pred_check
        %p865 = pneg %p308
      $region74: #{_lambda_.10} parent=71 // pred_check_branch
        %867 = sbr.rel (%p865) target = $region76
      $region75: #{_lambda_.10} parent=71 // pred_region
        %p868 = scmp.lt.s32.totalorder %s28, 1
        %s869 = scalar_select %p868, %s28, 1
        %p870 = scmp.lt.s32.totalorder %s29, 0
        %s871 = scalar_select %p870, %s29, 0
        %s872 = sadd.s32 %s871, %s869
        %s873 = smul.addr %s872, 4
        %s874 = scalar_lea.vmem %s11, %s873
      $region76: #{_lambda_.10} parent=71 // pred_fallthru
        _
    $region72: #{_lambda_.10} parent=5 // pred_fallthru
      _
  $region6: #{_lambda_.10} parent=0 // loop_footer
    %s21 = sadd.s32 1, %s17
  $region7: #{_lambda_.10} parent=0 // loop_footer_branch
    %16 = sbr.rel target = $region3
  $region8: #{_lambda_.10} parent=0 // loop_exit
    _

// kernel: _lambda_.12
$region0: #{_lambda_.12}
  #allocation0 [shape = 'u32[]', space=smem, size = 0x4, offset = 0x4, fixed_abs, tag = 'smem constant byte address 0x4 - core index']
  #allocation1 [shape = 'u32[72,128]{1,0:T(1,128)}', space=vmem, size = 0x9000, scoped, tag = 'internal scratch']
  %s0 = inlined_call_operand.vmem [shape: bf16[2,8,32], index: 0, kind: input, shape index: {}, may-alias: {0,1}]
  %s1 = inlined_call_operand.vmem [shape: bf16[2,8,32], index: 1, kind: input, shape index: {}, may-alias: {0,1}]
  %s2 = inlined_call_operand.vmem [shape: f32[2,1,8], index: 2, kind: input, shape index: {}]
  %s3 = inlined_call_operand.vmem [shape: bf16[32,32], index: 3, kind: input, shape index: {}]
  %s4 = inlined_call_operand.vmem [shape: f32[1,32], index: 4, kind: input, shape index: {}]
  %s5 = inlined_call_operand.vmem [shape: bf16[32,64], index: 5, kind: input, shape index: {}]
  %s6 = inlined_call_operand.vmem [shape: f32[1,64], index: 6, kind: input, shape index: {}]
  %s7 = inlined_call_operand.vmem [shape: bf16[32,32], index: 7, kind: input, shape index: {}]
  %s8 = inlined_call_operand.vmem [shape: f32[1,32], index: 8, kind: input, shape index: {}]
  %s9 = inlined_call_operand.vmem [shape: f32[1,32], index: 9, kind: input, shape index: {}]
  %s10 = inlined_call_operand.vmem [shape: f32[1,32], index: 10, kind: input, shape index: {}]
  %s11 = inlined_call_operand.vmem [shape: bf16[2,8,32], index: 11, kind: output, shape index: {}]
  %s12 = sld [smem:[#allocation0]]
  $region77: #{_lambda_.12} parent=0
    _
  %s14 = ssub.s32 1, %s12
  %s15 = scalar_select 0, %s14, %s12
  loop: start=0, step=1, limit=4
  $region2: #{_lambda_.12} parent=0 // loop_pre_header
    _
  $region3: #{_lambda_.12} parent=0 // loop_header
    %s17 = sphi 0, %s21
    %p18 = scmp.ge.s32.totalorder %s17, 4
    %s24 = sphi 0, %s36
    %s25 = sphi 0, %s32
    %s26 = sphi 0, %s24
    %s27 = sphi 0, %s25
    %s28 = sphi 0, %s26
    %s29 = sphi 0, %s27
    %s41 = sphi 0, %s43
    %s44 = sphi 0, %s41
    %s45 = sphi 0, %s44
    %s61 = sphi 0, %s45
    %s67 = sphi 0, %s69
    %s70 = sphi 0, %s67
    %s71 = sphi 0, %s70
    %s87 = sphi 0, %s71
    %s93 = sphi 0, %s95
    %s96 = sphi 0, %s93
    %s97 = sphi 0, %s96
    %s113 = sphi 0, %s97
    %s117 = sphi 0, %s117
    %s119 = sphi 0, %s117
    %s120 = sphi 0, %s119
    %s134 = sphi 0, %s120
    %s138 = sphi 0, %s138
    %s140 = sphi 0, %s138
    %s141 = sphi 0, %s140
    %s155 = sphi 0, %s141
    %s159 = sphi 0, %s159
    %s161 = sphi 0, %s159
    %s162 = sphi 0, %s161
    %s176 = sphi 0, %s162
    %s180 = sphi 0, %s180
    %s182 = sphi 0, %s180
    %s183 = sphi 0, %s182
    %s197 = sphi 0, %s183
    %s201 = sphi 0, %s201
    %s203 = sphi 0, %s201
    %s204 = sphi 0, %s203
    %s218 = sphi 0, %s204
    %s222 = sphi 0, %s222
    %s224 = sphi 0, %s222
    %s225 = sphi 0, %s224
    %s239 = sphi 0, %s225
    %s243 = sphi 0, %s243
    %s245 = sphi 0, %s243
    %s246 = sphi 0, %s245
    %s260 = sphi 0, %s246
    %s264 = sphi 0, %s264
    %s266 = sphi 0, %s264
    %s267 = sphi 0, %s266
    %s281 = sphi 0, %s267
    %s289 = sphi 0, %s291
    %s292 = sphi 0, %s289
    %s293 = sphi 0, %s292
    %s309 = sphi 0, %s293
  $region4: #{_lambda_.12} parent=0 // loop_header_branch
    %20 = sbr.rel (%p18) target = $region8
  $region5: #{_lambda_.12} parent=0 // loop_body
    %s22 = ssub.s32 %s17, 1
    %s23 = ssub.s32 %s17, 2
    %s30 = sadd.s32 1, %s25
    %p31 = scmp.ge.s32.totalorder %s30, 1
    %s32 = scalar_select %p31, 0, %s30
    %s33 = sadd.s32 1, %s24
    %s34 = scalar_select %p31, %s33, %s24
    %p35 = scmp.ge.s32.totalorder %s34, 2
    %s36 = scalar_select %p35, 0, %s34
    %s37 = ssub.s32 %s24, %s36
    %s38 = ssub.s32 %s25, %s32
    %s39 = sor.u32 %s37, %s38
    %p40 = scmp.eq.s32.totalorder %s39, 0
    %s42 = sadd.s32 %s41, 1
    %s43 = scalar_select %p40, %s41, %s42
    %p46 = pneg %p40
    %p47 = scmp.eq.s32.totalorder %s17, 1
    %p48 = por %p46, %p47
    %p49 = scmp.ne.s32.totalorder %s41, %s44
    %p50 = scmp.eq.s32.totalorder %s17, 0
    %p51 = por %p49, %p50
    %p52 = scmp.ne.s32.totalorder %s41, %s44
    %p53 = scmp.eq.s32.totalorder %s22, 1
    %p54 = por %p52, %p53
    %p55 = scmp.ne.s32.totalorder %s44, %s45
    %p56 = scmp.eq.s32.totalorder %s22, 0
    %p57 = por %p55, %p56
    %p58 = scmp.ne.s32.totalorder %s44, %s45
    %p59 = scmp.eq.s32.totalorder %s23, 1
    %p60 = por %p58, %p59
    %p62 = scmp.ne.s32.totalorder %s45, %s61
    %p63 = scmp.eq.s32.totalorder %s23, 0
    %p64 = por %p62, %p63
    %s65 = ssub.s32 %s24, %s36
    %p66 = scmp.eq.s32.totalorder %s65, 0
    %s68 = sadd.s32 %s67, 1
    %s69 = scalar_select %p66, %s67, %s68
    %p72 = pneg %p66
    %p73 = scmp.eq.s32.totalorder %s17, 1
    %p74 = por %p72, %p73
    %p75 = scmp.ne.s32.totalorder %s67, %s70
    %p76 = scmp.eq.s32.totalorder %s17, 0
    %p77 = por %p75, %p76
    %p78 = scmp.ne.s32.totalorder %s67, %s70
    %p79 = scmp.eq.s32.totalorder %s22, 1
    %p80 = por %p78, %p79
    %p81 = scmp.ne.s32.totalorder %s70, %s71
    %p82 = scmp.eq.s32.totalorder %s22, 0
    %p83 = por %p81, %p82
    %p84 = scmp.ne.s32.totalorder %s70, %s71
    %p85 = scmp.eq.s32.totalorder %s23, 1
    %p86 = por %p84, %p85
    %p88 = scmp.ne.s32.totalorder %s71, %s87
    %p89 = scmp.eq.s32.totalorder %s23, 0
    %p90 = por %p88, %p89
    %s91 = ssub.s32 %s24, %s36
    %p92 = scmp.eq.s32.totalorder %s91, 0
    %s94 = sadd.s32 %s93, 1
    %s95 = scalar_select %p92, %s93, %s94
    %p98 = pneg %p92
    %p99 = scmp.eq.s32.totalorder %s17, 1
    %p100 = por %p98, %p99
    %p101 = scmp.ne.s32.totalorder %s93, %s96
    %p102 = scmp.eq.s32.totalorder %s17, 0
    %p103 = por %p101, %p102
    %p104 = scmp.ne.s32.totalorder %s93, %s96
    %p105 = scmp.eq.s32.totalorder %s22, 1
    %p106 = por %p104, %p105
    %p107 = scmp.ne.s32.totalorder %s96, %s97
    %p108 = scmp.eq.s32.totalorder %s22, 0
    %p109 = por %p107, %p108
    %p110 = scmp.ne.s32.totalorder %s96, %s97
    %p111 = scmp.eq.s32.totalorder %s23, 1
    %p112 = por %p110, %p111
    %p114 = scmp.ne.s32.totalorder %s97, %s113
    %p115 = scmp.eq.s32.totalorder %s23, 0
    %p116 = por %p114, %p115
    %s118 = sadd.s32 %s117, 1
    %p121 = scmp.eq.s32.totalorder %s17, 1
    %p122 = scmp.ne.s32.totalorder %s117, %s119
    %p123 = scmp.eq.s32.totalorder %s17, 0
    %p124 = por %p122, %p123
    %p125 = scmp.ne.s32.totalorder %s117, %s119
    %p126 = scmp.eq.s32.totalorder %s22, 1
    %p127 = por %p125, %p126
    %p128 = scmp.ne.s32.totalorder %s119, %s120
    %p129 = scmp.eq.s32.totalorder %s22, 0
    %p130 = por %p128, %p129
    %p131 = scmp.ne.s32.totalorder %s119, %s120
    %p132 = scmp.eq.s32.totalorder %s23, 1
    %p133 = por %p131, %p132
    %p135 = scmp.ne.s32.totalorder %s120, %s134
    %p136 = scmp.eq.s32.totalorder %s23, 0
    %p137 = por %p135, %p136
    %s139 = sadd.s32 %s138, 1
    %p142 = scmp.eq.s32.totalorder %s17, 1
    %p143 = scmp.ne.s32.totalorder %s138, %s140
    %p144 = scmp.eq.s32.totalorder %s17, 0
    %p145 = por %p143, %p144
    %p146 = scmp.ne.s32.totalorder %s138, %s140
    %p147 = scmp.eq.s32.totalorder %s22, 1
    %p148 = por %p146, %p147
    %p149 = scmp.ne.s32.totalorder %s140, %s141
    %p150 = scmp.eq.s32.totalorder %s22, 0
    %p151 = por %p149, %p150
    %p152 = scmp.ne.s32.totalorder %s140, %s141
    %p153 = scmp.eq.s32.totalorder %s23, 1
    %p154 = por %p152, %p153
    %p156 = scmp.ne.s32.totalorder %s141, %s155
    %p157 = scmp.eq.s32.totalorder %s23, 0
    %p158 = por %p156, %p157
    %s160 = sadd.s32 %s159, 1
    %p163 = scmp.eq.s32.totalorder %s17, 1
    %p164 = scmp.ne.s32.totalorder %s159, %s161
    %p165 = scmp.eq.s32.totalorder %s17, 0
    %p166 = por %p164, %p165
    %p167 = scmp.ne.s32.totalorder %s159, %s161
    %p168 = scmp.eq.s32.totalorder %s22, 1
    %p169 = por %p167, %p168
    %p170 = scmp.ne.s32.totalorder %s161, %s162
    %p171 = scmp.eq.s32.totalorder %s22, 0
    %p172 = por %p170, %p171
    %p173 = scmp.ne.s32.totalorder %s161, %s162
    %p174 = scmp.eq.s32.totalorder %s23, 1
    %p175 = por %p173, %p174
    %p177 = scmp.ne.s32.totalorder %s162, %s176
    %p178 = scmp.eq.s32.totalorder %s23, 0
    %p179 = por %p177, %p178
    %s181 = sadd.s32 %s180, 1
    %p184 = scmp.eq.s32.totalorder %s17, 1
    %p185 = scmp.ne.s32.totalorder %s180, %s182
    %p186 = scmp.eq.s32.totalorder %s17, 0
    %p187 = por %p185, %p186
    %p188 = scmp.ne.s32.totalorder %s180, %s182
    %p189 = scmp.eq.s32.totalorder %s22, 1
    %p190 = por %p188, %p189
    %p191 = scmp.ne.s32.totalorder %s182, %s183
    %p192 = scmp.eq.s32.totalorder %s22, 0
    %p193 = por %p191, %p192
    %p194 = scmp.ne.s32.totalorder %s182, %s183
    %p195 = scmp.eq.s32.totalorder %s23, 1
    %p196 = por %p194, %p195
    %p198 = scmp.ne.s32.totalorder %s183, %s197
    %p199 = scmp.eq.s32.totalorder %s23, 0
    %p200 = por %p198, %p199
    %s202 = sadd.s32 %s201, 1
    %p205 = scmp.eq.s32.totalorder %s17, 1
    %p206 = scmp.ne.s32.totalorder %s201, %s203
    %p207 = scmp.eq.s32.totalorder %s17, 0
    %p208 = por %p206, %p207
    %p209 = scmp.ne.s32.totalorder %s201, %s203
    %p210 = scmp.eq.s32.totalorder %s22, 1
    %p211 = por %p209, %p210
    %p212 = scmp.ne.s32.totalorder %s203, %s204
    %p213 = scmp.eq.s32.totalorder %s22, 0
    %p214 = por %p212, %p213
    %p215 = scmp.ne.s32.totalorder %s203, %s204
    %p216 = scmp.eq.s32.totalorder %s23, 1
    %p217 = por %p215, %p216
    %p219 = scmp.ne.s32.totalorder %s204, %s218
    %p220 = scmp.eq.s32.totalorder %s23, 0
    %p221 = por %p219, %p220
    %s223 = sadd.s32 %s222, 1
    %p226 = scmp.eq.s32.totalorder %s17, 1
    %p227 = scmp.ne.s32.totalorder %s222, %s224
    %p228 = scmp.eq.s32.totalorder %s17, 0
    %p229 = por %p227, %p228
    %p230 = scmp.ne.s32.totalorder %s222, %s224
    %p231 = scmp.eq.s32.totalorder %s22, 1
    %p232 = por %p230, %p231
    %p233 = scmp.ne.s32.totalorder %s224, %s225
    %p234 = scmp.eq.s32.totalorder %s22, 0
    %p235 = por %p233, %p234
    %p236 = scmp.ne.s32.totalorder %s224, %s225
    %p237 = scmp.eq.s32.totalorder %s23, 1
    %p238 = por %p236, %p237
    %p240 = scmp.ne.s32.totalorder %s225, %s239
    %p241 = scmp.eq.s32.totalorder %s23, 0
    %p242 = por %p240, %p241
    %s244 = sadd.s32 %s243, 1
    %p247 = scmp.eq.s32.totalorder %s17, 1
    %p248 = scmp.ne.s32.totalorder %s243, %s245
    %p249 = scmp.eq.s32.totalorder %s17, 0
    %p250 = por %p248, %p249
    %p251 = scmp.ne.s32.totalorder %s243, %s245
    %p252 = scmp.eq.s32.totalorder %s22, 1
    %p253 = por %p251, %p252
    %p254 = scmp.ne.s32.totalorder %s245, %s246
    %p255 = scmp.eq.s32.totalorder %s22, 0
    %p256 = por %p254, %p255
    %p257 = scmp.ne.s32.totalorder %s245, %s246
    %p258 = scmp.eq.s32.totalorder %s23, 1
    %p259 = por %p257, %p258
    %p261 = scmp.ne.s32.totalorder %s246, %s260
    %p262 = scmp.eq.s32.totalorder %s23, 0
    %p263 = por %p261, %p262
    %s265 = sadd.s32 %s264, 1
    %p268 = scmp.eq.s32.totalorder %s17, 1
    %p269 = scmp.ne.s32.totalorder %s264, %s266
    %p270 = scmp.eq.s32.totalorder %s17, 0
    %p271 = por %p269, %p270
    %p272 = scmp.ne.s32.totalorder %s264, %s266
    %p273 = scmp.eq.s32.totalorder %s22, 1
    %p274 = por %p272, %p273
    %p275 = scmp.ne.s32.totalorder %s266, %s267
    %p276 = scmp.eq.s32.totalorder %s22, 0
    %p277 = por %p275, %p276
    %p278 = scmp.ne.s32.totalorder %s266, %s267
    %p279 = scmp.eq.s32.totalorder %s23, 1
    %p280 = por %p278, %p279
    %p282 = scmp.ne.s32.totalorder %s267, %s281
    %p283 = scmp.eq.s32.totalorder %s23, 0
    %p284 = por %p282, %p283
    %s285 = ssub.s32 %s24, %s36
    %s286 = ssub.s32 %s25, %s32
    %s287 = sor.u32 %s285, %s286
    %p288 = scmp.eq.s32.totalorder %s287, 0
    %s290 = sadd.s32 %s289, 1
    %s291 = scalar_select %p288, %s289, %s290
    %p294 = pneg %p288
    %p295 = scmp.eq.s32.totalorder %s17, 1
    %p296 = por %p294, %p295
    %p297 = scmp.ne.s32.totalorder %s289, %s292
    %p298 = scmp.eq.s32.totalorder %s17, 0
    %p299 = por %p297, %p298
    %p300 = scmp.ne.s32.totalorder %s289, %s292
    %p301 = scmp.eq.s32.totalorder %s22, 1
    %p302 = por %p300, %p301
    %p303 = scmp.ne.s32.totalorder %s292, %s293
    %p304 = scmp.eq.s32.totalorder %s22, 0
    %p305 = por %p303, %p304
    %p306 = scmp.ne.s32.totalorder %s292, %s293
    %p307 = scmp.eq.s32.totalorder %s23, 1
    %p308 = por %p306, %p307
    %p310 = scmp.ne.s32.totalorder %s293, %s309
    %p311 = scmp.eq.s32.totalorder %s23, 0
    %p312 = por %p310, %p311
    %p313 = scmp.le.s32.totalorder 1, %s17
    %p314 = scmp.lt.s32.totalorder %s17, 3
    %p315 = pnand %p313, %p314
    %p316 = pneg %p315
    // Predicated region
    $region9: #{_lambda_.12} parent=5 // pred_check
      _
    $region10: #{_lambda_.12} parent=5 // pred_check_branch
      %318 = sbr.rel (%p315) target = $region12
    $region11: #{_lambda_.12} parent=5 // pred_region
      %s319 = ssub.s32 %s17, 1
      // Predicated region
      $region13: #{_lambda_.12} parent=11 // pred_check
        %p320 = pneg %p130
      $region14: #{_lambda_.12} parent=11 // pred_check_branch
        %322 = sbr.rel (%p320) target = $region16
      $region15: #{_lambda_.12} parent=11 // pred_region
        _
      $region16: #{_lambda_.12} parent=11 // pred_fallthru
        _
      // Predicated region
      $region17: #{_lambda_.12} parent=11 // pred_check
        %p323 = pneg %p151
      $region18: #{_lambda_.12} parent=11 // pred_check_branch
        %325 = sbr.rel (%p323) target = $region20
      $region19: #{_lambda_.12} parent=11 // pred_region
        _
      $region20: #{_lambda_.12} parent=11 // pred_fallthru
        _
      // Predicated region
      $region21: #{_lambda_.12} parent=11 // pred_check
        %p326 = pneg %p172
      $region22: #{_lambda_.12} parent=11 // pred_check_branch
        %328 = sbr.rel (%p326) target = $region24
      $region23: #{_lambda_.12} parent=11 // pred_region
        _
      $region24: #{_lambda_.12} parent=11 // pred_fallthru
        _
      // Predicated region
      $region25: #{_lambda_.12} parent=11 // pred_check
        %p329 = pneg %p193
      $region26: #{_lambda_.12} parent=11 // pred_check_branch
        %331 = sbr.rel (%p329) target = $region28
      $region27: #{_lambda_.12} parent=11 // pred_region
        _
      $region28: #{_lambda_.12} parent=11 // pred_fallthru
        _
      // Predicated region
      $region29: #{_lambda_.12} parent=11 // pred_check
        %p332 = pneg %p214
      $region30: #{_lambda_.12} parent=11 // pred_check_branch
        %334 = sbr.rel (%p332) target = $region32
      $region31: #{_lambda_.12} parent=11 // pred_region
        _
      $region32: #{_lambda_.12} parent=11 // pred_fallthru
        _
      // Predicated region
      $region33: #{_lambda_.12} parent=11 // pred_check
        %p335 = pneg %p235
      $region34: #{_lambda_.12} parent=11 // pred_check_branch
        %337 = sbr.rel (%p335) target = $region36
      $region35: #{_lambda_.12} parent=11 // pred_region
        _
      $region36: #{_lambda_.12} parent=11 // pred_fallthru
        _
      // Predicated region
      $region37: #{_lambda_.12} parent=11 // pred_check
        %p338 = pneg %p256
      $region38: #{_lambda_.12} parent=11 // pred_check_branch
        %340 = sbr.rel (%p338) target = $region40
      $region39: #{_lambda_.12} parent=11 // pred_region
        _
      $region40: #{_lambda_.12} parent=11 // pred_fallthru
        _
      // Predicated region
      $region41: #{_lambda_.12} parent=11 // pred_check
        %p341 = pneg %p277
      $region42: #{_lambda_.12} parent=11 // pred_check_branch
        %343 = sbr.rel (%p341) target = $region44
      $region43: #{_lambda_.12} parent=11 // pred_region
        _
      $region44: #{_lambda_.12} parent=11 // pred_fallthru
        _
    $region12: #{_lambda_.12} parent=5 // pred_fallthru
      _
    %p344 = scmp.lt.s32.totalorder %s17, 2
    // Predicated region
    $region45: #{_lambda_.12} parent=5 // pred_check
      %p345 = pneg %p344
    $region46: #{_lambda_.12} parent=5 // pred_check_branch
      %347 = sbr.rel (%p345) target = $region48
    $region47: #{_lambda_.12} parent=5 // pred_region
      // Predicated region
      $region49: #{_lambda_.12} parent=47 // pred_check
        %p348 = pneg %p51
      $region50: #{_lambda_.12} parent=47 // pred_check_branch
        %350 = sbr.rel (%p348) target = $region52
      $region51: #{_lambda_.12} parent=47 // pred_region
        %p351 = scmp.lt.s32.totalorder %s24, 1
        %s352 = scalar_select %p351, %s24, 1
        %p353 = scmp.lt.s32.totalorder %s25, 0
        %s354 = scalar_select %p353, %s25, 0
        %s355 = sadd.s32 %s354, %s352
        %s356 = smul.addr %s355, 4
        %s357 = scalar_lea.vmem %s0, %s356
      $region52: #{_lambda_.12} parent=47 // pred_fallthru
        _
      // Predicated region
      $region53: #{_lambda_.12} parent=47 // pred_check
        %p358 = pneg %p77
      $region54: #{_lambda_.12} parent=47 // pred_check_branch
        %360 = sbr.rel (%p358) target = $region56
      $region55: #{_lambda_.12} parent=47 // pred_region
        %p361 = scmp.lt.s32.totalorder %s24, 1
        %s362 = scalar_select %p361, %s24, 1
        %s363 = smul.addr %s362, 4
        %s364 = scalar_lea.vmem %s1, %s363
      $region56: #{_lambda_.12} parent=47 // pred_fallthru
        _
      // Predicated region
      $region57: #{_lambda_.12} parent=47 // pred_check
        %p365 = pneg %p103
      $region58: #{_lambda_.12} parent=47 // pred_check_branch
        %367 = sbr.rel (%p365) target = $region60
      $region59: #{_lambda_.12} parent=47 // pred_region
        %p368 = scmp.lt.s32.totalorder %s24, 1
        %s369 = scalar_select %p368, %s24, 1
        %s370 = scalar_lea.vmem %s2, %s369
      $region60: #{_lambda_.12} parent=47 // pred_fallthru
        _
    $region48: #{_lambda_.12} parent=5 // pred_fallthru
      _
    %p371 = scmp.le.s32.totalorder 1, %s17
    %p372 = scmp.lt.s32.totalorder %s17, 3
    %p373 = pnand %p371, %p372
    %p374 = pneg %p373
    // Predicated region
    $region61: #{_lambda_.12} parent=5 // pred_check
      _
    $region62: #{_lambda_.12} parent=5 // pred_check_branch
      %376 = sbr.rel (%p373) target = $region64
    $region63: #{_lambda_.12} parent=5 // pred_region
      %s377 = ssub.s32 %s17, 1
      %p378 = scmp.lt.s32.totalorder %s26, 1
      %s379 = scalar_select %p378, %s26, 1
      %p380 = scmp.lt.s32.totalorder %s27, 0
      %s381 = scalar_select %p380, %s27, 0
      %s382 = sadd.s32 %s381, %s379
      %s383 = smul.addr %s382, 4
      %s384 = scalar_lea.vmem %s0, %s383
      %p385 = pneg %p57
      %p386 = pneg %p54
      %p387 = scmp.lt.s32.totalorder %s26, 1
      %s388 = scalar_select %p387, %s26, 1
      %s389 = smul.addr %s388, 4
      %s390 = scalar_lea.vmem %s1, %s389
      %p391 = pneg %p83
      %p392 = pneg %p80
      %p393 = scmp.lt.s32.totalorder %s26, 1
      %s394 = scalar_select %p393, %s26, 1
      %s395 = scalar_lea.vmem %s2, %s394
      %p396 = pneg %p109
      %p397 = pneg %p106
      %p398 = pneg %p130
      %p399 = pneg %p127
      %p400 = pneg %p151
      %p401 = pneg %p148
      %p402 = pneg %p172
      %p403 = pneg %p169
      %p404 = pneg %p193
      %p405 = pneg %p190
      %p406 = pneg %p214
      %p407 = pneg %p211
      %p408 = pneg %p235
      %p409 = pneg %p232
      %p410 = pneg %p256
      %p411 = pneg %p253
      %p412 = pneg %p277
      %p413 = pneg %p274
      %p414 = pneg %p305
      %p415 = pneg %p302
      %p416 = scmp.lt.s32.totalorder %s26, 1
      %s417 = scalar_select %p416, %s26, 1
      %p418 = scmp.lt.s32.totalorder %s27, 0
      %s419 = scalar_select %p418, %s27, 0
      %s420 = sadd.s32 %s419, %s417
      %s421 = smul.addr %s420, 4
      %s422 = scalar_lea.vmem %s11, %s421
      %p423 = scmp.lt.s32.totalorder %s26, 1
      %s424 = scalar_select %p423, %s26, 1
      %p425 = scmp.lt.s32.totalorder %s27, 0
      %s426 = scalar_select %p425, %s27, 0
      %s427 = sadd.s32 %s426, %s424
      %s428 = smul.addr %s427, 4
      %s429 = scalar_lea.vmem %s0, %s428
      %p430 = scmp.lt.s32.totalorder %s26, 1
      %s431 = scalar_select %p430, %s26, 1
      %s432 = smul.addr %s431, 4
      %s433 = scalar_lea.vmem %s1, %s432
      %p434 = scmp.lt.s32.totalorder %s26, 1
      %s435 = scalar_select %p434, %s26, 1
      %s436 = scalar_lea.vmem %s2, %s435
      %p437 = scmp.lt.s32.totalorder %s26, 1
      %s438 = scalar_select %p437, %s26, 1
      %p439 = scmp.lt.s32.totalorder %s27, 0
      %s440 = scalar_select %p439, %s27, 0
      %s441 = sadd.s32 %s440, %s438
      %s442 = smul.addr %s441, 4
      %s443 = scalar_lea.vmem %s11, %s442
      %v445 = vld [vmem:[%s429] sm:$0xf]
      %v446 = vunpack.c.l.bf16 %v445
      %v447 = vld [vmem:[%s3] sm:$0xf]
      %v448 = vld [vmem:[%s3 + $0x4] sm:$0xf]
      %v449 = vld [vmem:[%s3 + $0x8] sm:$0xf]
      %v450 = vld [vmem:[%s3 + $0xc] sm:$0xf]
      %v451 = vld [vmem:[%s4] sm:$0x1]
      %v453 = vperm.slane %v451, 0
      %v459 = vunpack.c.l.b16 %v447
      %v460 = vunpack.c.l.b16 %v448
      %v461 = vunpack.c.l.b16 %v449
      %v462 = vunpack.c.l.b16 %v450
      %v463 = vpack.c.b16 %v460, %v459
      %v464 = vpack.c.b16 %v462, %v461
      %vm467 = vcmask 261120
      %v469 = vsel %vm467, %v445, 0
      %471 = vmatpush.bf16.msra.mxu0 0
      %472 = vmatpush.bf16.msra.mxu0 0
      %473 = vmatpush.bf16.msra.mxu0 0
      %474 = vmatpush.bf16.msra.mxu0 0
      %475 = vmatpush.bf16.msra.mxu0 0
      %476 = vmatpush.bf16.msra.mxu0 0
      %477 = vmatpush.bf16.msra.mxu0 %v464
      %478 = vmatpush.bf16.msra.mxu0 %v463
      %479 = vmatmul.bf16.gmra.mxu0 %v469
      %v480 = vpop.f32.mrf.mxu0
      %v481 = vadd.f32 %v453, %v480
      %v482 = vpop.f32.mrf.mxu0
      %483 = vdwg.mxu0
      %v484 = vmul.f32 %v481, 0.35355338
      %v485 = vld [vmem:[%s433] sm:$0xf]
      %v486 = vld [vmem:[%s5] sm:$0xf]
      %v487 = vld [vmem:[%s5 + $0x4] sm:$0xf]
      %v488 = vld [vmem:[%s5 + $0x8] sm:$0xf]
      %v489 = vld [vmem:[%s5 + $0xc] sm:$0xf]
      %v490 = vld [vmem:[%s6] sm:$0x1]
      %v492 = vperm.slane %v490, 0
      %v498 = vunpack.c.l.b16 %v486
      %v499 = vunpack.c.l.b16 %v487
      %v500 = vunpack.c.l.b16 %v488
      %v501 = vunpack.c.l.b16 %v489
      %v502 = vpack.c.b16 %v499, %v498
      %v503 = vpack.c.b16 %v501, %v500
      %v507 = vsel %vm467, %v485, 0
      %509 = vmatpush.bf16.msra.mxu0 0
      %510 = vmatpush.bf16.msra.mxu0 0
      %511 = vmatpush.bf16.msra.mxu0 0
      %512 = vmatpush.bf16.msra.mxu0 0
      %513 = vmatpush.bf16.msra.mxu0 0
      %514 = vmatpush.bf16.msra.mxu0 0
      %515 = vmatpush.bf16.msra.mxu0 %v503
      %516 = vmatpush.bf16.msra.mxu0 %v502
      %517 = vmatmul.bf16.gmra.mxu0 %v507
      %v518 = vpop.f32.mrf.mxu0
      %v519 = vadd.f32 %v492, %v518
      %v520 = vpop.f32.mrf.mxu0
      %521 = vdwg.mxu0
      %v522 = vld [vmem:[%s436] sm:$0x1]
      %v524 = vperm.slane %v522, 0
      %v526 = vpack.c.bf16 %v484, %v484
      %v527 = vpack.c.bf16 %v519, %v519
      %vm528 = vcmask 64512
      %v530 = vsel %vm528, %v526, 0
      %v533 = vsel %vm528, %v527, 0
      %535 = vmatpush.bf16.xpose.msra.mxu0 0
      %536 = vmatpush.bf16.xpose.msra.mxu0 0
      %537 = vmatpush.bf16.xpose.msra.mxu0 0
      %538 = vmatpush.bf16.xpose.msra.mxu0 0
      %539 = vmatpush.bf16.xpose.msra.mxu0 0
      %540 = vmatpush.bf16.xpose.msra.mxu0 0
      %541 = vmatpush.bf16.xpose.msra.mxu0 0
      %542 = vmatpush.bf16.xpose.msra.mxu0 %v533
      %543 = vmatmul.bf16.gmra.mxu0 %v530
      %v544 = vpop.f32.mrf.mxu0
      %v545 = vadd.f32 %v524, %v544
      %v546 = vpop.f32.mrf.mxu0
      %547 = vdwg.mxu0
      %v548 = vsel %vm528, %v545, -inf
      %549 = vmax.xlane.f32.xlu0 %v548
      %v550 = vpop.xlane.xlu0 %549
      %v551 = vsub.f32 %v545, %v550
      %v552 = vmul.f32 %v551, 1.442695
      %v553 = vpow.pop %v552
      %v554 = vsel %vm528, %v553, 0.0
      %555 = vadd.xlane.f32.xlu0 %v554
      %v556 = vpop.xlane.xlu0 %555
      %v557 = vrcp.pop %v556
      %v558 = vmul.f32 %v553, %v557
      %v559 = vpack.c.bf16 %v558, %v558
      %561 = vrot.lane.b32.xlu0 %v527, 96
      %v562 = vpop.permute.xlu0 %561
      %v564 = vsel %vm528, %v559, 0
      %vm566 = vcmask 1043456
      %v568 = vsel %vm566, %v562, 0
      %570 = vmatpush.bf16.msra.mxu0 0
      %571 = vmatpush.bf16.msra.mxu0 0
      %572 = vmatpush.bf16.msra.mxu0 0
      %573 = vmatpush.bf16.msra.mxu0 0
      %574 = vmatpush.bf16.msra.mxu0 0
      %575 = vmatpush.bf16.msra.mxu0 0
      %576 = vmatpush.bf16.msra.mxu0 0
      %577 = vmatpush.bf16.msra.mxu0 %v568
      %578 = vmatmul.bf16.gmra.mxu0 %v564
      %v579 = vpop.f32.mrf.mxu0
      %v580 = vadd.f32 0.0, %v579
      %v581 = vpop.f32.mrf.mxu0
      %582 = vdwg.mxu0
      %584 = vrot.lane.b32.xlu0 %v526, 120
      %v585 = vpop.permute.xlu0 %584
      %586 = vrot.lane.b32.xlu0 %v527, 120
      %v587 = vpop.permute.xlu0 %586
      %v589 = vsel %vm528, %v585, 0
      %v592 = vsel %vm528, %v587, 0
      %594 = vmatpush.bf16.xpose.msra.mxu0 0
      %595 = vmatpush.bf16.xpose.msra.mxu0 0
      %596 = vmatpush.bf16.xpose.msra.mxu0 0
      %597 = vmatpush.bf16.xpose.msra.mxu0 0
      %598 = vmatpush.bf16.xpose.msra.mxu0 0
      %599 = vmatpush.bf16.xpose.msra.mxu0 0
      %600 = vmatpush.bf16.xpose.msra.mxu0 0
      %601 = vmatpush.bf16.xpose.msra.mxu0 %v592
      %602 = vmatmul.bf16.gmra.mxu0 %v589
      %v603 = vpop.f32.mrf.mxu0
      %v604 = vadd.f32 %v524, %v603
      %v605 = vpop.f32.mrf.mxu0
      %606 = vdwg.mxu0
      %v607 = vsel %vm528, %v604, -inf
      %608 = vmax.xlane.f32.xlu0 %v607
      %v609 = vpop.xlane.xlu0 %608
      %v610 = vsub.f32 %v604, %v609
      %v611 = vmul.f32 %v610, 1.442695
      %v612 = vpow.pop %v611
      %v613 = vsel %vm528, %v612, 0.0
      %614 = vadd.xlane.f32.xlu0 %v613
      %v615 = vpop.xlane.xlu0 %614
      %v616 = vrcp.pop %v615
      %v617 = vmul.f32 %v612, %v616
      %v618 = vpack.c.bf16 %v617, %v617
      %619 = vrot.lane.b32.xlu0 %v527, 88
      %v620 = vpop.permute.xlu0 %619
      %v622 = vsel %vm528, %v618, 0
      %v625 = vsel %vm566, %v620, 0
      %627 = vmatpush.bf16.msra.mxu0 0
      %628 = vmatpush.bf16.msra.mxu0 0
      %629 = vmatpush.bf16.msra.mxu0 0
      %630 = vmatpush.bf16.msra.mxu0 0
      %631 = vmatpush.bf16.msra.mxu0 0
      %632 = vmatpush.bf16.msra.mxu0 0
      %633 = vmatpush.bf16.msra.mxu0 0
      %634 = vmatpush.bf16.msra.mxu0 %v625
      %635 = vmatmul.bf16.gmra.mxu0 %v622
      %v636 = vpop.f32.mrf.mxu0
      %v637 = vadd.f32 0.0, %v636
      %v638 = vpop.f32.mrf.mxu0
      %639 = vdwg.mxu0
      %640 = vrot.lane.b32.xlu0 %v526, 112
      %v641 = vpop.permute.xlu0 %640
      %642 = vrot.lane.b32.xlu0 %v527, 112
      %v643 = vpop.permute.xlu0 %642
      %v645 = vsel %vm528, %v641, 0
      %v648 = vsel %vm528, %v643, 0
      %650 = vmatpush.bf16.xpose.msra.mxu0 0
      %651 = vmatpush.bf16.xpose.msra.mxu0 0
      %652 = vmatpush.bf16.xpose.msra.mxu0 0
      %653 = vmatpush.bf16.xpose.msra.mxu0 0
      %654 = vmatpush.bf16.xpose.msra.mxu0 0
      %655 = vmatpush.bf16.xpose.msra.mxu0 0
      %656 = vmatpush.bf16.xpose.msra.mxu0 0
      %657 = vmatpush.bf16.xpose.msra.mxu0 %v648
      %658 = vmatmul.bf16.gmra.mxu0 %v645
      %v659 = vpop.f32.mrf.mxu0
      %v660 = vadd.f32 %v524, %v659
      %v661 = vpop.f32.mrf.mxu0
      %662 = vdwg.mxu0
      %v663 = vsel %vm528, %v660, -inf
      %664 = vmax.xlane.f32.xlu0 %v663
      %v665 = vpop.xlane.xlu0 %664
      %v666 = vsub.f32 %v660, %v665
      %v667 = vmul.f32 %v666, 1.442695
      %v668 = vpow.pop %v667
      %v669 = vsel %vm528, %v668, 0.0
      %670 = vadd.xlane.f32.xlu0 %v669
      %v671 = vpop.xlane.xlu0 %670
      %v672 = vrcp.pop %v671
      %v673 = vmul.f32 %v668, %v672
      %v674 = vpack.c.bf16 %v673, %v673
      %675 = vrot.lane.b32.xlu0 %v527, 80
      %v676 = vpop.permute.xlu0 %675
      %v678 = vsel %vm528, %v674, 0
      %v681 = vsel %vm566, %v676, 0
      %683 = vmatpush.bf16.msra.mxu0 0
      %684 = vmatpush.bf16.msra.mxu0 0
      %685 = vmatpush.bf16.msra.mxu0 0
      %686 = vmatpush.bf16.msra.mxu0 0
      %687 = vmatpush.bf16.msra.mxu0 0
      %688 = vmatpush.bf16.msra.mxu0 0
      %689 = vmatpush.bf16.msra.mxu0 0
      %690 = vmatpush.bf16.msra.mxu0 %v681
      %691 = vmatmul.bf16.gmra.mxu0 %v678
      %v692 = vpop.f32.mrf.mxu0
      %v693 = vadd.f32 0.0, %v692
      %v694 = vpop.f32.mrf.mxu0
      %695 = vdwg.mxu0
      %696 = vrot.lane.b32.xlu0 %v526, 104
      %v697 = vpop.permute.xlu0 %696
      %698 = vrot.lane.b32.xlu0 %v527, 104
      %v699 = vpop.permute.xlu0 %698
      %v701 = vsel %vm528, %v697, 0
      %v704 = vsel %vm528, %v699, 0
      %706 = vmatpush.bf16.xpose.msra.mxu0 0
      %707 = vmatpush.bf16.xpose.msra.mxu0 0
      %708 = vmatpush.bf16.xpose.msra.mxu0 0
      %709 = vmatpush.bf16.xpose.msra.mxu0 0
      %710 = vmatpush.bf16.xpose.msra.mxu0 0
      %711 = vmatpush.bf16.xpose.msra.mxu0 0
      %712 = vmatpush.bf16.xpose.msra.mxu0 0
      %713 = vmatpush.bf16.xpose.msra.mxu0 %v704
      %714 = vmatmul.bf16.gmra.mxu0 %v701
      %v715 = vpop.f32.mrf.mxu0
      %v716 = vadd.f32 %v524, %v715
      %v717 = vpop.f32.mrf.mxu0
      %718 = vdwg.mxu0
      %v719 = vsel %vm528, %v716, -inf
      %720 = vmax.xlane.f32.xlu0 %v719
      %v721 = vpop.xlane.xlu0 %720
      %v722 = vsub.f32 %v716, %v721
      %v723 = vmul.f32 %v722, 1.442695
      %v724 = vpow.pop %v723
      %v725 = vsel %vm528, %v724, 0.0
      %726 = vadd.xlane.f32.xlu0 %v725
      %v727 = vpop.xlane.xlu0 %726
      %v728 = vrcp.pop %v727
      %v729 = vmul.f32 %v724, %v728
      %v730 = vpack.c.bf16 %v729, %v729
      %731 = vrot.lane.b32.xlu0 %v527, 72
      %v732 = vpop.permute.xlu0 %731
      %v734 = vsel %vm528, %v730, 0
      %v737 = vsel %vm566, %v732, 0
      %739 = vmatpush.bf16.msra.mxu0 0
      %740 = vmatpush.bf16.msra.mxu0 0
      %741 = vmatpush.bf16.msra.mxu0 0
      %742 = vmatpush.bf16.msra.mxu0 0
      %743 = vmatpush.bf16.msra.mxu0 0
      %744 = vmatpush.bf16.msra.mxu0 0
      %745 = vmatpush.bf16.msra.mxu0 0
      %746 = vmatpush.bf16.msra.mxu0 %v737
      %747 = vmatmul.bf16.gmra.mxu0 %v734
      %v748 = vpop.f32.mrf.mxu0
      %v749 = vadd.f32 0.0, %v748
      %v750 = vpop.f32.mrf.mxu0
      %751 = vdwg.mxu0
      %753 = vrot.lane.b32.xlu0 %v637, 8
      %v754 = vpop.permute.xlu0 %753
      %757 = vrot.lane.b32.xlu0 %v693, 16
      %v758 = vpop.permute.xlu0 %757
      %761 = vrot.lane.b32.xlu0 %v749, 24
      %v762 = vpop.permute.xlu0 %761
      %v764 = vsel %vm528, %v580, %v754
      %vm765 = vcmask 130048
      %v766 = vsel %vm765, %v764, %v758
      %vm767 = vcmask 195584
      %v768 = vsel %vm767, %v766, %v762
      %v769 = vpack.c.bf16 %v768, %v768
      %v770 = vld [vmem:[%s7] sm:$0xf]
      %v771 = vld [vmem:[%s7 + $0x4] sm:$0xf]
      %v772 = vld [vmem:[%s7 + $0x8] sm:$0xf]
      %v773 = vld [vmem:[%s7 + $0xc] sm:$0xf]
      %v774 = vld [vmem:[%s8] sm:$0x1]
      %v776 = vperm.slane %v774, 0
      %v782 = vunpack.c.l.b16 %v770
      %v783 = vunpack.c.l.b16 %v771
      %v784 = vunpack.c.l.b16 %v772
      %v785 = vunpack.c.l.b16 %v773
      %v786 = vpack.c.b16 %v783, %v782
      %v787 = vpack.c.b16 %v785, %v784
      %v791 = vsel %vm467, %v769, 0
      %793 = vmatpush.bf16.msra.mxu0 0
      %794 = vmatpush.bf16.msra.mxu0 0
      %795 = vmatpush.bf16.msra.mxu0 0
      %796 = vmatpush.bf16.msra.mxu0 0
      %797 = vmatpush.bf16.msra.mxu0 0
      %798 = vmatpush.bf16.msra.mxu0 0
      %799 = vmatpush.bf16.msra.mxu0 %v787
      %800 = vmatpush.bf16.msra.mxu0 %v786
      %801 = vmatmul.bf16.gmra.mxu0 %v791
      %v802 = vpop.f32.mrf.mxu0
      %v803 = vadd.f32 %v776, %v802
      %v804 = vpop.f32.mrf.mxu0
      %805 = vdwg.mxu0
      %v806 = vadd.f32 %v446, %v803
      %v807 = vsel %vm467, %v806, 0.0
      %808 = vadd.xlane.f32.xlu0 %v807
      %v809 = vpop.xlane.xlu0 %808
      %v810 = vrcp.pop 32.0
      %v811 = vmul.f32 32.0, %v810
      %v812 = vsub.f32 1.0, %v811
      %v813 = vmul.f32 %v810, %v812
      %v814 = vadd.f32 %v810, %v813
      %vm815 = vweird.f32 %v810
      %v816 = vsel %vm815, %v810, %v814
      %v817 = vmul.f32 %v809, %v816
      %v818 = vsub.f32 %v806, %v817
      %v819 = vmul.f32 %v818, %v818
      %v820 = vsel %vm467, %v819, 0.0
      %821 = vadd.xlane.f32.xlu0 %v820
      %v822 = vpop.xlane.xlu0 %821
      %v823 = vmul.f32 %v822, %v816
      %v824 = vadd.f32 %v823, 1e-05
      %v825 = vrsqrt.pop %v824
      %v826 = vmul.f32 %v825, %v824
      %v827 = vmul.f32 %v826, %v825
      %v828 = vmul.f32 0.5, %v827
      %v829 = vsub.f32 1.5, %v828
      %v830 = vmul.f32 %v825, %v829
      %vm831 = vweird.f32 %v824
      %vm832 = vweird.f32 %v825
      %vm833 = vmor %vm831, %vm832
      %v834 = vsel %vm833, %v825, %v830
      %v835 = vmul.f32 %v818, %v834
      %v836 = vld [vmem:[%s9] sm:$0x1]
      %v838 = vperm.slane %v836, 0
      %v840 = vmul.f32 %v835, %v838
      %v841 = vld [vmem:[%s10] sm:$0x1]
      %v843 = vperm.slane %v841, 0
      %v845 = vadd.f32 %v840, %v843
      %v846 = vpack.c.bf16 %v845, %v845
      %vm847 = vcmask 257024
      %848 = vst.msk [vmem:[%s443] sm:$0xf] %vm847, %v846
      %p849 = scmp.lt.s32.totalorder %s26, 1
      %s850 = scalar_select %p849, %s26, 1
      %p851 = scmp.lt.s32.totalorder %s27, 0
      %s852 = scalar_select %p851, %s27, 0
      %s853 = sadd.s32 %s852, %s850
      %s854 = smul.addr %s853, 4
      %s855 = scalar_lea.vmem %s11, %s854
      // Predicated region
      $region65: #{_lambda_.12} parent=63 // pred_check
        %p856 = pneg %p302
      $region66: #{_lambda_.12} parent=63 // pred_check_branch
        %858 = sbr.rel (%p856) target = $region68
      $region67: #{_lambda_.12} parent=63 // pred_region
        _
      $region68: #{_lambda_.12} parent=63 // pred_fallthru
        _
    $region64: #{_lambda_.12} parent=5 // pred_fallthru
      _
    %p859 = scmp.le.s32.totalorder 2, %s17
    // Predicated region
    $region69: #{_lambda_.12} parent=5 // pred_check
      %p860 = pneg %p859
    $region70: #{_lambda_.12} parent=5 // pred_check_branch
      %862 = sbr.rel (%p860) target = $region72
    $region71: #{_lambda_.12} parent=5 // pred_region
      %s863 = ssub.s32 %s17, 2
      // Predicated region
      $region73: #{_lambda_.12} parent=71 // pred_check
        %p864 = pneg %p308
      $region74: #{_lambda_.12} parent=71 // pred_check_branch
        %866 = sbr.rel (%p864) target = $region76
      $region75: #{_lambda_.12} parent=71 // pred_region
        %p867 = scmp.lt.s32.totalorder %s28, 1
        %s868 = scalar_select %p867, %s28, 1
        %p869 = scmp.lt.s32.totalorder %s29, 0
        %s870 = scalar_select %p869, %s29, 0
        %s871 = sadd.s32 %s870, %s868
        %s872 = smul.addr %s871, 4
        %s873 = scalar_lea.vmem %s11, %s872
      $region76: #{_lambda_.12} parent=71 // pred_fallthru
        _
    $region72: #{_lambda_.12} parent=5 // pred_fallthru
      _
  $region6: #{_lambda_.12} parent=0 // loop_footer
    %s21 = sadd.s32 1, %s17
  $region7: #{_lambda_.12} parent=0 // loop_footer_branch
    %16 = sbr.rel target = $region3
  $region8: #{_lambda_.12} parent=0 // loop_exit
    _

// kernel: _lambda_.14
$region0: #{_lambda_.14}
  #allocation0 [shape = 'u32[]', space=smem, size = 0x4, offset = 0x4, fixed_abs, tag = 'smem constant byte address 0x4 - core index']
  #allocation1 [shape = 'u32[72,128]{1,0:T(1,128)}', space=vmem, size = 0x9000, scoped, tag = 'internal scratch']
  %s0 = inlined_call_operand.vmem [shape: f32[2,8,32], index: 0, kind: input, shape index: {}, may-alias: {0,1}]
  %s1 = inlined_call_operand.vmem [shape: f32[2,8,32], index: 1, kind: input, shape index: {}, may-alias: {0,1}]
  %s2 = inlined_call_operand.vmem [shape: f32[2,1,8], index: 2, kind: input, shape index: {}]
  %s3 = inlined_call_operand.vmem [shape: bf16[32,32], index: 3, kind: input, shape index: {}]
  %s4 = inlined_call_operand.vmem [shape: f32[1,32], index: 4, kind: input, shape index: {}]
  %s5 = inlined_call_operand.vmem [shape: bf16[32,64], index: 5, kind: input, shape index: {}]
  %s6 = inlined_call_operand.vmem [shape: f32[1,64], index: 6, kind: input, shape index: {}]
  %s7 = inlined_call_operand.vmem [shape: bf16[32,32], index: 7, kind: input, shape index: {}]
  %s8 = inlined_call_operand.vmem [shape: f32[1,32], index: 8, kind: input, shape index: {}]
  %s9 = inlined_call_operand.vmem [shape: f32[1,32], index: 9, kind: input, shape index: {}]
  %s10 = inlined_call_operand.vmem [shape: f32[1,32], index: 10, kind: input, shape index: {}]
  %s11 = inlined_call_operand.vmem [shape: bf16[2,8,32], index: 11, kind: output, shape index: {}]
  %s12 = sld [smem:[#allocation0]]
  $region77: #{_lambda_.14} parent=0
    _
  %s14 = ssub.s32 1, %s12
  %s15 = scalar_select 0, %s14, %s12
  loop: start=0, step=1, limit=4
  $region2: #{_lambda_.14} parent=0 // loop_pre_header
    _
  $region3: #{_lambda_.14} parent=0 // loop_header
    %s17 = sphi 0, %s21
    %p18 = scmp.ge.s32.totalorder %s17, 4
    %s24 = sphi 0, %s36
    %s25 = sphi 0, %s32
    %s26 = sphi 0, %s24
    %s27 = sphi 0, %s25
    %s28 = sphi 0, %s26
    %s29 = sphi 0, %s27
    %s41 = sphi 0, %s43
    %s44 = sphi 0, %s41
    %s45 = sphi 0, %s44
    %s61 = sphi 0, %s45
    %s67 = sphi 0, %s69
    %s70 = sphi 0, %s67
    %s71 = sphi 0, %s70
    %s87 = sphi 0, %s71
    %s93 = sphi 0, %s95
    %s96 = sphi 0, %s93
    %s97 = sphi 0, %s96
    %s113 = sphi 0, %s97
    %s117 = sphi 0, %s117
    %s119 = sphi 0, %s117
    %s120 = sphi 0, %s119
    %s134 = sphi 0, %s120
    %s138 = sphi 0, %s138
    %s140 = sphi 0, %s138
    %s141 = sphi 0, %s140
    %s155 = sphi 0, %s141
    %s159 = sphi 0, %s159
    %s161 = sphi 0, %s159
    %s162 = sphi 0, %s161
    %s176 = sphi 0, %s162
    %s180 = sphi 0, %s180
    %s182 = sphi 0, %s180
    %s183 = sphi 0, %s182
    %s197 = sphi 0, %s183
    %s201 = sphi 0, %s201
    %s203 = sphi 0, %s201
    %s204 = sphi 0, %s203
    %s218 = sphi 0, %s204
    %s222 = sphi 0, %s222
    %s224 = sphi 0, %s222
    %s225 = sphi 0, %s224
    %s239 = sphi 0, %s225
    %s243 = sphi 0, %s243
    %s245 = sphi 0, %s243
    %s246 = sphi 0, %s245
    %s260 = sphi 0, %s246
    %s264 = sphi 0, %s264
    %s266 = sphi 0, %s264
    %s267 = sphi 0, %s266
    %s281 = sphi 0, %s267
    %s289 = sphi 0, %s291
    %s292 = sphi 0, %s289
    %s293 = sphi 0, %s292
    %s309 = sphi 0, %s293
  $region4: #{_lambda_.14} parent=0 // loop_header_branch
    %20 = sbr.rel (%p18) target = $region8
  $region5: #{_lambda_.14} parent=0 // loop_body
    %s22 = ssub.s32 %s17, 1
    %s23 = ssub.s32 %s17, 2
    %s30 = sadd.s32 1, %s25
    %p31 = scmp.ge.s32.totalorder %s30, 1
    %s32 = scalar_select %p31, 0, %s30
    %s33 = sadd.s32 1, %s24
    %s34 = scalar_select %p31, %s33, %s24
    %p35 = scmp.ge.s32.totalorder %s34, 2
    %s36 = scalar_select %p35, 0, %s34
    %s37 = ssub.s32 %s24, %s36
    %s38 = ssub.s32 %s25, %s32
    %s39 = sor.u32 %s37, %s38
    %p40 = scmp.eq.s32.totalorder %s39, 0
    %s42 = sadd.s32 %s41, 1
    %s43 = scalar_select %p40, %s41, %s42
    %p46 = pneg %p40
    %p47 = scmp.eq.s32.totalorder %s17, 1
    %p48 = por %p46, %p47
    %p49 = scmp.ne.s32.totalorder %s41, %s44
    %p50 = scmp.eq.s32.totalorder %s17, 0
    %p51 = por %p49, %p50
    %p52 = scmp.ne.s32.totalorder %s41, %s44
    %p53 = scmp.eq.s32.totalorder %s22, 1
    %p54 = por %p52, %p53
    %p55 = scmp.ne.s32.totalorder %s44, %s45
    %p56 = scmp.eq.s32.totalorder %s22, 0
    %p57 = por %p55, %p56
    %p58 = scmp.ne.s32.totalorder %s44, %s45
    %p59 = scmp.eq.s32.totalorder %s23, 1
    %p60 = por %p58, %p59
    %p62 = scmp.ne.s32.totalorder %s45, %s61
    %p63 = scmp.eq.s32.totalorder %s23, 0
    %p64 = por %p62, %p63
    %s65 = ssub.s32 %s24, %s36
    %p66 = scmp.eq.s32.totalorder %s65, 0
    %s68 = sadd.s32 %s67, 1
    %s69 = scalar_select %p66, %s67, %s68
    %p72 = pneg %p66
    %p73 = scmp.eq.s32.totalorder %s17, 1
    %p74 = por %p72, %p73
    %p75 = scmp.ne.s32.totalorder %s67, %s70
    %p76 = scmp.eq.s32.totalorder %s17, 0
    %p77 = por %p75, %p76
    %p78 = scmp.ne.s32.totalorder %s67, %s70
    %p79 = scmp.eq.s32.totalorder %s22, 1
    %p80 = por %p78, %p79
    %p81 = scmp.ne.s32.totalorder %s70, %s71
    %p82 = scmp.eq.s32.totalorder %s22, 0
    %p83 = por %p81, %p82
    %p84 = scmp.ne.s32.totalorder %s70, %s71
    %p85 = scmp.eq.s32.totalorder %s23, 1
    %p86 = por %p84, %p85
    %p88 = scmp.ne.s32.totalorder %s71, %s87
    %p89 = scmp.eq.s32.totalorder %s23, 0
    %p90 = por %p88, %p89
    %s91 = ssub.s32 %s24, %s36
    %p92 = scmp.eq.s32.totalorder %s91, 0
    %s94 = sadd.s32 %s93, 1
    %s95 = scalar_select %p92, %s93, %s94
    %p98 = pneg %p92
    %p99 = scmp.eq.s32.totalorder %s17, 1
    %p100 = por %p98, %p99
    %p101 = scmp.ne.s32.totalorder %s93, %s96
    %p102 = scmp.eq.s32.totalorder %s17, 0
    %p103 = por %p101, %p102
    %p104 = scmp.ne.s32.totalorder %s93, %s96
    %p105 = scmp.eq.s32.totalorder %s22, 1
    %p106 = por %p104, %p105
    %p107 = scmp.ne.s32.totalorder %s96, %s97
    %p108 = scmp.eq.s32.totalorder %s22, 0
    %p109 = por %p107, %p108
    %p110 = scmp.ne.s32.totalorder %s96, %s97
    %p111 = scmp.eq.s32.totalorder %s23, 1
    %p112 = por %p110, %p111
    %p114 = scmp.ne.s32.totalorder %s97, %s113
    %p115 = scmp.eq.s32.totalorder %s23, 0
    %p116 = por %p114, %p115
    %s118 = sadd.s32 %s117, 1
    %p121 = scmp.eq.s32.totalorder %s17, 1
    %p122 = scmp.ne.s32.totalorder %s117, %s119
    %p123 = scmp.eq.s32.totalorder %s17, 0
    %p124 = por %p122, %p123
    %p125 = scmp.ne.s32.totalorder %s117, %s119
    %p126 = scmp.eq.s32.totalorder %s22, 1
    %p127 = por %p125, %p126
    %p128 = scmp.ne.s32.totalorder %s119, %s120
    %p129 = scmp.eq.s32.totalorder %s22, 0
    %p130 = por %p128, %p129
    %p131 = scmp.ne.s32.totalorder %s119, %s120
    %p132 = scmp.eq.s32.totalorder %s23, 1
    %p133 = por %p131, %p132
    %p135 = scmp.ne.s32.totalorder %s120, %s134
    %p136 = scmp.eq.s32.totalorder %s23, 0
    %p137 = por %p135, %p136
    %s139 = sadd.s32 %s138, 1
    %p142 = scmp.eq.s32.totalorder %s17, 1
    %p143 = scmp.ne.s32.totalorder %s138, %s140
    %p144 = scmp.eq.s32.totalorder %s17, 0
    %p145 = por %p143, %p144
    %p146 = scmp.ne.s32.totalorder %s138, %s140
    %p147 = scmp.eq.s32.totalorder %s22, 1
    %p148 = por %p146, %p147
    %p149 = scmp.ne.s32.totalorder %s140, %s141
    %p150 = scmp.eq.s32.totalorder %s22, 0
    %p151 = por %p149, %p150
    %p152 = scmp.ne.s32.totalorder %s140, %s141
    %p153 = scmp.eq.s32.totalorder %s23, 1
    %p154 = por %p152, %p153
    %p156 = scmp.ne.s32.totalorder %s141, %s155
    %p157 = scmp.eq.s32.totalorder %s23, 0
    %p158 = por %p156, %p157
    %s160 = sadd.s32 %s159, 1
    %p163 = scmp.eq.s32.totalorder %s17, 1
    %p164 = scmp.ne.s32.totalorder %s159, %s161
    %p165 = scmp.eq.s32.totalorder %s17, 0
    %p166 = por %p164, %p165
    %p167 = scmp.ne.s32.totalorder %s159, %s161
    %p168 = scmp.eq.s32.totalorder %s22, 1
    %p169 = por %p167, %p168
    %p170 = scmp.ne.s32.totalorder %s161, %s162
    %p171 = scmp.eq.s32.totalorder %s22, 0
    %p172 = por %p170, %p171
    %p173 = scmp.ne.s32.totalorder %s161, %s162
    %p174 = scmp.eq.s32.totalorder %s23, 1
    %p175 = por %p173, %p174
    %p177 = scmp.ne.s32.totalorder %s162, %s176
    %p178 = scmp.eq.s32.totalorder %s23, 0
    %p179 = por %p177, %p178
    %s181 = sadd.s32 %s180, 1
    %p184 = scmp.eq.s32.totalorder %s17, 1
    %p185 = scmp.ne.s32.totalorder %s180, %s182
    %p186 = scmp.eq.s32.totalorder %s17, 0
    %p187 = por %p185, %p186
    %p188 = scmp.ne.s32.totalorder %s180, %s182
    %p189 = scmp.eq.s32.totalorder %s22, 1
    %p190 = por %p188, %p189
    %p191 = scmp.ne.s32.totalorder %s182, %s183
    %p192 = scmp.eq.s32.totalorder %s22, 0
    %p193 = por %p191, %p192
    %p194 = scmp.ne.s32.totalorder %s182, %s183
    %p195 = scmp.eq.s32.totalorder %s23, 1
    %p196 = por %p194, %p195
    %p198 = scmp.ne.s32.totalorder %s183, %s197
    %p199 = scmp.eq.s32.totalorder %s23, 0
    %p200 = por %p198, %p199
    %s202 = sadd.s32 %s201, 1
    %p205 = scmp.eq.s32.totalorder %s17, 1
    %p206 = scmp.ne.s32.totalorder %s201, %s203
    %p207 = scmp.eq.s32.totalorder %s17, 0
    %p208 = por %p206, %p207
    %p209 = scmp.ne.s32.totalorder %s201, %s203
    %p210 = scmp.eq.s32.totalorder %s22, 1
    %p211 = por %p209, %p210
    %p212 = scmp.ne.s32.totalorder %s203, %s204
    %p213 = scmp.eq.s32.totalorder %s22, 0
    %p214 = por %p212, %p213
    %p215 = scmp.ne.s32.totalorder %s203, %s204
    %p216 = scmp.eq.s32.totalorder %s23, 1
    %p217 = por %p215, %p216
    %p219 = scmp.ne.s32.totalorder %s204, %s218
    %p220 = scmp.eq.s32.totalorder %s23, 0
    %p221 = por %p219, %p220
    %s223 = sadd.s32 %s222, 1
    %p226 = scmp.eq.s32.totalorder %s17, 1
    %p227 = scmp.ne.s32.totalorder %s222, %s224
    %p228 = scmp.eq.s32.totalorder %s17, 0
    %p229 = por %p227, %p228
    %p230 = scmp.ne.s32.totalorder %s222, %s224
    %p231 = scmp.eq.s32.totalorder %s22, 1
    %p232 = por %p230, %p231
    %p233 = scmp.ne.s32.totalorder %s224, %s225
    %p234 = scmp.eq.s32.totalorder %s22, 0
    %p235 = por %p233, %p234
    %p236 = scmp.ne.s32.totalorder %s224, %s225
    %p237 = scmp.eq.s32.totalorder %s23, 1
    %p238 = por %p236, %p237
    %p240 = scmp.ne.s32.totalorder %s225, %s239
    %p241 = scmp.eq.s32.totalorder %s23, 0
    %p242 = por %p240, %p241
    %s244 = sadd.s32 %s243, 1
    %p247 = scmp.eq.s32.totalorder %s17, 1
    %p248 = scmp.ne.s32.totalorder %s243, %s245
    %p249 = scmp.eq.s32.totalorder %s17, 0
    %p250 = por %p248, %p249
    %p251 = scmp.ne.s32.totalorder %s243, %s245
    %p252 = scmp.eq.s32.totalorder %s22, 1
    %p253 = por %p251, %p252
    %p254 = scmp.ne.s32.totalorder %s245, %s246
    %p255 = scmp.eq.s32.totalorder %s22, 0
    %p256 = por %p254, %p255
    %p257 = scmp.ne.s32.totalorder %s245, %s246
    %p258 = scmp.eq.s32.totalorder %s23, 1
    %p259 = por %p257, %p258
    %p261 = scmp.ne.s32.totalorder %s246, %s260
    %p262 = scmp.eq.s32.totalorder %s23, 0
    %p263 = por %p261, %p262
    %s265 = sadd.s32 %s264, 1
    %p268 = scmp.eq.s32.totalorder %s17, 1
    %p269 = scmp.ne.s32.totalorder %s264, %s266
    %p270 = scmp.eq.s32.totalorder %s17, 0
    %p271 = por %p269, %p270
    %p272 = scmp.ne.s32.totalorder %s264, %s266
    %p273 = scmp.eq.s32.totalorder %s22, 1
    %p274 = por %p272, %p273
    %p275 = scmp.ne.s32.totalorder %s266, %s267
    %p276 = scmp.eq.s32.totalorder %s22, 0
    %p277 = por %p275, %p276
    %p278 = scmp.ne.s32.totalorder %s266, %s267
    %p279 = scmp.eq.s32.totalorder %s23, 1
    %p280 = por %p278, %p279
    %p282 = scmp.ne.s32.totalorder %s267, %s281
    %p283 = scmp.eq.s32.totalorder %s23, 0
    %p284 = por %p282, %p283
    %s285 = ssub.s32 %s24, %s36
    %s286 = ssub.s32 %s25, %s32
    %s287 = sor.u32 %s285, %s286
    %p288 = scmp.eq.s32.totalorder %s287, 0
    %s290 = sadd.s32 %s289, 1
    %s291 = scalar_select %p288, %s289, %s290
    %p294 = pneg %p288
    %p295 = scmp.eq.s32.totalorder %s17, 1
    %p296 = por %p294, %p295
    %p297 = scmp.ne.s32.totalorder %s289, %s292
    %p298 = scmp.eq.s32.totalorder %s17, 0
    %p299 = por %p297, %p298
    %p300 = scmp.ne.s32.totalorder %s289, %s292
    %p301 = scmp.eq.s32.totalorder %s22, 1
    %p302 = por %p300, %p301
    %p303 = scmp.ne.s32.totalorder %s292, %s293
    %p304 = scmp.eq.s32.totalorder %s22, 0
    %p305 = por %p303, %p304
    %p306 = scmp.ne.s32.totalorder %s292, %s293
    %p307 = scmp.eq.s32.totalorder %s23, 1
    %p308 = por %p306, %p307
    %p310 = scmp.ne.s32.totalorder %s293, %s309
    %p311 = scmp.eq.s32.totalorder %s23, 0
    %p312 = por %p310, %p311
    %p313 = scmp.le.s32.totalorder 1, %s17
    %p314 = scmp.lt.s32.totalorder %s17, 3
    %p315 = pnand %p313, %p314
    %p316 = pneg %p315
    // Predicated region
    $region9: #{_lambda_.14} parent=5 // pred_check
      _
    $region10: #{_lambda_.14} parent=5 // pred_check_branch
      %318 = sbr.rel (%p315) target = $region12
    $region11: #{_lambda_.14} parent=5 // pred_region
      %s319 = ssub.s32 %s17, 1
      // Predicated region
      $region13: #{_lambda_.14} parent=11 // pred_check
        %p320 = pneg %p130
      $region14: #{_lambda_.14} parent=11 // pred_check_branch
        %322 = sbr.rel (%p320) target = $region16
      $region15: #{_lambda_.14} parent=11 // pred_region
        _
      $region16: #{_lambda_.14} parent=11 // pred_fallthru
        _
      // Predicated region
      $region17: #{_lambda_.14} parent=11 // pred_check
        %p323 = pneg %p151
      $region18: #{_lambda_.14} parent=11 // pred_check_branch
        %325 = sbr.rel (%p323) target = $region20
      $region19: #{_lambda_.14} parent=11 // pred_region
        _
      $region20: #{_lambda_.14} parent=11 // pred_fallthru
        _
      // Predicated region
      $region21: #{_lambda_.14} parent=11 // pred_check
        %p326 = pneg %p172
      $region22: #{_lambda_.14} parent=11 // pred_check_branch
        %328 = sbr.rel (%p326) target = $region24
      $region23: #{_lambda_.14} parent=11 // pred_region
        _
      $region24: #{_lambda_.14} parent=11 // pred_fallthru
        _
      // Predicated region
      $region25: #{_lambda_.14} parent=11 // pred_check
        %p329 = pneg %p193
      $region26: #{_lambda_.14} parent=11 // pred_check_branch
        %331 = sbr.rel (%p329) target = $region28
      $region27: #{_lambda_.14} parent=11 // pred_region
        _
      $region28: #{_lambda_.14} parent=11 // pred_fallthru
        _
      // Predicated region
      $region29: #{_lambda_.14} parent=11 // pred_check
        %p332 = pneg %p214
      $region30: #{_lambda_.14} parent=11 // pred_check_branch
        %334 = sbr.rel (%p332) target = $region32
      $region31: #{_lambda_.14} parent=11 // pred_region
        _
      $region32: #{_lambda_.14} parent=11 // pred_fallthru
        _
      // Predicated region
      $region33: #{_lambda_.14} parent=11 // pred_check
        %p335 = pneg %p235
      $region34: #{_lambda_.14} parent=11 // pred_check_branch
        %337 = sbr.rel (%p335) target = $region36
      $region35: #{_lambda_.14} parent=11 // pred_region
        _
      $region36: #{_lambda_.14} parent=11 // pred_fallthru
        _
      // Predicated region
      $region37: #{_lambda_.14} parent=11 // pred_check
        %p338 = pneg %p256
      $region38: #{_lambda_.14} parent=11 // pred_check_branch
        %340 = sbr.rel (%p338) target = $region40
      $region39: #{_lambda_.14} parent=11 // pred_region
        _
      $region40: #{_lambda_.14} parent=11 // pred_fallthru
        _
      // Predicated region
      $region41: #{_lambda_.14} parent=11 // pred_check
        %p341 = pneg %p277
      $region42: #{_lambda_.14} parent=11 // pred_check_branch
        %343 = sbr.rel (%p341) target = $region44
      $region43: #{_lambda_.14} parent=11 // pred_region
        _
      $region44: #{_lambda_.14} parent=11 // pred_fallthru
        _
    $region12: #{_lambda_.14} parent=5 // pred_fallthru
      _
    %p344 = scmp.lt.s32.totalorder %s17, 2
    // Predicated region
    $region45: #{_lambda_.14} parent=5 // pred_check
      %p345 = pneg %p344
    $region46: #{_lambda_.14} parent=5 // pred_check_branch
      %347 = sbr.rel (%p345) target = $region48
    $region47: #{_lambda_.14} parent=5 // pred_region
      // Predicated region
      $region49: #{_lambda_.14} parent=47 // pred_check
        %p348 = pneg %p51
      $region50: #{_lambda_.14} parent=47 // pred_check_branch
        %350 = sbr.rel (%p348) target = $region52
      $region51: #{_lambda_.14} parent=47 // pred_region
        %p351 = scmp.lt.s32.totalorder %s24, 1
        %s352 = scalar_select %p351, %s24, 1
        %p353 = scmp.lt.s32.totalorder %s25, 0
        %s354 = scalar_select %p353, %s25, 0
        %s355 = sadd.s32 %s354, %s352
        %s356 = smul.addr %s355, 8
        %s357 = scalar_lea.vmem %s0, %s356
      $region52: #{_lambda_.14} parent=47 // pred_fallthru
        _
      // Predicated region
      $region53: #{_lambda_.14} parent=47 // pred_check
        %p358 = pneg %p77
      $region54: #{_lambda_.14} parent=47 // pred_check_branch
        %360 = sbr.rel (%p358) target = $region56
      $region55: #{_lambda_.14} parent=47 // pred_region
        %p361 = scmp.lt.s32.totalorder %s24, 1
        %s362 = scalar_select %p361, %s24, 1
        %s363 = smul.addr %s362, 8
        %s364 = scalar_lea.vmem %s1, %s363
      $region56: #{_lambda_.14} parent=47 // pred_fallthru
        _
      // Predicated region
      $region57: #{_lambda_.14} parent=47 // pred_check
        %p365 = pneg %p103
      $region58: #{_lambda_.14} parent=47 // pred_check_branch
        %367 = sbr.rel (%p365) target = $region60
      $region59: #{_lambda_.14} parent=47 // pred_region
        %p368 = scmp.lt.s32.totalorder %s24, 1
        %s369 = scalar_select %p368, %s24, 1
        %s370 = scalar_lea.vmem %s2, %s369
      $region60: #{_lambda_.14} parent=47 // pred_fallthru
        _
    $region48: #{_lambda_.14} parent=5 // pred_fallthru
      _
    %p371 = scmp.le.s32.totalorder 1, %s17
    %p372 = scmp.lt.s32.totalorder %s17, 3
    %p373 = pnand %p371, %p372
    %p374 = pneg %p373
    // Predicated region
    $region61: #{_lambda_.14} parent=5 // pred_check
      _
    $region62: #{_lambda_.14} parent=5 // pred_check_branch
      %376 = sbr.rel (%p373) target = $region64
    $region63: #{_lambda_.14} parent=5 // pred_region
      %s377 = ssub.s32 %s17, 1
      %p378 = scmp.lt.s32.totalorder %s26, 1
      %s379 = scalar_select %p378, %s26, 1
      %p380 = scmp.lt.s32.totalorder %s27, 0
      %s381 = scalar_select %p380, %s27, 0
      %s382 = sadd.s32 %s381, %s379
      %s383 = smul.addr %s382, 8
      %s384 = scalar_lea.vmem %s0, %s383
      %p385 = pneg %p57
      %p386 = pneg %p54
      %p387 = scmp.lt.s32.totalorder %s26, 1
      %s388 = scalar_select %p387, %s26, 1
      %s389 = smul.addr %s388, 8
      %s390 = scalar_lea.vmem %s1, %s389
      %p391 = pneg %p83
      %p392 = pneg %p80
      %p393 = scmp.lt.s32.totalorder %s26, 1
      %s394 = scalar_select %p393, %s26, 1
      %s395 = scalar_lea.vmem %s2, %s394
      %p396 = pneg %p109
      %p397 = pneg %p106
      %p398 = pneg %p130
      %p399 = pneg %p127
      %p400 = pneg %p151
      %p401 = pneg %p148
      %p402 = pneg %p172
      %p403 = pneg %p169
      %p404 = pneg %p193
      %p405 = pneg %p190
      %p406 = pneg %p214
      %p407 = pneg %p211
      %p408 = pneg %p235
      %p409 = pneg %p232
      %p410 = pneg %p256
      %p411 = pneg %p253
      %p412 = pneg %p277
      %p413 = pneg %p274
      %p414 = pneg %p305
      %p415 = pneg %p302
      %p416 = scmp.lt.s32.totalorder %s26, 1
      %s417 = scalar_select %p416, %s26, 1
      %p418 = scmp.lt.s32.totalorder %s27, 0
      %s419 = scalar_select %p418, %s27, 0
      %s420 = sadd.s32 %s419, %s417
      %s421 = smul.addr %s420, 4
      %s422 = scalar_lea.vmem %s11, %s421
      %p423 = scmp.lt.s32.totalorder %s26, 1
      %s424 = scalar_select %p423, %s26, 1
      %p425 = scmp.lt.s32.totalorder %s27, 0
      %s426 = scalar_select %p425, %s27, 0
      %s427 = sadd.s32 %s426, %s424
      %s428 = smul.addr %s427, 8
      %s429 = scalar_lea.vmem %s0, %s428
      %p430 = scmp.lt.s32.totalorder %s26, 1
      %s431 = scalar_select %p430, %s26, 1
      %s432 = smul.addr %s431, 8
      %s433 = scalar_lea.vmem %s1, %s432
      %p434 = scmp.lt.s32.totalorder %s26, 1
      %s435 = scalar_select %p434, %s26, 1
      %s436 = scalar_lea.vmem %s2, %s435
      %p437 = scmp.lt.s32.totalorder %s26, 1
      %s438 = scalar_select %p437, %s26, 1
      %p439 = scmp.lt.s32.totalorder %s27, 0
      %s440 = scalar_select %p439, %s27, 0
      %s441 = sadd.s32 %s440, %s438
      %s442 = smul.addr %s441, 4
      %s443 = scalar_lea.vmem %s11, %s442
      %v445 = vld [vmem:[%s429] sm:$0xff]
      %v446 = vpack.c.bf16 %v445, %v445
      %v447 = vld [vmem:[%s3] sm:$0xf]
      %v448 = vld [vmem:[%s3 + $0x4] sm:$0xf]
      %v449 = vld [vmem:[%s3 + $0x8] sm:$0xf]
      %v450 = vld [vmem:[%s3 + $0xc] sm:$0xf]
      %v451 = vld [vmem:[%s4] sm:$0x1]
      %v453 = vperm.slane %v451, 0
      %v459 = vunpack.c.l.b16 %v447
      %v460 = vunpack.c.l.b16 %v448
      %v461 = vunpack.c.l.b16 %v449
      %v462 = vunpack.c.l.b16 %v450
      %v463 = vpack.c.b16 %v460, %v459
      %v464 = vpack.c.b16 %v462, %v461
      %vm467 = vcmask 261120
      %v469 = vsel %vm467, %v446, 0
      %471 = vmatpush.bf16.msra.mxu0 0
      %472 = vmatpush.bf16.msra.mxu0 0
      %473 = vmatpush.bf16.msra.mxu0 0
      %474 = vmatpush.bf16.msra.mxu0 0
      %475 = vmatpush.bf16.msra.mxu0 0
      %476 = vmatpush.bf16.msra.mxu0 0
      %477 = vmatpush.bf16.msra.mxu0 %v464
      %478 = vmatpush.bf16.msra.mxu0 %v463
      %479 = vmatmul.bf16.gmra.mxu0 %v469
      %v480 = vpop.f32.mrf.mxu0
      %v481 = vadd.f32 %v453, %v480
      %v482 = vpop.f32.mrf.mxu0
      %483 = vdwg.mxu0
      %v484 = vmul.f32 %v481, 0.35355338
      %v485 = vld [vmem:[%s433] sm:$0xff]
      %v486 = vpack.c.bf16 %v485, %v485
      %v487 = vld [vmem:[%s5] sm:$0xf]
      %v488 = vld [vmem:[%s5 + $0x4] sm:$0xf]
      %v489 = vld [vmem:[%s5 + $0x8] sm:$0xf]
      %v490 = vld [vmem:[%s5 + $0xc] sm:$0xf]
      %v491 = vld [vmem:[%s6] sm:$0x1]
      %v493 = vperm.slane %v491, 0
      %v499 = vunpack.c.l.b16 %v487
      %v500 = vunpack.c.l.b16 %v488
      %v501 = vunpack.c.l.b16 %v489
      %v502 = vunpack.c.l.b16 %v490
      %v503 = vpack.c.b16 %v500, %v499
      %v504 = vpack.c.b16 %v502, %v501
      %v508 = vsel %vm467, %v486, 0
      %510 = vmatpush.bf16.msra.mxu0 0
      %511 = vmatpush.bf16.msra.mxu0 0
      %512 = vmatpush.bf16.msra.mxu0 0
      %513 = vmatpush.bf16.msra.mxu0 0
      %514 = vmatpush.bf16.msra.mxu0 0
      %515 = vmatpush.bf16.msra.mxu0 0
      %516 = vmatpush.bf16.msra.mxu0 %v504
      %517 = vmatpush.bf16.msra.mxu0 %v503
      %518 = vmatmul.bf16.gmra.mxu0 %v508
      %v519 = vpop.f32.mrf.mxu0
      %v520 = vadd.f32 %v493, %v519
      %v521 = vpop.f32.mrf.mxu0
      %522 = vdwg.mxu0
      %v523 = vld [vmem:[%s436] sm:$0x1]
      %v525 = vperm.slane %v523, 0
      %s527 = smul.u32 %s27, 8
      %v528 = vlaneseq
      %v529 = vshrl.u32 %v528, 7
      %v530 = vstv %s527
      %v531 = vadd.s32 %v529, %v530
      %v532 = vlaneseq
      %v533 = vand.u32 %v532, 127
      %vm534 = vcmp.ge.s32.totalorder %v531, %v533
      %v535 = vsel %vm534, 0.0, -1e+09
      %v536 = vadd.f32 %v525, %v535
      %v537 = vpack.c.bf16 %v484, %v484
      %v538 = vpack.c.bf16 %v520, %v520
      %vm539 = vcmask 64512
      %v541 = vsel %vm539, %v537, 0
      %v544 = vsel %vm539, %v538, 0
      %546 = vmatpush.bf16.xpose.msra.mxu0 0
      %547 = vmatpush.bf16.xpose.msra.mxu0 0
      %548 = vmatpush.bf16.xpose.msra.mxu0 0
      %549 = vmatpush.bf16.xpose.msra.mxu0 0
      %550 = vmatpush.bf16.xpose.msra.mxu0 0
      %551 = vmatpush.bf16.xpose.msra.mxu0 0
      %552 = vmatpush.bf16.xpose.msra.mxu0 0
      %553 = vmatpush.bf16.xpose.msra.mxu0 %v544
      %554 = vmatmul.bf16.gmra.mxu0 %v541
      %v555 = vpop.f32.mrf.mxu0
      %v556 = vadd.f32 %v536, %v555
      %v557 = vpop.f32.mrf.mxu0
      %558 = vdwg.mxu0
      %v559 = vsel %vm539, %v556, -inf
      %560 = vmax.xlane.f32.xlu0 %v559
      %v561 = vpop.xlane.xlu0 %560
      %v562 = vsub.f32 %v556, %v561
      %v563 = vmul.f32 %v562, 1.442695
      %v564 = vpow.pop %v563
      %v565 = vsel %vm539, %v564, 0.0
      %566 = vadd.xlane.f32.xlu0 %v565
      %v567 = vpop.xlane.xlu0 %566
      %v568 = vrcp.pop %v567
      %v569 = vmul.f32 %v564, %v568
      %v570 = vpack.c.bf16 %v569, %v569
      %572 = vrot.lane.b32.xlu0 %v538, 96
      %v573 = vpop.permute.xlu0 %572
      %v575 = vsel %vm539, %v570, 0
      %vm577 = vcmask 1043456
      %v579 = vsel %vm577, %v573, 0
      %581 = vmatpush.bf16.msra.mxu0 0
      %582 = vmatpush.bf16.msra.mxu0 0
      %583 = vmatpush.bf16.msra.mxu0 0
      %584 = vmatpush.bf16.msra.mxu0 0
      %585 = vmatpush.bf16.msra.mxu0 0
      %586 = vmatpush.bf16.msra.mxu0 0
      %587 = vmatpush.bf16.msra.mxu0 0
      %588 = vmatpush.bf16.msra.mxu0 %v579
      %589 = vmatmul.bf16.gmra.mxu0 %v575
      %v590 = vpop.f32.mrf.mxu0
      %v591 = vadd.f32 0.0, %v590
      %v592 = vpop.f32.mrf.mxu0
      %593 = vdwg.mxu0
      %595 = vrot.lane.b32.xlu0 %v537, 120
      %v596 = vpop.permute.xlu0 %595
      %597 = vrot.lane.b32.xlu0 %v538, 120
      %v598 = vpop.permute.xlu0 %597
      %v600 = vsel %vm539, %v596, 0
      %v603 = vsel %vm539, %v598, 0
      %605 = vmatpush.bf16.xpose.msra.mxu0 0
      %606 = vmatpush.bf16.xpose.msra.mxu0 0
      %607 = vmatpush.bf16.xpose.msra.mxu0 0
      %608 = vmatpush.bf16.xpose.msra.mxu0 0
      %609 = vmatpush.bf16.xpose.msra.mxu0 0
      %610 = vmatpush.bf16.xpose.msra.mxu0 0
      %611 = vmatpush.bf16.xpose.msra.mxu0 0
      %612 = vmatpush.bf16.xpose.msra.mxu0 %v603
      %613 = vmatmul.bf16.gmra.mxu0 %v600
      %v614 = vpop.f32.mrf.mxu0
      %v615 = vadd.f32 %v536, %v614
      %v616 = vpop.f32.mrf.mxu0
      %617 = vdwg.mxu0
      %v618 = vsel %vm539, %v615, -inf
      %619 = vmax.xlane.f32.xlu0 %v618
      %v620 = vpop.xlane.xlu0 %619
      %v621 = vsub.f32 %v615, %v620
      %v622 = vmul.f32 %v621, 1.442695
      %v623 = vpow.pop %v622
      %v624 = vsel %vm539, %v623, 0.0
      %625 = vadd.xlane.f32.xlu0 %v624
      %v626 = vpop.xlane.xlu0 %625
      %v627 = vrcp.pop %v626
      %v628 = vmul.f32 %v623, %v627
      %v629 = vpack.c.bf16 %v628, %v628
      %630 = vrot.lane.b32.xlu0 %v538, 88
      %v631 = vpop.permute.xlu0 %630
      %v633 = vsel %vm539, %v629, 0
      %v636 = vsel %vm577, %v631, 0
      %638 = vmatpush.bf16.msra.mxu0 0
      %639 = vmatpush.bf16.msra.mxu0 0
      %640 = vmatpush.bf16.msra.mxu0 0
      %641 = vmatpush.bf16.msra.mxu0 0
      %642 = vmatpush.bf16.msra.mxu0 0
      %643 = vmatpush.bf16.msra.mxu0 0
      %644 = vmatpush.bf16.msra.mxu0 0
      %645 = vmatpush.bf16.msra.mxu0 %v636
      %646 = vmatmul.bf16.gmra.mxu0 %v633
      %v647 = vpop.f32.mrf.mxu0
      %v648 = vadd.f32 0.0, %v647
      %v649 = vpop.f32.mrf.mxu0
      %650 = vdwg.mxu0
      %651 = vrot.lane.b32.xlu0 %v537, 112
      %v652 = vpop.permute.xlu0 %651
      %653 = vrot.lane.b32.xlu0 %v538, 112
      %v654 = vpop.permute.xlu0 %653
      %v656 = vsel %vm539, %v652, 0
      %v659 = vsel %vm539, %v654, 0
      %661 = vmatpush.bf16.xpose.msra.mxu0 0
      %662 = vmatpush.bf16.xpose.msra.mxu0 0
      %663 = vmatpush.bf16.xpose.msra.mxu0 0
      %664 = vmatpush.bf16.xpose.msra.mxu0 0
      %665 = vmatpush.bf16.xpose.msra.mxu0 0
      %666 = vmatpush.bf16.xpose.msra.mxu0 0
      %667 = vmatpush.bf16.xpose.msra.mxu0 0
      %668 = vmatpush.bf16.xpose.msra.mxu0 %v659
      %669 = vmatmul.bf16.gmra.mxu0 %v656
      %v670 = vpop.f32.mrf.mxu0
      %v671 = vadd.f32 %v536, %v670
      %v672 = vpop.f32.mrf.mxu0
      %673 = vdwg.mxu0
      %v674 = vsel %vm539, %v671, -inf
      %675 = vmax.xlane.f32.xlu0 %v674
      %v676 = vpop.xlane.xlu0 %675
      %v677 = vsub.f32 %v671, %v676
      %v678 = vmul.f32 %v677, 1.442695
      %v679 = vpow.pop %v678
      %v680 = vsel %vm539, %v679, 0.0
      %681 = vadd.xlane.f32.xlu0 %v680
      %v682 = vpop.xlane.xlu0 %681
      %v683 = vrcp.pop %v682
      %v684 = vmul.f32 %v679, %v683
      %v685 = vpack.c.bf16 %v684, %v684
      %686 = vrot.lane.b32.xlu0 %v538, 80
      %v687 = vpop.permute.xlu0 %686
      %v689 = vsel %vm539, %v685, 0
      %v692 = vsel %vm577, %v687, 0
      %694 = vmatpush.bf16.msra.mxu0 0
      %695 = vmatpush.bf16.msra.mxu0 0
      %696 = vmatpush.bf16.msra.mxu0 0
      %697 = vmatpush.bf16.msra.mxu0 0
      %698 = vmatpush.bf16.msra.mxu0 0
      %699 = vmatpush.bf16.msra.mxu0 0
      %700 = vmatpush.bf16.msra.mxu0 0
      %701 = vmatpush.bf16.msra.mxu0 %v692
      %702 = vmatmul.bf16.gmra.mxu0 %v689
      %v703 = vpop.f32.mrf.mxu0
      %v704 = vadd.f32 0.0, %v703
      %v705 = vpop.f32.mrf.mxu0
      %706 = vdwg.mxu0
      %707 = vrot.lane.b32.xlu0 %v537, 104
      %v708 = vpop.permute.xlu0 %707
      %709 = vrot.lane.b32.xlu0 %v538, 104
      %v710 = vpop.permute.xlu0 %709
      %v712 = vsel %vm539, %v708, 0
      %v715 = vsel %vm539, %v710, 0
      %717 = vmatpush.bf16.xpose.msra.mxu0 0
      %718 = vmatpush.bf16.xpose.msra.mxu0 0
      %719 = vmatpush.bf16.xpose.msra.mxu0 0
      %720 = vmatpush.bf16.xpose.msra.mxu0 0
      %721 = vmatpush.bf16.xpose.msra.mxu0 0
      %722 = vmatpush.bf16.xpose.msra.mxu0 0
      %723 = vmatpush.bf16.xpose.msra.mxu0 0
      %724 = vmatpush.bf16.xpose.msra.mxu0 %v715
      %725 = vmatmul.bf16.gmra.mxu0 %v712
      %v726 = vpop.f32.mrf.mxu0
      %v727 = vadd.f32 %v536, %v726
      %v728 = vpop.f32.mrf.mxu0
      %729 = vdwg.mxu0
      %v730 = vsel %vm539, %v727, -inf
      %731 = vmax.xlane.f32.xlu0 %v730
      %v732 = vpop.xlane.xlu0 %731
      %v733 = vsub.f32 %v727, %v732
      %v734 = vmul.f32 %v733, 1.442695
      %v735 = vpow.pop %v734
      %v736 = vsel %vm539, %v735, 0.0
      %737 = vadd.xlane.f32.xlu0 %v736
      %v738 = vpop.xlane.xlu0 %737
      %v739 = vrcp.pop %v738
      %v740 = vmul.f32 %v735, %v739
      %v741 = vpack.c.bf16 %v740, %v740
      %742 = vrot.lane.b32.xlu0 %v538, 72
      %v743 = vpop.permute.xlu0 %742
      %v745 = vsel %vm539, %v741, 0
      %v748 = vsel %vm577, %v743, 0
      %750 = vmatpush.bf16.msra.mxu0 0
      %751 = vmatpush.bf16.msra.mxu0 0
      %752 = vmatpush.bf16.msra.mxu0 0
      %753 = vmatpush.bf16.msra.mxu0 0
      %754 = vmatpush.bf16.msra.mxu0 0
      %755 = vmatpush.bf16.msra.mxu0 0
      %756 = vmatpush.bf16.msra.mxu0 0
      %757 = vmatpush.bf16.msra.mxu0 %v748
      %758 = vmatmul.bf16.gmra.mxu0 %v745
      %v759 = vpop.f32.mrf.mxu0
      %v760 = vadd.f32 0.0, %v759
      %v761 = vpop.f32.mrf.mxu0
      %762 = vdwg.mxu0
      %764 = vrot.lane.b32.xlu0 %v648, 8
      %v765 = vpop.permute.xlu0 %764
      %768 = vrot.lane.b32.xlu0 %v704, 16
      %v769 = vpop.permute.xlu0 %768
      %772 = vrot.lane.b32.xlu0 %v760, 24
      %v773 = vpop.permute.xlu0 %772
      %v775 = vsel %vm539, %v591, %v765
      %vm776 = vcmask 130048
      %v777 = vsel %vm776, %v775, %v769
      %vm778 = vcmask 195584
      %v779 = vsel %vm778, %v777, %v773
      %v780 = vpack.c.bf16 %v779, %v779
      %v781 = vld [vmem:[%s7] sm:$0xf]
      %v782 = vld [vmem:[%s7 + $0x4] sm:$0xf]
      %v783 = vld [vmem:[%s7 + $0x8] sm:$0xf]
      %v784 = vld [vmem:[%s7 + $0xc] sm:$0xf]
      %v785 = vld [vmem:[%s8] sm:$0x1]
      %v787 = vperm.slane %v785, 0
      %v793 = vunpack.c.l.b16 %v781
      %v794 = vunpack.c.l.b16 %v782
      %v795 = vunpack.c.l.b16 %v783
      %v796 = vunpack.c.l.b16 %v784
      %v797 = vpack.c.b16 %v794, %v793
      %v798 = vpack.c.b16 %v796, %v795
      %v802 = vsel %vm467, %v780, 0
      %804 = vmatpush.bf16.msra.mxu0 0
      %805 = vmatpush.bf16.msra.mxu0 0
      %806 = vmatpush.bf16.msra.mxu0 0
      %807 = vmatpush.bf16.msra.mxu0 0
      %808 = vmatpush.bf16.msra.mxu0 0
      %809 = vmatpush.bf16.msra.mxu0 0
      %810 = vmatpush.bf16.msra.mxu0 %v798
      %811 = vmatpush.bf16.msra.mxu0 %v797
      %812 = vmatmul.bf16.gmra.mxu0 %v802
      %v813 = vpop.f32.mrf.mxu0
      %v814 = vadd.f32 %v787, %v813
      %v815 = vpop.f32.mrf.mxu0
      %816 = vdwg.mxu0
      %v817 = vadd.f32 %v445, %v814
      %v818 = vsel %vm467, %v817, 0.0
      %819 = vadd.xlane.f32.xlu0 %v818
      %v820 = vpop.xlane.xlu0 %819
      %v821 = vrcp.pop 32.0
      %v822 = vmul.f32 32.0, %v821
      %v823 = vsub.f32 1.0, %v822
      %v824 = vmul.f32 %v821, %v823
      %v825 = vadd.f32 %v821, %v824
      %vm826 = vweird.f32 %v821
      %v827 = vsel %vm826, %v821, %v825
      %v828 = vmul.f32 %v820, %v827
      %v829 = vsub.f32 %v817, %v828
      %v830 = vmul.f32 %v829, %v829
      %v831 = vsel %vm467, %v830, 0.0
      %832 = vadd.xlane.f32.xlu0 %v831
      %v833 = vpop.xlane.xlu0 %832
      %v834 = vmul.f32 %v833, %v827
      %v835 = vadd.f32 %v834, 1e-05
      %v836 = vrsqrt.pop %v835
      %v837 = vmul.f32 %v836, %v835
      %v838 = vmul.f32 %v837, %v836
      %v839 = vmul.f32 0.5, %v838
      %v840 = vsub.f32 1.5, %v839
      %v841 = vmul.f32 %v836, %v840
      %vm842 = vweird.f32 %v835
      %vm843 = vweird.f32 %v836
      %vm844 = vmor %vm842, %vm843
      %v845 = vsel %vm844, %v836, %v841
      %v846 = vmul.f32 %v829, %v845
      %v847 = vld [vmem:[%s9] sm:$0x1]
      %v849 = vperm.slane %v847, 0
      %v851 = vmul.f32 %v846, %v849
      %v852 = vld [vmem:[%s10] sm:$0x1]
      %v854 = vperm.slane %v852, 0
      %v856 = vadd.f32 %v851, %v854
      %v857 = vpack.c.bf16 %v856, %v856
      %vm858 = vcmask 257024
      %859 = vst.msk [vmem:[%s443] sm:$0xf] %vm858, %v857
      %p860 = scmp.lt.s32.totalorder %s26, 1
      %s861 = scalar_select %p860, %s26, 1
      %p862 = scmp.lt.s32.totalorder %s27, 0
      %s863 = scalar_select %p862, %s27, 0
      %s864 = sadd.s32 %s863, %s861
      %s865 = smul.addr %s864, 4
      %s866 = scalar_lea.vmem %s11, %s865
      // Predicated region
      $region65: #{_lambda_.14} parent=63 // pred_check
        %p867 = pneg %p302
      $region66: #{_lambda_.14} parent=63 // pred_check_branch
        %869 = sbr.rel (%p867) target = $region68
      $region67: #{_lambda_.14} parent=63 // pred_region
        _
      $region68: #{_lambda_.14} parent=63 // pred_fallthru
        _
    $region64: #{_lambda_.14} parent=5 // pred_fallthru
      _
    %p870 = scmp.le.s32.totalorder 2, %s17
    // Predicated region
    $region69: #{_lambda_.14} parent=5 // pred_check
      %p871 = pneg %p870
    $region70: #{_lambda_.14} parent=5 // pred_check_branch
      %873 = sbr.rel (%p871) target = $region72
    $region71: #{_lambda_.14} parent=5 // pred_region
      %s874 = ssub.s32 %s17, 2
      // Predicated region
      $region73: #{_lambda_.14} parent=71 // pred_check
        %p875 = pneg %p308
      $region74: #{_lambda_.14} parent=71 // pred_check_branch
        %877 = sbr.rel (%p875) target = $region76
      $region75: #{_lambda_.14} parent=71 // pred_region
        %p878 = scmp.lt.s32.totalorder %s28, 1
        %s879 = scalar_select %p878, %s28, 1
        %p880 = scmp.lt.s32.totalorder %s29, 0
        %s881 = scalar_select %p880, %s29, 0
        %s882 = sadd.s32 %s881, %s879
        %s883 = smul.addr %s882, 4
        %s884 = scalar_lea.vmem %s11, %s883
      $region76: #{_lambda_.14} parent=71 // pred_fallthru
        _
    $region72: #{_lambda_.14} parent=5 // pred_fallthru
      _
  $region6: #{_lambda_.14} parent=0 // loop_footer
    %s21 = sadd.s32 1, %s17
  $region7: #{_lambda_.14} parent=0 // loop_footer_branch
    %16 = sbr.rel target = $region3
  $region8: #{_lambda_.14} parent=0 // loop_exit
    _

// kernel: _lambda_.19
$region0: #{_lambda_.19}
  #allocation0 [shape = 'u32[]', space=smem, size = 0x4, offset = 0x4, fixed_abs, tag = 'smem constant byte address 0x4 - core index']
  #allocation1 [shape = 'u32[72,128]{1,0:T(1,128)}', space=vmem, size = 0x9000, scoped, tag = 'internal scratch']
  %s0 = inlined_call_operand.vmem [shape: bf16[16,32], index: 0, kind: input, shape index: {}]
  %s1 = inlined_call_operand.vmem [shape: bf16[32,128], index: 1, kind: input, shape index: {}]
  %s2 = inlined_call_operand.vmem [shape: f32[1,128], index: 2, kind: input, shape index: {}]
  %s3 = inlined_call_operand.vmem [shape: bf16[128,32], index: 3, kind: input, shape index: {}]
  %s4 = inlined_call_operand.vmem [shape: f32[1,32], index: 4, kind: input, shape index: {}]
  %s5 = inlined_call_operand.vmem [shape: f32[1,32], index: 5, kind: input, shape index: {}]
  %s6 = inlined_call_operand.vmem [shape: f32[1,32], index: 6, kind: input, shape index: {}]
  %s7 = inlined_call_operand.hbm [shape: f32[16,32], index: 7, kind: output, shape index: {}]
  %s8 = sld [smem:[#allocation0]]
  $region38: #{_lambda_.19} parent=0
    _
  %s10 = ssub.s32 1, %s8
  %s11 = scalar_select 0, %s10, %s8
  $region1: #{_lambda_.19} parent=0
    #allocation2 [shape = 'u8[8192]{0}', space=vmem, size = 0x2000, scoped, tag = 'output window, operand 0, single buffered']
    #allocation3 [shape = 's32[1]{0}', space=sflag, size = 0x4, scoped, tag = 'scoped memory for _lambda_.19']
    %12 = vsyncpa [#allocation3], 0
    // Predicated region
    $region2: #{_lambda_.19} parent=1 // pred_check
      _
    $region3: #{_lambda_.19} parent=1 // pred_check_branch
      %14 = sbr.rel (0) target = $region5
    $region4: #{_lambda_.19} parent=1 // pred_region
      _
    $region5: #{_lambda_.19} parent=1 // pred_fallthru
      _
    // Predicated region
    $region6: #{_lambda_.19} parent=1 // pred_check
      _
    $region7: #{_lambda_.19} parent=1 // pred_check_branch
      %16 = sbr.rel (0) target = $region9
    $region8: #{_lambda_.19} parent=1 // pred_region
      _
    $region9: #{_lambda_.19} parent=1 // pred_fallthru
      _
    // Predicated region
    $region10: #{_lambda_.19} parent=1 // pred_check
      _
    $region11: #{_lambda_.19} parent=1 // pred_check_branch
      %18 = sbr.rel (0) target = $region13
    $region12: #{_lambda_.19} parent=1 // pred_region
      _
    $region13: #{_lambda_.19} parent=1 // pred_fallthru
      _
    // Predicated region
    $region14: #{_lambda_.19} parent=1 // pred_check
      _
    $region15: #{_lambda_.19} parent=1 // pred_check_branch
      %20 = sbr.rel (0) target = $region17
    $region16: #{_lambda_.19} parent=1 // pred_region
      _
    $region17: #{_lambda_.19} parent=1 // pred_fallthru
      _
    // Predicated region
    $region18: #{_lambda_.19} parent=1 // pred_check
      _
    $region19: #{_lambda_.19} parent=1 // pred_check_branch
      %22 = sbr.rel (0) target = $region21
    $region20: #{_lambda_.19} parent=1 // pred_region
      _
    $region21: #{_lambda_.19} parent=1 // pred_fallthru
      _
    // Predicated region
    $region22: #{_lambda_.19} parent=1 // pred_check
      _
    $region23: #{_lambda_.19} parent=1 // pred_check_branch
      %24 = sbr.rel (0) target = $region25
    $region24: #{_lambda_.19} parent=1 // pred_region
      _
    $region25: #{_lambda_.19} parent=1 // pred_fallthru
      _
    // Predicated region
    $region26: #{_lambda_.19} parent=1 // pred_check
      _
    $region27: #{_lambda_.19} parent=1 // pred_check_branch
      %26 = sbr.rel (0) target = $region29
    $region28: #{_lambda_.19} parent=1 // pred_region
      _
    $region29: #{_lambda_.19} parent=1 // pred_fallthru
      _
    %v28 = vld [vmem:[%s0] sm:$0xf]
    %v29 = vld [vmem:[%s0 + $0x4] sm:$0xf]
    %v30 = vunpack.c.l.bf16 %v28
    %v31 = vunpack.c.l.bf16 %v29
    %v32 = vld [vmem:[%s1] sm:$0xf]
    %v33 = vld [vmem:[%s1 + $0x4] sm:$0xf]
    %v34 = vld [vmem:[%s1 + $0x8] sm:$0xf]
    %v35 = vld [vmem:[%s1 + $0xc] sm:$0xf]
    %v36 = vld [vmem:[%s2] sm:$0x1]
    %v38 = vperm.slane %v36, 0
    %v42 = vunpack.c.l.b16 %v28
    %v43 = vunpack.c.l.b16 %v29
    %v44 = vpack.c.b16 %v43, %v42
    %v49 = vunpack.c.l.b16 %v32
    %v50 = vunpack.c.l.b16 %v33
    %v51 = vunpack.c.l.b16 %v34
    %v52 = vunpack.c.l.b16 %v35
    %v53 = vpack.c.b16 %v50, %v49
    %v54 = vpack.c.b16 %v52, %v51
    %vm57 = vcmask 261120
    %v59 = vsel %vm57, %v44, 0
    %61 = vmatpush.bf16.msra.mxu0 0
    %62 = vmatpush.bf16.msra.mxu0 0
    %63 = vmatpush.bf16.msra.mxu0 0
    %64 = vmatpush.bf16.msra.mxu0 0
    %65 = vmatpush.bf16.msra.mxu0 0
    %66 = vmatpush.bf16.msra.mxu0 0
    %67 = vmatpush.bf16.msra.mxu0 %v54
    %68 = vmatpush.bf16.msra.mxu0 %v53
    %69 = vmatmul.bf16.gmra.mxu0 %v59
    %v70 = vpop.f32.mrf.mxu0
    %v71 = vadd.f32 %v38, %v70
    %v72 = vpop.f32.mrf.mxu0
    %v73 = vadd.f32 %v38, %v72
    %74 = vdwg.mxu0
    %v75 = vmax.f32 %v71, 0.0
    %v76 = vmax.f32 %v73, 0.0
    %v77 = vpack.c.bf16 %v76, %v75
    %v78 = vld [vmem:[%s3] sm:$0xf]
    %v79 = vld [vmem:[%s3 + $0x4] sm:$0xf]
    %v80 = vld [vmem:[%s3 + $0x8] sm:$0xf]
    %v81 = vld [vmem:[%s3 + $0xc] sm:$0xf]
    %v82 = vld [vmem:[%s3 + $0x10] sm:$0xf]
    %v83 = vld [vmem:[%s3 + $0x14] sm:$0xf]
    %v84 = vld [vmem:[%s3 + $0x18] sm:$0xf]
    %v85 = vld [vmem:[%s3 + $0x1c] sm:$0xf]
    %v86 = vld [vmem:[%s3 + $0x20] sm:$0xf]
    %v87 = vld [vmem:[%s3 + $0x24] sm:$0xf]
    %v88 = vld [vmem:[%s3 + $0x28] sm:$0xf]
    %v89 = vld [vmem:[%s3 + $0x2c] sm:$0xf]
    %v90 = vld [vmem:[%s3 + $0x30] sm:$0xf]
    %v91 = vld [vmem:[%s3 + $0x34] sm:$0xf]
    %v92 = vld [vmem:[%s3 + $0x38] sm:$0xf]
    %v93 = vld [vmem:[%s3 + $0x3c] sm:$0xf]
    %v94 = vld [vmem:[%s4] sm:$0x1]
    %v96 = vperm.slane %v94, 0
    %v114 = vunpack.c.l.b16 %v78
    %v115 = vunpack.c.l.b16 %v79
    %v116 = vunpack.c.l.b16 %v80
    %v117 = vunpack.c.l.b16 %v81
    %v118 = vunpack.c.l.b16 %v82
    %v119 = vunpack.c.l.b16 %v83
    %v120 = vunpack.c.l.b16 %v84
    %v121 = vunpack.c.l.b16 %v85
    %v122 = vunpack.c.l.b16 %v86
    %v123 = vunpack.c.l.b16 %v87
    %v124 = vunpack.c.l.b16 %v88
    %v125 = vunpack.c.l.b16 %v89
    %v126 = vunpack.c.l.b16 %v90
    %v127 = vunpack.c.l.b16 %v91
    %v128 = vunpack.c.l.b16 %v92
    %v129 = vunpack.c.l.b16 %v93
    %v130 = vpack.c.b16 %v115, %v114
    %v131 = vpack.c.b16 %v117, %v116
    %v132 = vpack.c.b16 %v119, %v118
    %v133 = vpack.c.b16 %v121, %v120
    %v134 = vpack.c.b16 %v123, %v122
    %v135 = vpack.c.b16 %v125, %v124
    %v136 = vpack.c.b16 %v127, %v126
    %v137 = vpack.c.b16 %v129, %v128
    %146 = vmatpush.bf16.msra.mxu0 %v137
    %147 = vmatpush.bf16.msra.mxu0 %v136
    %148 = vmatpush.bf16.msra.mxu0 %v135
    %149 = vmatpush.bf16.msra.mxu0 %v134
    %150 = vmatpush.bf16.msra.mxu0 %v133
    %151 = vmatpush.bf16.msra.mxu0 %v132
    %152 = vmatpush.bf16.msra.mxu0 %v131
    %153 = vmatpush.bf16.msra.mxu0 %v130
    %154 = vmatmul.bf16.gmra.mxu0 %v77
    %v155 = vpop.f32.mrf.mxu0
    %v156 = vadd.f32 %v96, %v155
    %v157 = vpop.f32.mrf.mxu0
    %v158 = vadd.f32 %v96, %v157
    %159 = vdwg.mxu0
    %v160 = vadd.f32 %v30, %v156
    %v161 = vadd.f32 %v31, %v158
    %v162 = vsel %vm57, %v160, 0.0
    %163 = vadd.xlane.f32.xlu0 %v162
    %v164 = vpop.xlane.xlu0 %163
    %v165 = vsel %vm57, %v161, 0.0
    %166 = vadd.xlane.f32.xlu0 %v165
    %v167 = vpop.xlane.xlu0 %166
    %v168 = vrcp.pop 32.0
    %v169 = vmul.f32 32.0, %v168
    %v170 = vsub.f32 1.0, %v169
    %v171 = vmul.f32 %v168, %v170
    %v172 = vadd.f32 %v168, %v171
    %vm173 = vweird.f32 %v168
    %v174 = vsel %vm173, %v168, %v172
    %v175 = vmul.f32 %v164, %v174
    %v176 = vmul.f32 %v167, %v174
    %v177 = vsub.f32 %v160, %v175
    %v178 = vsub.f32 %v161, %v176
    %v179 = vmul.f32 %v177, %v177
    %v180 = vmul.f32 %v178, %v178
    %v181 = vsel %vm57, %v179, 0.0
    %182 = vadd.xlane.f32.xlu0 %v181
    %v183 = vpop.xlane.xlu0 %182
    %v184 = vsel %vm57, %v180, 0.0
    %185 = vadd.xlane.f32.xlu0 %v184
    %v186 = vpop.xlane.xlu0 %185
    %v187 = vmul.f32 %v183, %v174
    %v188 = vmul.f32 %v186, %v174
    %v189 = vadd.f32 %v187, 1e-05
    %v190 = vadd.f32 %v188, 1e-05
    %v191 = vrsqrt.pop %v189
    %v192 = vmul.f32 %v191, %v189
    %v193 = vmul.f32 %v192, %v191
    %v194 = vmul.f32 0.5, %v193
    %v195 = vsub.f32 1.5, %v194
    %v196 = vmul.f32 %v191, %v195
    %vm197 = vweird.f32 %v189
    %vm198 = vweird.f32 %v191
    %vm199 = vmor %vm197, %vm198
    %v200 = vsel %vm199, %v191, %v196
    %v201 = vrsqrt.pop %v190
    %v202 = vmul.f32 %v201, %v190
    %v203 = vmul.f32 %v202, %v201
    %v204 = vmul.f32 0.5, %v203
    %v205 = vsub.f32 1.5, %v204
    %v206 = vmul.f32 %v201, %v205
    %vm207 = vweird.f32 %v190
    %vm208 = vweird.f32 %v201
    %vm209 = vmor %vm207, %vm208
    %v210 = vsel %vm209, %v201, %v206
    %v211 = vmul.f32 %v177, %v200
    %v212 = vmul.f32 %v178, %v210
    %v213 = vld [vmem:[%s5] sm:$0x1]
    %v215 = vperm.slane %v213, 0
    %v217 = vmul.f32 %v211, %v215
    %v218 = vmul.f32 %v212, %v215
    %v219 = vld [vmem:[%s6] sm:$0x1]
    %v221 = vperm.slane %v219, 0
    %v223 = vadd.f32 %v217, %v221
    %v224 = vadd.f32 %v218, %v221
    %225 = vst.msk [vmem:[#allocation2] sm:$0xff] %vm57, %v223
    %226 = vst.msk [vmem:[#allocation2 + $0x8] sm:$0xff] %vm57, %v224
    // Predicated region
    $region30: #{_lambda_.19} parent=1 // pred_check
      _
    $region31: #{_lambda_.19} parent=1 // pred_check_branch
      %228 = sbr.rel (0) target = $region33
    $region32: #{_lambda_.19} parent=1 // pred_region
      %230 = vsyncadd [#allocation3], 0
      %s231 = sshll.u32 [#allocation2], 4
      %s232 = int_to_ptr.vmem [resolvable:$true] %s231
      %s233 = sshll.u32 %s7, 4
      %s234 = int_to_ptr.hbm [resolvable:$true] %s233
      %239 = dma.vmem_to_hbm [thread:$0]  %s232, 256, %s234, [#allocation3], 128, 128, 8
    $region33: #{_lambda_.19} parent=1 // pred_fallthru
      _
    // Predicated region
    $region34: #{_lambda_.19} parent=1 // pred_check
      _
    $region35: #{_lambda_.19} parent=1 // pred_check_branch
      %241 = sbr.rel (0) target = $region37
    $region36: #{_lambda_.19} parent=1 // pred_region
      %243 = dma.done [#allocation3], 256
    $region37: #{_lambda_.19} parent=1 // pred_fallthru
      _
    %244 = vsyncpa [#allocation3], 1

// kernel: _lambda_.17
$region0: #{_lambda_.17}
  #allocation0 [shape = 'u32[]', space=smem, size = 0x4, offset = 0x4, fixed_abs, tag = 'smem constant byte address 0x4 - core index']
  #allocation1 [shape = 'u32[72,128]{1,0:T(1,128)}', space=vmem, size = 0x9000, scoped, tag = 'internal scratch']
  %s0 = inlined_call_operand.vmem [shape: bf16[2,8,32], index: 0, kind: input, shape index: {}, may-alias: {0,1}]
  %s1 = inlined_call_operand.vmem [shape: bf16[2,8,32], index: 1, kind: input, shape index: {}, may-alias: {0,1}]
  %s2 = inlined_call_operand.vmem [shape: f32[2,1,8], index: 2, kind: input, shape index: {}]
  %s3 = inlined_call_operand.vmem [shape: bf16[32,32], index: 3, kind: input, shape index: {}]
  %s4 = inlined_call_operand.vmem [shape: f32[1,32], index: 4, kind: input, shape index: {}]
  %s5 = inlined_call_operand.vmem [shape: bf16[32,64], index: 5, kind: input, shape index: {}]
  %s6 = inlined_call_operand.vmem [shape: f32[1,64], index: 6, kind: input, shape index: {}]
  %s7 = inlined_call_operand.vmem [shape: bf16[32,32], index: 7, kind: input, shape index: {}]
  %s8 = inlined_call_operand.vmem [shape: f32[1,32], index: 8, kind: input, shape index: {}]
  %s9 = inlined_call_operand.vmem [shape: f32[1,32], index: 9, kind: input, shape index: {}]
  %s10 = inlined_call_operand.vmem [shape: f32[1,32], index: 10, kind: input, shape index: {}]
  %s11 = inlined_call_operand.vmem [shape: bf16[2,8,32], index: 11, kind: output, shape index: {}]
  %s12 = sld [smem:[#allocation0]]
  $region77: #{_lambda_.17} parent=0
    _
  %s14 = ssub.s32 1, %s12
  %s15 = scalar_select 0, %s14, %s12
  loop: start=0, step=1, limit=4
  $region2: #{_lambda_.17} parent=0 // loop_pre_header
    _
  $region3: #{_lambda_.17} parent=0 // loop_header
    %s17 = sphi 0, %s21
    %p18 = scmp.ge.s32.totalorder %s17, 4
    %s24 = sphi 0, %s36
    %s25 = sphi 0, %s32
    %s26 = sphi 0, %s24
    %s27 = sphi 0, %s25
    %s28 = sphi 0, %s26
    %s29 = sphi 0, %s27
    %s41 = sphi 0, %s43
    %s44 = sphi 0, %s41
    %s45 = sphi 0, %s44
    %s61 = sphi 0, %s45
    %s67 = sphi 0, %s69
    %s70 = sphi 0, %s67
    %s71 = sphi 0, %s70
    %s87 = sphi 0, %s71
    %s93 = sphi 0, %s95
    %s96 = sphi 0, %s93
    %s97 = sphi 0, %s96
    %s113 = sphi 0, %s97
    %s117 = sphi 0, %s117
    %s119 = sphi 0, %s117
    %s120 = sphi 0, %s119
    %s134 = sphi 0, %s120
    %s138 = sphi 0, %s138
    %s140 = sphi 0, %s138
    %s141 = sphi 0, %s140
    %s155 = sphi 0, %s141
    %s159 = sphi 0, %s159
    %s161 = sphi 0, %s159
    %s162 = sphi 0, %s161
    %s176 = sphi 0, %s162
    %s180 = sphi 0, %s180
    %s182 = sphi 0, %s180
    %s183 = sphi 0, %s182
    %s197 = sphi 0, %s183
    %s201 = sphi 0, %s201
    %s203 = sphi 0, %s201
    %s204 = sphi 0, %s203
    %s218 = sphi 0, %s204
    %s222 = sphi 0, %s222
    %s224 = sphi 0, %s222
    %s225 = sphi 0, %s224
    %s239 = sphi 0, %s225
    %s243 = sphi 0, %s243
    %s245 = sphi 0, %s243
    %s246 = sphi 0, %s245
    %s260 = sphi 0, %s246
    %s264 = sphi 0, %s264
    %s266 = sphi 0, %s264
    %s267 = sphi 0, %s266
    %s281 = sphi 0, %s267
    %s289 = sphi 0, %s291
    %s292 = sphi 0, %s289
    %s293 = sphi 0, %s292
    %s309 = sphi 0, %s293
  $region4: #{_lambda_.17} parent=0 // loop_header_branch
    %20 = sbr.rel (%p18) target = $region8
  $region5: #{_lambda_.17} parent=0 // loop_body
    %s22 = ssub.s32 %s17, 1
    %s23 = ssub.s32 %s17, 2
    %s30 = sadd.s32 1, %s25
    %p31 = scmp.ge.s32.totalorder %s30, 1
    %s32 = scalar_select %p31, 0, %s30
    %s33 = sadd.s32 1, %s24
    %s34 = scalar_select %p31, %s33, %s24
    %p35 = scmp.ge.s32.totalorder %s34, 2
    %s36 = scalar_select %p35, 0, %s34
    %s37 = ssub.s32 %s24, %s36
    %s38 = ssub.s32 %s25, %s32
    %s39 = sor.u32 %s37, %s38
    %p40 = scmp.eq.s32.totalorder %s39, 0
    %s42 = sadd.s32 %s41, 1
    %s43 = scalar_select %p40, %s41, %s42
    %p46 = pneg %p40
    %p47 = scmp.eq.s32.totalorder %s17, 1
    %p48 = por %p46, %p47
    %p49 = scmp.ne.s32.totalorder %s41, %s44
    %p50 = scmp.eq.s32.totalorder %s17, 0
    %p51 = por %p49, %p50
    %p52 = scmp.ne.s32.totalorder %s41, %s44
    %p53 = scmp.eq.s32.totalorder %s22, 1
    %p54 = por %p52, %p53
    %p55 = scmp.ne.s32.totalorder %s44, %s45
    %p56 = scmp.eq.s32.totalorder %s22, 0
    %p57 = por %p55, %p56
    %p58 = scmp.ne.s32.totalorder %s44, %s45
    %p59 = scmp.eq.s32.totalorder %s23, 1
    %p60 = por %p58, %p59
    %p62 = scmp.ne.s32.totalorder %s45, %s61
    %p63 = scmp.eq.s32.totalorder %s23, 0
    %p64 = por %p62, %p63
    %s65 = ssub.s32 %s24, %s36
    %p66 = scmp.eq.s32.totalorder %s65, 0
    %s68 = sadd.s32 %s67, 1
    %s69 = scalar_select %p66, %s67, %s68
    %p72 = pneg %p66
    %p73 = scmp.eq.s32.totalorder %s17, 1
    %p74 = por %p72, %p73
    %p75 = scmp.ne.s32.totalorder %s67, %s70
    %p76 = scmp.eq.s32.totalorder %s17, 0
    %p77 = por %p75, %p76
    %p78 = scmp.ne.s32.totalorder %s67, %s70
    %p79 = scmp.eq.s32.totalorder %s22, 1
    %p80 = por %p78, %p79
    %p81 = scmp.ne.s32.totalorder %s70, %s71
    %p82 = scmp.eq.s32.totalorder %s22, 0
    %p83 = por %p81, %p82
    %p84 = scmp.ne.s32.totalorder %s70, %s71
    %p85 = scmp.eq.s32.totalorder %s23, 1
    %p86 = por %p84, %p85
    %p88 = scmp.ne.s32.totalorder %s71, %s87
    %p89 = scmp.eq.s32.totalorder %s23, 0
    %p90 = por %p88, %p89
    %s91 = ssub.s32 %s24, %s36
    %p92 = scmp.eq.s32.totalorder %s91, 0
    %s94 = sadd.s32 %s93, 1
    %s95 = scalar_select %p92, %s93, %s94
    %p98 = pneg %p92
    %p99 = scmp.eq.s32.totalorder %s17, 1
    %p100 = por %p98, %p99
    %p101 = scmp.ne.s32.totalorder %s93, %s96
    %p102 = scmp.eq.s32.totalorder %s17, 0
    %p103 = por %p101, %p102
    %p104 = scmp.ne.s32.totalorder %s93, %s96
    %p105 = scmp.eq.s32.totalorder %s22, 1
    %p106 = por %p104, %p105
    %p107 = scmp.ne.s32.totalorder %s96, %s97
    %p108 = scmp.eq.s32.totalorder %s22, 0
    %p109 = por %p107, %p108
    %p110 = scmp.ne.s32.totalorder %s96, %s97
    %p111 = scmp.eq.s32.totalorder %s23, 1
    %p112 = por %p110, %p111
    %p114 = scmp.ne.s32.totalorder %s97, %s113
    %p115 = scmp.eq.s32.totalorder %s23, 0
    %p116 = por %p114, %p115
    %s118 = sadd.s32 %s117, 1
    %p121 = scmp.eq.s32.totalorder %s17, 1
    %p122 = scmp.ne.s32.totalorder %s117, %s119
    %p123 = scmp.eq.s32.totalorder %s17, 0
    %p124 = por %p122, %p123
    %p125 = scmp.ne.s32.totalorder %s117, %s119
    %p126 = scmp.eq.s32.totalorder %s22, 1
    %p127 = por %p125, %p126
    %p128 = scmp.ne.s32.totalorder %s119, %s120
    %p129 = scmp.eq.s32.totalorder %s22, 0
    %p130 = por %p128, %p129
    %p131 = scmp.ne.s32.totalorder %s119, %s120
    %p132 = scmp.eq.s32.totalorder %s23, 1
    %p133 = por %p131, %p132
    %p135 = scmp.ne.s32.totalorder %s120, %s134
    %p136 = scmp.eq.s32.totalorder %s23, 0
    %p137 = por %p135, %p136
    %s139 = sadd.s32 %s138, 1
    %p142 = scmp.eq.s32.totalorder %s17, 1
    %p143 = scmp.ne.s32.totalorder %s138, %s140
    %p144 = scmp.eq.s32.totalorder %s17, 0
    %p145 = por %p143, %p144
    %p146 = scmp.ne.s32.totalorder %s138, %s140
    %p147 = scmp.eq.s32.totalorder %s22, 1
    %p148 = por %p146, %p147
    %p149 = scmp.ne.s32.totalorder %s140, %s141
    %p150 = scmp.eq.s32.totalorder %s22, 0
    %p151 = por %p149, %p150
    %p152 = scmp.ne.s32.totalorder %s140, %s141
    %p153 = scmp.eq.s32.totalorder %s23, 1
    %p154 = por %p152, %p153
    %p156 = scmp.ne.s32.totalorder %s141, %s155
    %p157 = scmp.eq.s32.totalorder %s23, 0
    %p158 = por %p156, %p157
    %s160 = sadd.s32 %s159, 1
    %p163 = scmp.eq.s32.totalorder %s17, 1
    %p164 = scmp.ne.s32.totalorder %s159, %s161
    %p165 = scmp.eq.s32.totalorder %s17, 0
    %p166 = por %p164, %p165
    %p167 = scmp.ne.s32.totalorder %s159, %s161
    %p168 = scmp.eq.s32.totalorder %s22, 1
    %p169 = por %p167, %p168
    %p170 = scmp.ne.s32.totalorder %s161, %s162
    %p171 = scmp.eq.s32.totalorder %s22, 0
    %p172 = por %p170, %p171
    %p173 = scmp.ne.s32.totalorder %s161, %s162
    %p174 = scmp.eq.s32.totalorder %s23, 1
    %p175 = por %p173, %p174
    %p177 = scmp.ne.s32.totalorder %s162, %s176
    %p178 = scmp.eq.s32.totalorder %s23, 0
    %p179 = por %p177, %p178
    %s181 = sadd.s32 %s180, 1
    %p184 = scmp.eq.s32.totalorder %s17, 1
    %p185 = scmp.ne.s32.totalorder %s180, %s182
    %p186 = scmp.eq.s32.totalorder %s17, 0
    %p187 = por %p185, %p186
    %p188 = scmp.ne.s32.totalorder %s180, %s182
    %p189 = scmp.eq.s32.totalorder %s22, 1
    %p190 = por %p188, %p189
    %p191 = scmp.ne.s32.totalorder %s182, %s183
    %p192 = scmp.eq.s32.totalorder %s22, 0
    %p193 = por %p191, %p192
    %p194 = scmp.ne.s32.totalorder %s182, %s183
    %p195 = scmp.eq.s32.totalorder %s23, 1
    %p196 = por %p194, %p195
    %p198 = scmp.ne.s32.totalorder %s183, %s197
    %p199 = scmp.eq.s32.totalorder %s23, 0
    %p200 = por %p198, %p199
    %s202 = sadd.s32 %s201, 1
    %p205 = scmp.eq.s32.totalorder %s17, 1
    %p206 = scmp.ne.s32.totalorder %s201, %s203
    %p207 = scmp.eq.s32.totalorder %s17, 0
    %p208 = por %p206, %p207
    %p209 = scmp.ne.s32.totalorder %s201, %s203
    %p210 = scmp.eq.s32.totalorder %s22, 1
    %p211 = por %p209, %p210
    %p212 = scmp.ne.s32.totalorder %s203, %s204
    %p213 = scmp.eq.s32.totalorder %s22, 0
    %p214 = por %p212, %p213
    %p215 = scmp.ne.s32.totalorder %s203, %s204
    %p216 = scmp.eq.s32.totalorder %s23, 1
    %p217 = por %p215, %p216
    %p219 = scmp.ne.s32.totalorder %s204, %s218
    %p220 = scmp.eq.s32.totalorder %s23, 0
    %p221 = por %p219, %p220
    %s223 = sadd.s32 %s222, 1
    %p226 = scmp.eq.s32.totalorder %s17, 1
    %p227 = scmp.ne.s32.totalorder %s222, %s224
    %p228 = scmp.eq.s32.totalorder %s17, 0
    %p229 = por %p227, %p228
    %p230 = scmp.ne.s32.totalorder %s222, %s224
    %p231 = scmp.eq.s32.totalorder %s22, 1
    %p232 = por %p230, %p231
    %p233 = scmp.ne.s32.totalorder %s224, %s225
    %p234 = scmp.eq.s32.totalorder %s22, 0
    %p235 = por %p233, %p234
    %p236 = scmp.ne.s32.totalorder %s224, %s225
    %p237 = scmp.eq.s32.totalorder %s23, 1
    %p238 = por %p236, %p237
    %p240 = scmp.ne.s32.totalorder %s225, %s239
    %p241 = scmp.eq.s32.totalorder %s23, 0
    %p242 = por %p240, %p241
    %s244 = sadd.s32 %s243, 1
    %p247 = scmp.eq.s32.totalorder %s17, 1
    %p248 = scmp.ne.s32.totalorder %s243, %s245
    %p249 = scmp.eq.s32.totalorder %s17, 0
    %p250 = por %p248, %p249
    %p251 = scmp.ne.s32.totalorder %s243, %s245
    %p252 = scmp.eq.s32.totalorder %s22, 1
    %p253 = por %p251, %p252
    %p254 = scmp.ne.s32.totalorder %s245, %s246
    %p255 = scmp.eq.s32.totalorder %s22, 0
    %p256 = por %p254, %p255
    %p257 = scmp.ne.s32.totalorder %s245, %s246
    %p258 = scmp.eq.s32.totalorder %s23, 1
    %p259 = por %p257, %p258
    %p261 = scmp.ne.s32.totalorder %s246, %s260
    %p262 = scmp.eq.s32.totalorder %s23, 0
    %p263 = por %p261, %p262
    %s265 = sadd.s32 %s264, 1
    %p268 = scmp.eq.s32.totalorder %s17, 1
    %p269 = scmp.ne.s32.totalorder %s264, %s266
    %p270 = scmp.eq.s32.totalorder %s17, 0
    %p271 = por %p269, %p270
    %p272 = scmp.ne.s32.totalorder %s264, %s266
    %p273 = scmp.eq.s32.totalorder %s22, 1
    %p274 = por %p272, %p273
    %p275 = scmp.ne.s32.totalorder %s266, %s267
    %p276 = scmp.eq.s32.totalorder %s22, 0
    %p277 = por %p275, %p276
    %p278 = scmp.ne.s32.totalorder %s266, %s267
    %p279 = scmp.eq.s32.totalorder %s23, 1
    %p280 = por %p278, %p279
    %p282 = scmp.ne.s32.totalorder %s267, %s281
    %p283 = scmp.eq.s32.totalorder %s23, 0
    %p284 = por %p282, %p283
    %s285 = ssub.s32 %s24, %s36
    %s286 = ssub.s32 %s25, %s32
    %s287 = sor.u32 %s285, %s286
    %p288 = scmp.eq.s32.totalorder %s287, 0
    %s290 = sadd.s32 %s289, 1
    %s291 = scalar_select %p288, %s289, %s290
    %p294 = pneg %p288
    %p295 = scmp.eq.s32.totalorder %s17, 1
    %p296 = por %p294, %p295
    %p297 = scmp.ne.s32.totalorder %s289, %s292
    %p298 = scmp.eq.s32.totalorder %s17, 0
    %p299 = por %p297, %p298
    %p300 = scmp.ne.s32.totalorder %s289, %s292
    %p301 = scmp.eq.s32.totalorder %s22, 1
    %p302 = por %p300, %p301
    %p303 = scmp.ne.s32.totalorder %s292, %s293
    %p304 = scmp.eq.s32.totalorder %s22, 0
    %p305 = por %p303, %p304
    %p306 = scmp.ne.s32.totalorder %s292, %s293
    %p307 = scmp.eq.s32.totalorder %s23, 1
    %p308 = por %p306, %p307
    %p310 = scmp.ne.s32.totalorder %s293, %s309
    %p311 = scmp.eq.s32.totalorder %s23, 0
    %p312 = por %p310, %p311
    %p313 = scmp.le.s32.totalorder 1, %s17
    %p314 = scmp.lt.s32.totalorder %s17, 3
    %p315 = pnand %p313, %p314
    %p316 = pneg %p315
    // Predicated region
    $region9: #{_lambda_.17} parent=5 // pred_check
      _
    $region10: #{_lambda_.17} parent=5 // pred_check_branch
      %318 = sbr.rel (%p315) target = $region12
    $region11: #{_lambda_.17} parent=5 // pred_region
      %s319 = ssub.s32 %s17, 1
      // Predicated region
      $region13: #{_lambda_.17} parent=11 // pred_check
        %p320 = pneg %p130
      $region14: #{_lambda_.17} parent=11 // pred_check_branch
        %322 = sbr.rel (%p320) target = $region16
      $region15: #{_lambda_.17} parent=11 // pred_region
        _
      $region16: #{_lambda_.17} parent=11 // pred_fallthru
        _
      // Predicated region
      $region17: #{_lambda_.17} parent=11 // pred_check
        %p323 = pneg %p151
      $region18: #{_lambda_.17} parent=11 // pred_check_branch
        %325 = sbr.rel (%p323) target = $region20
      $region19: #{_lambda_.17} parent=11 // pred_region
        _
      $region20: #{_lambda_.17} parent=11 // pred_fallthru
        _
      // Predicated region
      $region21: #{_lambda_.17} parent=11 // pred_check
        %p326 = pneg %p172
      $region22: #{_lambda_.17} parent=11 // pred_check_branch
        %328 = sbr.rel (%p326) target = $region24
      $region23: #{_lambda_.17} parent=11 // pred_region
        _
      $region24: #{_lambda_.17} parent=11 // pred_fallthru
        _
      // Predicated region
      $region25: #{_lambda_.17} parent=11 // pred_check
        %p329 = pneg %p193
      $region26: #{_lambda_.17} parent=11 // pred_check_branch
        %331 = sbr.rel (%p329) target = $region28
      $region27: #{_lambda_.17} parent=11 // pred_region
        _
      $region28: #{_lambda_.17} parent=11 // pred_fallthru
        _
      // Predicated region
      $region29: #{_lambda_.17} parent=11 // pred_check
        %p332 = pneg %p214
      $region30: #{_lambda_.17} parent=11 // pred_check_branch
        %334 = sbr.rel (%p332) target = $region32
      $region31: #{_lambda_.17} parent=11 // pred_region
        _
      $region32: #{_lambda_.17} parent=11 // pred_fallthru
        _
      // Predicated region
      $region33: #{_lambda_.17} parent=11 // pred_check
        %p335 = pneg %p235
      $region34: #{_lambda_.17} parent=11 // pred_check_branch
        %337 = sbr.rel (%p335) target = $region36
      $region35: #{_lambda_.17} parent=11 // pred_region
        _
      $region36: #{_lambda_.17} parent=11 // pred_fallthru
        _
      // Predicated region
      $region37: #{_lambda_.17} parent=11 // pred_check
        %p338 = pneg %p256
      $region38: #{_lambda_.17} parent=11 // pred_check_branch
        %340 = sbr.rel (%p338) target = $region40
      $region39: #{_lambda_.17} parent=11 // pred_region
        _
      $region40: #{_lambda_.17} parent=11 // pred_fallthru
        _
      // Predicated region
      $region41: #{_lambda_.17} parent=11 // pred_check
        %p341 = pneg %p277
      $region42: #{_lambda_.17} parent=11 // pred_check_branch
        %343 = sbr.rel (%p341) target = $region44
      $region43: #{_lambda_.17} parent=11 // pred_region
        _
      $region44: #{_lambda_.17} parent=11 // pred_fallthru
        _
    $region12: #{_lambda_.17} parent=5 // pred_fallthru
      _
    %p344 = scmp.lt.s32.totalorder %s17, 2
    // Predicated region
    $region45: #{_lambda_.17} parent=5 // pred_check
      %p345 = pneg %p344
    $region46: #{_lambda_.17} parent=5 // pred_check_branch
      %347 = sbr.rel (%p345) target = $region48
    $region47: #{_lambda_.17} parent=5 // pred_region
      // Predicated region
      $region49: #{_lambda_.17} parent=47 // pred_check
        %p348 = pneg %p51
      $region50: #{_lambda_.17} parent=47 // pred_check_branch
        %350 = sbr.rel (%p348) target = $region52
      $region51: #{_lambda_.17} parent=47 // pred_region
        %p351 = scmp.lt.s32.totalorder %s24, 1
        %s352 = scalar_select %p351, %s24, 1
        %p353 = scmp.lt.s32.totalorder %s25, 0
        %s354 = scalar_select %p353, %s25, 0
        %s355 = sadd.s32 %s354, %s352
        %s356 = smul.addr %s355, 4
        %s357 = scalar_lea.vmem %s0, %s356
      $region52: #{_lambda_.17} parent=47 // pred_fallthru
        _
      // Predicated region
      $region53: #{_lambda_.17} parent=47 // pred_check
        %p358 = pneg %p77
      $region54: #{_lambda_.17} parent=47 // pred_check_branch
        %360 = sbr.rel (%p358) target = $region56
      $region55: #{_lambda_.17} parent=47 // pred_region
        %p361 = scmp.lt.s32.totalorder %s24, 1
        %s362 = scalar_select %p361, %s24, 1
        %s363 = smul.addr %s362, 4
        %s364 = scalar_lea.vmem %s1, %s363
      $region56: #{_lambda_.17} parent=47 // pred_fallthru
        _
      // Predicated region
      $region57: #{_lambda_.17} parent=47 // pred_check
        %p365 = pneg %p103
      $region58: #{_lambda_.17} parent=47 // pred_check_branch
        %367 = sbr.rel (%p365) target = $region60
      $region59: #{_lambda_.17} parent=47 // pred_region
        %p368 = scmp.lt.s32.totalorder %s24, 1
        %s369 = scalar_select %p368, %s24, 1
        %s370 = scalar_lea.vmem %s2, %s369
      $region60: #{_lambda_.17} parent=47 // pred_fallthru
        _
    $region48: #{_lambda_.17} parent=5 // pred_fallthru
      _
    %p371 = scmp.le.s32.totalorder 1, %s17
    %p372 = scmp.lt.s32.totalorder %s17, 3
    %p373 = pnand %p371, %p372
    %p374 = pneg %p373
    // Predicated region
    $region61: #{_lambda_.17} parent=5 // pred_check
      _
    $region62: #{_lambda_.17} parent=5 // pred_check_branch
      %376 = sbr.rel (%p373) target = $region64
    $region63: #{_lambda_.17} parent=5 // pred_region
      %s377 = ssub.s32 %s17, 1
      %p378 = scmp.lt.s32.totalorder %s26, 1
      %s379 = scalar_select %p378, %s26, 1
      %p380 = scmp.lt.s32.totalorder %s27, 0
      %s381 = scalar_select %p380, %s27, 0
      %s382 = sadd.s32 %s381, %s379
      %s383 = smul.addr %s382, 4
      %s384 = scalar_lea.vmem %s0, %s383
      %p385 = pneg %p57
      %p386 = pneg %p54
      %p387 = scmp.lt.s32.totalorder %s26, 1
      %s388 = scalar_select %p387, %s26, 1
      %s389 = smul.addr %s388, 4
      %s390 = scalar_lea.vmem %s1, %s389
      %p391 = pneg %p83
      %p392 = pneg %p80
      %p393 = scmp.lt.s32.totalorder %s26, 1
      %s394 = scalar_select %p393, %s26, 1
      %s395 = scalar_lea.vmem %s2, %s394
      %p396 = pneg %p109
      %p397 = pneg %p106
      %p398 = pneg %p130
      %p399 = pneg %p127
      %p400 = pneg %p151
      %p401 = pneg %p148
      %p402 = pneg %p172
      %p403 = pneg %p169
      %p404 = pneg %p193
      %p405 = pneg %p190
      %p406 = pneg %p214
      %p407 = pneg %p211
      %p408 = pneg %p235
      %p409 = pneg %p232
      %p410 = pneg %p256
      %p411 = pneg %p253
      %p412 = pneg %p277
      %p413 = pneg %p274
      %p414 = pneg %p305
      %p415 = pneg %p302
      %p416 = scmp.lt.s32.totalorder %s26, 1
      %s417 = scalar_select %p416, %s26, 1
      %p418 = scmp.lt.s32.totalorder %s27, 0
      %s419 = scalar_select %p418, %s27, 0
      %s420 = sadd.s32 %s419, %s417
      %s421 = smul.addr %s420, 4
      %s422 = scalar_lea.vmem %s11, %s421
      %p423 = scmp.lt.s32.totalorder %s26, 1
      %s424 = scalar_select %p423, %s26, 1
      %p425 = scmp.lt.s32.totalorder %s27, 0
      %s426 = scalar_select %p425, %s27, 0
      %s427 = sadd.s32 %s426, %s424
      %s428 = smul.addr %s427, 4
      %s429 = scalar_lea.vmem %s0, %s428
      %p430 = scmp.lt.s32.totalorder %s26, 1
      %s431 = scalar_select %p430, %s26, 1
      %s432 = smul.addr %s431, 4
      %s433 = scalar_lea.vmem %s1, %s432
      %p434 = scmp.lt.s32.totalorder %s26, 1
      %s435 = scalar_select %p434, %s26, 1
      %s436 = scalar_lea.vmem %s2, %s435
      %p437 = scmp.lt.s32.totalorder %s26, 1
      %s438 = scalar_select %p437, %s26, 1
      %p439 = scmp.lt.s32.totalorder %s27, 0
      %s440 = scalar_select %p439, %s27, 0
      %s441 = sadd.s32 %s440, %s438
      %s442 = smul.addr %s441, 4
      %s443 = scalar_lea.vmem %s11, %s442
      %v445 = vld [vmem:[%s429] sm:$0xf]
      %v446 = vunpack.c.l.bf16 %v445
      %v447 = vld [vmem:[%s3] sm:$0xf]
      %v448 = vld [vmem:[%s3 + $0x4] sm:$0xf]
      %v449 = vld [vmem:[%s3 + $0x8] sm:$0xf]
      %v450 = vld [vmem:[%s3 + $0xc] sm:$0xf]
      %v451 = vld [vmem:[%s4] sm:$0x1]
      %v453 = vperm.slane %v451, 0
      %v459 = vunpack.c.l.b16 %v447
      %v460 = vunpack.c.l.b16 %v448
      %v461 = vunpack.c.l.b16 %v449
      %v462 = vunpack.c.l.b16 %v450
      %v463 = vpack.c.b16 %v460, %v459
      %v464 = vpack.c.b16 %v462, %v461
      %vm467 = vcmask 261120
      %v469 = vsel %vm467, %v445, 0
      %471 = vmatpush.bf16.msra.mxu0 0
      %472 = vmatpush.bf16.msra.mxu0 0
      %473 = vmatpush.bf16.msra.mxu0 0
      %474 = vmatpush.bf16.msra.mxu0 0
      %475 = vmatpush.bf16.msra.mxu0 0
      %476 = vmatpush.bf16.msra.mxu0 0
      %477 = vmatpush.bf16.msra.mxu0 %v464
      %478 = vmatpush.bf16.msra.mxu0 %v463
      %479 = vmatmul.bf16.gmra.mxu0 %v469
      %v480 = vpop.f32.mrf.mxu0
      %v481 = vadd.f32 %v453, %v480
      %v482 = vpop.f32.mrf.mxu0
      %483 = vdwg.mxu0
      %v484 = vmul.f32 %v481, 0.35355338
      %v485 = vld [vmem:[%s433] sm:$0xf]
      %v486 = vld [vmem:[%s5] sm:$0xf]
      %v487 = vld [vmem:[%s5 + $0x4] sm:$0xf]
      %v488 = vld [vmem:[%s5 + $0x8] sm:$0xf]
      %v489 = vld [vmem:[%s5 + $0xc] sm:$0xf]
      %v490 = vld [vmem:[%s6] sm:$0x1]
      %v492 = vperm.slane %v490, 0
      %v498 = vunpack.c.l.b16 %v486
      %v499 = vunpack.c.l.b16 %v487
      %v500 = vunpack.c.l.b16 %v488
      %v501 = vunpack.c.l.b16 %v489
      %v502 = vpack.c.b16 %v499, %v498
      %v503 = vpack.c.b16 %v501, %v500
      %v507 = vsel %vm467, %v485, 0
      %509 = vmatpush.bf16.msra.mxu0 0
      %510 = vmatpush.bf16.msra.mxu0 0
      %511 = vmatpush.bf16.msra.mxu0 0
      %512 = vmatpush.bf16.msra.mxu0 0
      %513 = vmatpush.bf16.msra.mxu0 0
      %514 = vmatpush.bf16.msra.mxu0 0
      %515 = vmatpush.bf16.msra.mxu0 %v503
      %516 = vmatpush.bf16.msra.mxu0 %v502
      %517 = vmatmul.bf16.gmra.mxu0 %v507
      %v518 = vpop.f32.mrf.mxu0
      %v519 = vadd.f32 %v492, %v518
      %v520 = vpop.f32.mrf.mxu0
      %521 = vdwg.mxu0
      %v522 = vld [vmem:[%s436] sm:$0x1]
      %v524 = vperm.slane %v522, 0
      %s526 = smul.u32 %s27, 8
      %v527 = vlaneseq
      %v528 = vshrl.u32 %v527, 7
      %v529 = vstv %s526
      %v530 = vadd.s32 %v528, %v529
      %v531 = vlaneseq
      %v532 = vand.u32 %v531, 127
      %vm533 = vcmp.ge.s32.totalorder %v530, %v532
      %v534 = vsel %vm533, 0.0, -1e+09
      %v535 = vadd.f32 %v524, %v534
      %v536 = vpack.c.bf16 %v484, %v484
      %v537 = vpack.c.bf16 %v519, %v519
      %vm538 = vcmask 64512
      %v540 = vsel %vm538, %v536, 0
      %v543 = vsel %vm538, %v537, 0
      %545 = vmatpush.bf16.xpose.msra.mxu0 0
      %546 = vmatpush.bf16.xpose.msra.mxu0 0
      %547 = vmatpush.bf16.xpose.msra.mxu0 0
      %548 = vmatpush.bf16.xpose.msra.mxu0 0
      %549 = vmatpush.bf16.xpose.msra.mxu0 0
      %550 = vmatpush.bf16.xpose.msra.mxu0 0
      %551 = vmatpush.bf16.xpose.msra.mxu0 0
      %552 = vmatpush.bf16.xpose.msra.mxu0 %v543
      %553 = vmatmul.bf16.gmra.mxu0 %v540
      %v554 = vpop.f32.mrf.mxu0
      %v555 = vadd.f32 %v535, %v554
      %v556 = vpop.f32.mrf.mxu0
      %557 = vdwg.mxu0
      %v558 = vsel %vm538, %v555, -inf
      %559 = vmax.xlane.f32.xlu0 %v558
      %v560 = vpop.xlane.xlu0 %559
      %v561 = vsub.f32 %v555, %v560
      %v562 = vmul.f32 %v561, 1.442695
      %v563 = vpow.pop %v562
      %v564 = vsel %vm538, %v563, 0.0
      %565 = vadd.xlane.f32.xlu0 %v564
      %v566 = vpop.xlane.xlu0 %565
      %v567 = vrcp.pop %v566
      %v568 = vmul.f32 %v563, %v567
      %v569 = vpack.c.bf16 %v568, %v568
      %571 = vrot.lane.b32.xlu0 %v537, 96
      %v572 = vpop.permute.xlu0 %571
      %v574 = vsel %vm538, %v569, 0
      %vm576 = vcmask 1043456
      %v578 = vsel %vm576, %v572, 0
      %580 = vmatpush.bf16.msra.mxu0 0
      %581 = vmatpush.bf16.msra.mxu0 0
      %582 = vmatpush.bf16.msra.mxu0 0
      %583 = vmatpush.bf16.msra.mxu0 0
      %584 = vmatpush.bf16.msra.mxu0 0
      %585 = vmatpush.bf16.msra.mxu0 0
      %586 = vmatpush.bf16.msra.mxu0 0
      %587 = vmatpush.bf16.msra.mxu0 %v578
      %588 = vmatmul.bf16.gmra.mxu0 %v574
      %v589 = vpop.f32.mrf.mxu0
      %v590 = vadd.f32 0.0, %v589
      %v591 = vpop.f32.mrf.mxu0
      %592 = vdwg.mxu0
      %594 = vrot.lane.b32.xlu0 %v536, 120
      %v595 = vpop.permute.xlu0 %594
      %596 = vrot.lane.b32.xlu0 %v537, 120
      %v597 = vpop.permute.xlu0 %596
      %v599 = vsel %vm538, %v595, 0
      %v602 = vsel %vm538, %v597, 0
      %604 = vmatpush.bf16.xpose.msra.mxu0 0
      %605 = vmatpush.bf16.xpose.msra.mxu0 0
      %606 = vmatpush.bf16.xpose.msra.mxu0 0
      %607 = vmatpush.bf16.xpose.msra.mxu0 0
      %608 = vmatpush.bf16.xpose.msra.mxu0 0
      %609 = vmatpush.bf16.xpose.msra.mxu0 0
      %610 = vmatpush.bf16.xpose.msra.mxu0 0
      %611 = vmatpush.bf16.xpose.msra.mxu0 %v602
      %612 = vmatmul.bf16.gmra.mxu0 %v599
      %v613 = vpop.f32.mrf.mxu0
      %v614 = vadd.f32 %v535, %v613
      %v615 = vpop.f32.mrf.mxu0
      %616 = vdwg.mxu0
      %v617 = vsel %vm538, %v614, -inf
      %618 = vmax.xlane.f32.xlu0 %v617
      %v619 = vpop.xlane.xlu0 %618
      %v620 = vsub.f32 %v614, %v619
      %v621 = vmul.f32 %v620, 1.442695
      %v622 = vpow.pop %v621
      %v623 = vsel %vm538, %v622, 0.0
      %624 = vadd.xlane.f32.xlu0 %v623
      %v625 = vpop.xlane.xlu0 %624
      %v626 = vrcp.pop %v625
      %v627 = vmul.f32 %v622, %v626
      %v628 = vpack.c.bf16 %v627, %v627
      %629 = vrot.lane.b32.xlu0 %v537, 88
      %v630 = vpop.permute.xlu0 %629
      %v632 = vsel %vm538, %v628, 0
      %v635 = vsel %vm576, %v630, 0
      %637 = vmatpush.bf16.msra.mxu0 0
      %638 = vmatpush.bf16.msra.mxu0 0
      %639 = vmatpush.bf16.msra.mxu0 0
      %640 = vmatpush.bf16.msra.mxu0 0
      %641 = vmatpush.bf16.msra.mxu0 0
      %642 = vmatpush.bf16.msra.mxu0 0
      %643 = vmatpush.bf16.msra.mxu0 0
      %644 = vmatpush.bf16.msra.mxu0 %v635
      %645 = vmatmul.bf16.gmra.mxu0 %v632
      %v646 = vpop.f32.mrf.mxu0
      %v647 = vadd.f32 0.0, %v646
      %v648 = vpop.f32.mrf.mxu0
      %649 = vdwg.mxu0
      %650 = vrot.lane.b32.xlu0 %v536, 112
      %v651 = vpop.permute.xlu0 %650
      %652 = vrot.lane.b32.xlu0 %v537, 112
      %v653 = vpop.permute.xlu0 %652
      %v655 = vsel %vm538, %v651, 0
      %v658 = vsel %vm538, %v653, 0
      %660 = vmatpush.bf16.xpose.msra.mxu0 0
      %661 = vmatpush.bf16.xpose.msra.mxu0 0
      %662 = vmatpush.bf16.xpose.msra.mxu0 0
      %663 = vmatpush.bf16.xpose.msra.mxu0 0
      %664 = vmatpush.bf16.xpose.msra.mxu0 0
      %665 = vmatpush.bf16.xpose.msra.mxu0 0
      %666 = vmatpush.bf16.xpose.msra.mxu0 0
      %667 = vmatpush.bf16.xpose.msra.mxu0 %v658
      %668 = vmatmul.bf16.gmra.mxu0 %v655
      %v669 = vpop.f32.mrf.mxu0
      %v670 = vadd.f32 %v535, %v669
      %v671 = vpop.f32.mrf.mxu0
      %672 = vdwg.mxu0
      %v673 = vsel %vm538, %v670, -inf
      %674 = vmax.xlane.f32.xlu0 %v673
      %v675 = vpop.xlane.xlu0 %674
      %v676 = vsub.f32 %v670, %v675
      %v677 = vmul.f32 %v676, 1.442695
      %v678 = vpow.pop %v677
      %v679 = vsel %vm538, %v678, 0.0
      %680 = vadd.xlane.f32.xlu0 %v679
      %v681 = vpop.xlane.xlu0 %680
      %v682 = vrcp.pop %v681
      %v683 = vmul.f32 %v678, %v682
      %v684 = vpack.c.bf16 %v683, %v683
      %685 = vrot.lane.b32.xlu0 %v537, 80
      %v686 = vpop.permute.xlu0 %685
      %v688 = vsel %vm538, %v684, 0
      %v691 = vsel %vm576, %v686, 0
      %693 = vmatpush.bf16.msra.mxu0 0
      %694 = vmatpush.bf16.msra.mxu0 0
      %695 = vmatpush.bf16.msra.mxu0 0
      %696 = vmatpush.bf16.msra.mxu0 0
      %697 = vmatpush.bf16.msra.mxu0 0
      %698 = vmatpush.bf16.msra.mxu0 0
      %699 = vmatpush.bf16.msra.mxu0 0
      %700 = vmatpush.bf16.msra.mxu0 %v691
      %701 = vmatmul.bf16.gmra.mxu0 %v688
      %v702 = vpop.f32.mrf.mxu0
      %v703 = vadd.f32 0.0, %v702
      %v704 = vpop.f32.mrf.mxu0
      %705 = vdwg.mxu0
      %706 = vrot.lane.b32.xlu0 %v536, 104
      %v707 = vpop.permute.xlu0 %706
      %708 = vrot.lane.b32.xlu0 %v537, 104
      %v709 = vpop.permute.xlu0 %708
      %v711 = vsel %vm538, %v707, 0
      %v714 = vsel %vm538, %v709, 0
      %716 = vmatpush.bf16.xpose.msra.mxu0 0
      %717 = vmatpush.bf16.xpose.msra.mxu0 0
      %718 = vmatpush.bf16.xpose.msra.mxu0 0
      %719 = vmatpush.bf16.xpose.msra.mxu0 0
      %720 = vmatpush.bf16.xpose.msra.mxu0 0
      %721 = vmatpush.bf16.xpose.msra.mxu0 0
      %722 = vmatpush.bf16.xpose.msra.mxu0 0
      %723 = vmatpush.bf16.xpose.msra.mxu0 %v714
      %724 = vmatmul.bf16.gmra.mxu0 %v711
      %v725 = vpop.f32.mrf.mxu0
      %v726 = vadd.f32 %v535, %v725
      %v727 = vpop.f32.mrf.mxu0
      %728 = vdwg.mxu0
      %v729 = vsel %vm538, %v726, -inf
      %730 = vmax.xlane.f32.xlu0 %v729
      %v731 = vpop.xlane.xlu0 %730
      %v732 = vsub.f32 %v726, %v731
      %v733 = vmul.f32 %v732, 1.442695
      %v734 = vpow.pop %v733
      %v735 = vsel %vm538, %v734, 0.0
      %736 = vadd.xlane.f32.xlu0 %v735
      %v737 = vpop.xlane.xlu0 %736
      %v738 = vrcp.pop %v737
      %v739 = vmul.f32 %v734, %v738
      %v740 = vpack.c.bf16 %v739, %v739
      %741 = vrot.lane.b32.xlu0 %v537, 72
      %v742 = vpop.permute.xlu0 %741
      %v744 = vsel %vm538, %v740, 0
      %v747 = vsel %vm576, %v742, 0
      %749 = vmatpush.bf16.msra.mxu0 0
      %750 = vmatpush.bf16.msra.mxu0 0
      %751 = vmatpush.bf16.msra.mxu0 0
      %752 = vmatpush.bf16.msra.mxu0 0
      %753 = vmatpush.bf16.msra.mxu0 0
      %754 = vmatpush.bf16.msra.mxu0 0
      %755 = vmatpush.bf16.msra.mxu0 0
      %756 = vmatpush.bf16.msra.mxu0 %v747
      %757 = vmatmul.bf16.gmra.mxu0 %v744
      %v758 = vpop.f32.mrf.mxu0
      %v759 = vadd.f32 0.0, %v758
      %v760 = vpop.f32.mrf.mxu0
      %761 = vdwg.mxu0
      %763 = vrot.lane.b32.xlu0 %v647, 8
      %v764 = vpop.permute.xlu0 %763
      %767 = vrot.lane.b32.xlu0 %v703, 16
      %v768 = vpop.permute.xlu0 %767
      %771 = vrot.lane.b32.xlu0 %v759, 24
      %v772 = vpop.permute.xlu0 %771
      %v774 = vsel %vm538, %v590, %v764
      %vm775 = vcmask 130048
      %v776 = vsel %vm775, %v774, %v768
      %vm777 = vcmask 195584
      %v778 = vsel %vm777, %v776, %v772
      %v779 = vpack.c.bf16 %v778, %v778
      %v780 = vld [vmem:[%s7] sm:$0xf]
      %v781 = vld [vmem:[%s7 + $0x4] sm:$0xf]
      %v782 = vld [vmem:[%s7 + $0x8] sm:$0xf]
      %v783 = vld [vmem:[%s7 + $0xc] sm:$0xf]
      %v784 = vld [vmem:[%s8] sm:$0x1]
      %v786 = vperm.slane %v784, 0
      %v792 = vunpack.c.l.b16 %v780
      %v793 = vunpack.c.l.b16 %v781
      %v794 = vunpack.c.l.b16 %v782
      %v795 = vunpack.c.l.b16 %v783
      %v796 = vpack.c.b16 %v793, %v792
      %v797 = vpack.c.b16 %v795, %v794
      %v801 = vsel %vm467, %v779, 0
      %803 = vmatpush.bf16.msra.mxu0 0
      %804 = vmatpush.bf16.msra.mxu0 0
      %805 = vmatpush.bf16.msra.mxu0 0
      %806 = vmatpush.bf16.msra.mxu0 0
      %807 = vmatpush.bf16.msra.mxu0 0
      %808 = vmatpush.bf16.msra.mxu0 0
      %809 = vmatpush.bf16.msra.mxu0 %v797
      %810 = vmatpush.bf16.msra.mxu0 %v796
      %811 = vmatmul.bf16.gmra.mxu0 %v801
      %v812 = vpop.f32.mrf.mxu0
      %v813 = vadd.f32 %v786, %v812
      %v814 = vpop.f32.mrf.mxu0
      %815 = vdwg.mxu0
      %v816 = vadd.f32 %v446, %v813
      %v817 = vsel %vm467, %v816, 0.0
      %818 = vadd.xlane.f32.xlu0 %v817
      %v819 = vpop.xlane.xlu0 %818
      %v820 = vrcp.pop 32.0
      %v821 = vmul.f32 32.0, %v820
      %v822 = vsub.f32 1.0, %v821
      %v823 = vmul.f32 %v820, %v822
      %v824 = vadd.f32 %v820, %v823
      %vm825 = vweird.f32 %v820
      %v826 = vsel %vm825, %v820, %v824
      %v827 = vmul.f32 %v819, %v826
      %v828 = vsub.f32 %v816, %v827
      %v829 = vmul.f32 %v828, %v828
      %v830 = vsel %vm467, %v829, 0.0
      %831 = vadd.xlane.f32.xlu0 %v830
      %v832 = vpop.xlane.xlu0 %831
      %v833 = vmul.f32 %v832, %v826
      %v834 = vadd.f32 %v833, 1e-05
      %v835 = vrsqrt.pop %v834
      %v836 = vmul.f32 %v835, %v834
      %v837 = vmul.f32 %v836, %v835
      %v838 = vmul.f32 0.5, %v837
      %v839 = vsub.f32 1.5, %v838
      %v840 = vmul.f32 %v835, %v839
      %vm841 = vweird.f32 %v834
      %vm842 = vweird.f32 %v835
      %vm843 = vmor %vm841, %vm842
      %v844 = vsel %vm843, %v835, %v840
      %v845 = vmul.f32 %v828, %v844
      %v846 = vld [vmem:[%s9] sm:$0x1]
      %v848 = vperm.slane %v846, 0
      %v850 = vmul.f32 %v845, %v848
      %v851 = vld [vmem:[%s10] sm:$0x1]
      %v853 = vperm.slane %v851, 0
      %v855 = vadd.f32 %v850, %v853
      %v856 = vpack.c.bf16 %v855, %v855
      %vm857 = vcmask 257024
      %858 = vst.msk [vmem:[%s443] sm:$0xf] %vm857, %v856
      %p859 = scmp.lt.s32.totalorder %s26, 1
      %s860 = scalar_select %p859, %s26, 1
      %p861 = scmp.lt.s32.totalorder %s27, 0
      %s862 = scalar_select %p861, %s27, 0
      %s863 = sadd.s32 %s862, %s860
      %s864 = smul.addr %s863, 4
      %s865 = scalar_lea.vmem %s11, %s864
      // Predicated region
      $region65: #{_lambda_.17} parent=63 // pred_check
        %p866 = pneg %p302
      $region66: #{_lambda_.17} parent=63 // pred_check_branch
        %868 = sbr.rel (%p866) target = $region68
      $region67: #{_lambda_.17} parent=63 // pred_region
        _
      $region68: #{_lambda_.17} parent=63 // pred_fallthru
        _
    $region64: #{_lambda_.17} parent=5 // pred_fallthru
      _
    %p869 = scmp.le.s32.totalorder 2, %s17
    // Predicated region
    $region69: #{_lambda_.17} parent=5 // pred_check
      %p870 = pneg %p869
    $region70: #{_lambda_.17} parent=5 // pred_check_branch
      %872 = sbr.rel (%p870) target = $region72
    $region71: #{_lambda_.17} parent=5 // pred_region
      %s873 = ssub.s32 %s17, 2
      // Predicated region
      $region73: #{_lambda_.17} parent=71 // pred_check
        %p874 = pneg %p308
      $region74: #{_lambda_.17} parent=71 // pred_check_branch
        %876 = sbr.rel (%p874) target = $region76
      $region75: #{_lambda_.17} parent=71 // pred_region
        %p877 = scmp.lt.s32.totalorder %s28, 1
        %s878 = scalar_select %p877, %s28, 1
        %p879 = scmp.lt.s32.totalorder %s29, 0
        %s880 = scalar_select %p879, %s29, 0
        %s881 = sadd.s32 %s880, %s878
        %s882 = smul.addr %s881, 4
        %s883 = scalar_lea.vmem %s11, %s882
      $region76: #{_lambda_.17} parent=71 // pred_fallthru
        _
    $region72: #{_lambda_.17} parent=5 // pred_fallthru
      _
  $region6: #{_lambda_.17} parent=0 // loop_footer
    %s21 = sadd.s32 1, %s17
  $region7: #{_lambda_.17} parent=0 // loop_footer_branch
    %16 = sbr.rel target = $region3
  $region8: #{_lambda_.17} parent=0 // loop_exit
    _

</llo_original>
